<compile_context>
chip_gen: v7x
topology: tpu7x:2x2x1
jax: 0.10.0
libtpu: 0.0.40
codegen_flags: <defaults>
</compile_context>

<pallas_src>
import functools

import numpy as np
import jax
import jax.numpy as jnp
from jax import lax
from jax.experimental import pallas as pl
from jax.experimental.pallas import tpu as pltpu


# ConvTranspose2d(k=4, s=2, p=1) sub-pixel taps per output parity:
# list of (input-index delta, kernel tap index); identical for rows & columns.
_TCT_TAPS = (((0, 1), (-1, 3)),   # output parity 0
             ((1, 0), (0, 2)))    # output parity 1

_PAD = 5   # row padding of the shared VMEM scratch (>= max dilation = 5)


# ---------------------------------------------------------------------------
# The fused kernel: whole ContextualBlock for one image per grid step.
# ---------------------------------------------------------------------------
def _contextual_kernel(x_ref, w_oc_ref, oc_scale_ref, oc_shift_ref,
                       w_br_ref, b_br_ref, w_cc_ref, b_cc_ref,
                       w_rc_ref, rc_scale_ref, rc_shift_ref,
                       o_ref, pad_ref, *, C, HB, WB):
    f32 = jnp.float32
    LW = WB * C          # lane width of one HB x WB x C activation map
    P = _PAD

    def mm(a, w):
        return jnp.dot(a, w, preferred_element_type=f32)

    # ---- orginal_conv: Conv(4x4, s2, p1) + folded BN + ReLU.
    # Width taps are pre-folded into the banded matrices -> 2 matmuls (row taps).
    acc = (mm(x_ref[0, 0:HB, :], w_oc_ref[0])
           + mm(x_ref[0, 1:HB + 1, :], w_oc_ref[1]))
    inputs = jnp.maximum(acc * oc_scale_ref[...] + oc_shift_ref[...], 0.0)

    # ---- shared row-padded scratch; border rows stay zero for every layer
    pad_ref[...] = jnp.zeros_like(pad_ref)

    def dil_conv(v, layer, d):
        # dilated 3x3 conv: width taps pre-folded -> 3 matmuls (one per ky),
        # only sublane (row) shifted reads from the padded scratch.
        pad_ref[P:P + HB, :] = v
        out = jnp.zeros((HB, LW), f32)
        for ky in range(3):
            r0 = P + d * (ky - 1)
            out = out + mm(pad_ref[r0:r0 + HB, :], w_br_ref[layer, ky])
        return out + b_br_ref[layer]

    def branch(v, k):
        y = dil_conv(v, 3 * k + 0, 1)
        y = dil_conv(y, 3 * k + 1, 3)
        y = dil_conv(y, 3 * k + 2, 5)
        return y

    x1 = branch(inputs, 0)
    x2 = branch(inputs + x1, 1)          # residual adds fused in-kernel
    x3 = branch(inputs + x2, 2)

    # ---- conv_c: 1x1 over cat(x1,x2,x3); concat fused into 3 matmuls
    out = (mm(x1, w_cc_ref[0]) + mm(x2, w_cc_ref[1]) + mm(x3, w_cc_ref[2])
           + b_cc_ref[...])

    # ---- recon: ConvTranspose2d(4, s2, p1) + folded BN + ReLU, sub-pixel form.
    # Column taps & parity layout are pre-folded -> 3 matmuls (row shifts -1,0,1)
    # producing the full (HB, 4*LW) lane tile directly.
    pad_ref[P:P + HB, :] = inputs + out
    y = jnp.zeros((HB, 4 * LW), f32)
    for t, dr in enumerate((-1, 0, 1)):
        y = y + mm(pad_ref[P + dr:P + dr + HB, :], w_rc_ref[t])
    o_ref[0] = jnp.maximum(y * rc_scale_ref[...] + rc_shift_ref[...], 0.0)


# ---------------------------------------------------------------------------
# One-time weight preparation (host-side numpy; hoisted out of the hot path).
# Width taps of every conv are folded into banded lane matrices.
# ---------------------------------------------------------------------------
def prepare_params(p, channels, height, width):
    C = channels
    WB = width // 2
    LW = WB * C

    def npf(a):
        return np.asarray(a, dtype=np.float32)

    def fold_bn(bias, bn):
        gamma, beta, mean, var, eps = bn
        s = npf(gamma) / np.sqrt(npf(var) + eps)
        return s, (npf(bias) - npf(mean)) * s + npf(beta)

    def lane(v, reps):
        return jnp.asarray(np.tile(npf(v), reps)[None, :])

    q = {}

    # orginal_conv: 2 row-tap banded matrices over the space-to-depth input.
    # Input lane layout per s2d row: (j_s2d, uu, vv, c); output lanes: (j, c).
    w = npf(p['oc_w'])                                  # (Cout, Cin, 4, 4)
    w_oc = np.zeros((2, (WB + 1) * 4 * C, LW), np.float32)
    for da in range(2):
        for j in range(WB):
            for db in range(2):
                for uu in range(2):
                    for vv in range(2):
                        r = ((j + db) * 2 + uu) * 2 + vv
                        w_oc[da, r * C:(r + 1) * C, j * C:(j + 1) * C] = \
                            w[:, :, 2 * da + uu, 2 * db + vv].T
    q['w_oc'] = jnp.asarray(w_oc)
    s, t = fold_bn(p['oc_b'], p['oc_bn'])
    q['oc_scale'], q['oc_shift'] = lane(s, WB), lane(t, WB)

    # dilated 3x3 convs: per (layer, ky) banded lane matrices (+ bias)
    dils = (1, 3, 5)
    w_br = np.zeros((9, 3, LW, LW), np.float32)
    b_br = np.zeros((9, 1, LW), np.float32)
    layer = 0
    for name in ('d1', 'd2', 'd3'):
        for li, (w3, b3) in enumerate(p[name]):
            d = dils[li]
            w3 = npf(w3)
            for ky in range(3):
                for j in range(WB):
                    for kx in range(3):
                        src = j + d * (kx - 1)
                        if 0 <= src < WB:
                            w_br[layer, ky, src * C:(src + 1) * C,
                                 j * C:(j + 1) * C] = w3[:, :, ky, kx].T
            b_br[layer, 0] = np.tile(npf(b3), WB)
            layer += 1
    q['w_br'], q['b_br'] = jnp.asarray(w_br), jnp.asarray(b_br)

    # conv_c: per-branch (C -> C) block-diagonal lane matrices of the 1x1 conv
    wc = npf(p['cc_w'])[:, :, 0, 0]                     # (C, 3C)
    w_cc = np.zeros((3, LW, LW), np.float32)
    for k in range(3):
        for j in range(WB):
            w_cc[k, j * C:(j + 1) * C, j * C:(j + 1) * C] = \
                wc[:, k * C:(k + 1) * C].T
    q['w_cc'] = jnp.asarray(w_cc)
    q['b_cc'] = lane(p['cc_b'], WB)

    # recon ConvTranspose2d: 3 row-shift banded matrices, LW -> 4*LW
    # (output lanes laid out as (parity_h, parity_w, n, c)).
    wr = npf(p['rc_w'])                                 # (Cin, Cout, 4, 4)
    w_rc = np.zeros((3, LW, 4 * LW), np.float32)
    for ti, dr in enumerate((-1, 0, 1)):
        for pp in range(2):
            kr = dict(_TCT_TAPS[pp]).get(dr)
            if kr is None:
                continue
            for qq in range(2):
                for n in range(WB):
                    for dc, kc in _TCT_TAPS[qq]:
                        src = n + dc
                        if 0 <= src < WB:
                            col = ((pp * 2 + qq) * WB + n) * C
                            w_rc[ti, src * C:(src + 1) * C, col:col + C] = \
                                wr[:, :, kr, kc]
    q['w_rc'] = jnp.asarray(w_rc)
    s, t = fold_bn(p['rc_b'], p['rc_bn'])
    q['rc_scale'], q['rc_shift'] = lane(s, 4 * WB), lane(t, 4 * WB)
    return q


# ---------------------------------------------------------------------------
# Forward: thin layout glue + one pallas_call.
# ---------------------------------------------------------------------------
def contextual_block_forward(x_nchw, q, *, channels):
    C = channels
    B, _, H, W = x_nchw.shape
    HB, WB = H // 2, W // 2
    LW = WB * C

    x = jnp.transpose(x_nchw, (0, 2, 3, 1)).astype(jnp.float32)       # NHWC

    # space-to-depth of the zero-padded input (pure layout, no duplication)
    xp = jnp.pad(x, ((0, 0), (1, 1), (1, 1), (0, 0)))                 # (B,H+2,W+2,C)
    xs = xp.reshape(B, HB + 1, 2, WB + 1, 2, C)
    xs = jnp.transpose(xs, (0, 1, 3, 2, 4, 5)).reshape(B, HB + 1, (WB + 1) * 4 * C)

    kernel = functools.partial(_contextual_kernel, C=C, HB=HB, WB=WB)

    weights = (q['w_oc'], q['oc_scale'], q['oc_shift'],
               q['w_br'], q['b_br'], q['w_cc'], q['b_cc'],
               q['w_rc'], q['rc_scale'], q['rc_shift'])

    def full_spec(arr):
        nd = arr.ndim
        return pl.BlockSpec(arr.shape, lambda b: (0,) * nd)

    y = pl.pallas_call(
        kernel,
        out_shape=jax.ShapeDtypeStruct((B, HB, 4 * LW), jnp.float32),
        grid=(B,),
        in_specs=[pl.BlockSpec((1, HB + 1, (WB + 1) * 4 * C),
                               lambda b: (b, 0, 0))]
                 + [full_spec(a) for a in weights],
        out_specs=pl.BlockSpec((1, HB, 4 * LW), lambda b: (b, 0, 0)),
        scratch_shapes=[pltpu.VMEM((HB + 2 * _PAD, LW), jnp.float32)],
        compiler_params=pltpu.CompilerParams(
            dimension_semantics=("parallel",)),
    )(xs, *weights)

    # inverse space-to-depth of the output: lanes are (parity_h, parity_w, j, c)
    y = y.reshape(B, HB, 2, 2, WB, C)                  # (B, i, p, q, j, c)
    y = jnp.transpose(y, (0, 1, 2, 4, 3, 5)).reshape(B, H, W, C)
    return jnp.transpose(y, (0, 3, 1, 2))              # NHWC -> NCHW


# ---------------------------------------------------------------------------
# Parameters (deterministic, synthetic; PyTorch layouts for the reference)
# ---------------------------------------------------------------------------
def init_params(key, channels):
    keys = iter(jax.random.split(key, 48))
    c = channels

    def conv_w(cout, cin, k):
        return jax.random.normal(next(keys), (cout, cin, k, k), jnp.float32) * 0.05

    def bias(n):
        return jax.random.normal(next(keys), (n,), jnp.float32) * 0.05

    def bn_params(n):
        gamma = 1.0 + 0.1 * jax.random.normal(next(keys), (n,), jnp.float32)
        beta = 0.1 * jax.random.normal(next(keys), (n,), jnp.float32)
        mean = jnp.zeros((n,), jnp.float32)   # running stats (eval mode)
        var = jnp.ones((n,), jnp.float32)
        return (gamma, beta, mean, var, 1e-5)

    p = {}
    p['oc_w'], p['oc_b'], p['oc_bn'] = conv_w(c, c, 4), bias(c), bn_params(c)
    for name in ('d1', 'd2', 'd3'):
        p[name] = [(conv_w(c, c, 3), bias(c)) for _ in range(3)]
    p['cc_w'], p['cc_b'] = conv_w(c, 3 * c, 1), bias(c)
    p['rc_w'] = jax.random.normal(next(keys), (c, c, 4, 4), jnp.float32) * 0.05
    p['rc_b'], p['rc_bn'] = bias(c), bn_params(c)
    return p


# ---------------------------------------------------------------------------
# Pure-JAX reference (lax convs) for correctness checking
# ---------------------------------------------------------------------------
def _ref_conv(x, w, b, stride, dilation, padding):
    w_hwio = jnp.transpose(w, (2, 3, 1, 0))
    y = lax.conv_general_dilated(x, w_hwio, (stride, stride),
                                 [(padding, padding), (padding, padding)],
                                 rhs_dilation=(dilation, dilation),
                                 dimension_numbers=('NHWC', 'HWIO', 'NHWC'))
    return y + b


def _ref_bn_relu(y, bn):
    gamma, beta, mean, var, eps = bn
    return jnp.maximum((y - mean) / jnp.sqrt(var + eps) * gamma + beta, 0.0)


def ref_forward(x_nchw, p):
    x = jnp.transpose(x_nchw, (0, 2, 3, 1)).astype(jnp.float32)
    inputs = _ref_bn_relu(_ref_conv(x, p['oc_w'], p['oc_b'], 2, 1, 1), p['oc_bn'])

    def branch(t, ws):
        y = _ref_conv(t, ws[0][0], ws[0][1], 1, 1, 1)
        y = _ref_conv(y, ws[1][0], ws[1][1], 1, 3, 3)
        y = _ref_conv(y, ws[2][0], ws[2][1], 1, 5, 5)
        return y

    x1 = branch(inputs, p['d1'])
    x2 = branch(inputs + x1, p['d2'])
    x3 = branch(inputs + x2, p['d3'])
    cat = jnp.concatenate([x1, x2, x3], axis=-1)
    out = _ref_conv(cat, p['cc_w'], p['cc_b'], 1, 1, 0)

    w_conv = jnp.transpose(p['rc_w'][:, :, ::-1, ::-1], (1, 0, 2, 3))
    w_hwio = jnp.transpose(w_conv, (2, 3, 1, 0))
    y = lax.conv_general_dilated(inputs + out, w_hwio, (1, 1), [(2, 2), (2, 2)],
                                 lhs_dilation=(2, 2),
                                 dimension_numbers=('NHWC', 'HWIO', 'NHWC')) + p['rc_b']
    y = _ref_bn_relu(y, p['rc_bn'])
    return jnp.transpose(y, (0, 3, 1, 2))


if __name__ == "__main__":
    # TODO(synk): BatchNorm is modeled in eval mode (running stats); training-mode
    # batch statistics are not reproduced.
    batch, channels, H, W = 2, 4, 16, 16
    key = jax.random.PRNGKey(0)
    kx, kp = jax.random.split(key)
    x = jax.random.normal(kx, (batch, channels, H, W), jnp.float32)
    params = init_params(kp, channels)

    # one-time, hoisted weight prep (BN folding, banded lane matrices)
    prepped = prepare_params(params, channels, H, W)

    fwd = jax.jit(functools.partial(contextual_block_forward, channels=channels))
    out = fwd(x, prepped)
    out = jax.block_until_ready(out)
    assert out.shape == (batch, channels, H, W)

    ref = ref_forward(x, params)
    err = float(jnp.max(jnp.abs(out - ref)))
    assert err < 1e-3, f"mismatch vs reference: {err}"
    print("KERNEL_OK")
</pallas_src>

<mosaic_0001>
module attributes {stable_mosaic.version = 11 : i64} {
  func.func @_contextual_kernel(%arg0: i32, %arg1: memref<1x9x144xf32, #tpu.memory_space<vmem>>, %arg2: memref<2x144x32xf32, #tpu.memory_space<vmem>>, %arg3: memref<1x32xf32, #tpu.memory_space<vmem>>, %arg4: memref<1x32xf32, #tpu.memory_space<vmem>>, %arg5: memref<9x3x32x32xf32, #tpu.memory_space<vmem>>, %arg6: memref<9x1x32xf32, #tpu.memory_space<vmem>>, %arg7: memref<3x32x32xf32, #tpu.memory_space<vmem>>, %arg8: memref<1x32xf32, #tpu.memory_space<vmem>>, %arg9: memref<3x32x128xf32, #tpu.memory_space<vmem>>, %arg10: memref<1x128xf32, #tpu.memory_space<vmem>>, %arg11: memref<1x128xf32, #tpu.memory_space<vmem>>, %arg12: memref<1x8x128xf32, #tpu.memory_space<vmem>>, %arg13: memref<18x32xf32, #tpu.memory_space<vmem>>) attributes {dimension_semantics = [#tpu.dimension_semantics<parallel>], iteration_bounds = array<i64: 2>, scalar_prefetch = 0 : i64, scratch_operands = 1 : i64, tpu.core_type = #tpu.core_type<tc>, window_params = [{transform_indices = @transform_0, window_bounds = array<i64: 1, 9, 144>}, {pipeline_mode = #tpu.pipeline_mode<synchronous>, transform_indices = @transform_1, window_bounds = array<i64: 2, 144, 32>}, {pipeline_mode = #tpu.pipeline_mode<synchronous>, transform_indices = @transform_2, window_bounds = array<i64: 1, 32>}, {pipeline_mode = #tpu.pipeline_mode<synchronous>, transform_indices = @transform_3, window_bounds = array<i64: 1, 32>}, {pipeline_mode = #tpu.pipeline_mode<synchronous>, transform_indices = @transform_4, window_bounds = array<i64: 9, 3, 32, 32>}, {pipeline_mode = #tpu.pipeline_mode<synchronous>, transform_indices = @transform_5, window_bounds = array<i64: 9, 1, 32>}, {pipeline_mode = #tpu.pipeline_mode<synchronous>, transform_indices = @transform_6, window_bounds = array<i64: 3, 32, 32>}, {pipeline_mode = #tpu.pipeline_mode<synchronous>, transform_indices = @transform_7, window_bounds = array<i64: 1, 32>}, {pipeline_mode = #tpu.pipeline_mode<synchronous>, transform_indices = @transform_8, window_bounds = array<i64: 3, 32, 128>}, {pipeline_mode = #tpu.pipeline_mode<synchronous>, transform_indices = @transform_9, window_bounds = array<i64: 1, 128>}, {pipeline_mode = #tpu.pipeline_mode<synchronous>, transform_indices = @transform_10, window_bounds = array<i64: 1, 128>}, {transform_indices = @transform_11, window_bounds = array<i64: 1, 8, 128>}]} {
    %c0 = arith.constant 0 : index
    %c0_0 = arith.constant 0 : index
    %c0_1 = arith.constant 0 : index
    %0 = vector.load %arg1[%c0, %c0_0, %c0_1] : memref<1x9x144xf32, #tpu.memory_space<vmem>>, vector<1x8x144xf32>
    %1 = vector.shape_cast %0 : vector<1x8x144xf32> to vector<8x144xf32>
    %c0_2 = arith.constant 0 : index
    %c0_3 = arith.constant 0 : index
    %c0_4 = arith.constant 0 : index
    %2 = vector.load %arg2[%c0_2, %c0_3, %c0_4] : memref<2x144x32xf32, #tpu.memory_space<vmem>>, vector<1x144x32xf32>
    %3 = vector.shape_cast %2 : vector<1x144x32xf32> to vector<144x32xf32>
    %cst = arith.constant dense<0.000000e+00> : vector<8x32xf32>
    %4 = tpu.matmul %1, %3, %cst {dimension_numbers = #tpu.dot_dimension_numbers<[1], [0], [0], [1], [0, 0, 1, 1], [], []>} : vector<8x144xf32>, vector<144x32xf32>, vector<8x32xf32> -> vector<8x32xf32>
    %c0_5 = arith.constant 0 : index
    %c1 = arith.constant 1 : index
    %c0_6 = arith.constant 0 : index
    %5 = vector.load %arg1[%c0_5, %c1, %c0_6] : memref<1x9x144xf32, #tpu.memory_space<vmem>>, vector<1x8x144xf32>
    %6 = vector.shape_cast %5 : vector<1x8x144xf32> to vector<8x144xf32>
    %c1_7 = arith.constant 1 : index
    %c0_8 = arith.constant 0 : index
    %c0_9 = arith.constant 0 : index
    %7 = vector.load %arg2[%c1_7, %c0_8, %c0_9] : memref<2x144x32xf32, #tpu.memory_space<vmem>>, vector<1x144x32xf32>
    %8 = vector.shape_cast %7 : vector<1x144x32xf32> to vector<144x32xf32>
    %cst_10 = arith.constant dense<0.000000e+00> : vector<8x32xf32>
    %9 = tpu.matmul %6, %8, %cst_10 {dimension_numbers = #tpu.dot_dimension_numbers<[1], [0], [0], [1], [0, 0, 1, 1], [], []>} : vector<8x144xf32>, vector<144x32xf32>, vector<8x32xf32> -> vector<8x32xf32>
    %10 = arith.addf %4, %9 : vector<8x32xf32>
    %c0_11 = arith.constant 0 : index
    %c0_12 = arith.constant 0 : index
    %11 = vector.load %arg3[%c0_11, %c0_12] : memref<1x32xf32, #tpu.memory_space<vmem>>, vector<1x32xf32>
    %12 = vector.broadcast %11 : vector<1x32xf32> to vector<8x32xf32>
    %13 = arith.mulf %10, %12 : vector<8x32xf32>
    %c0_13 = arith.constant 0 : index
    %c0_14 = arith.constant 0 : index
    %14 = vector.load %arg4[%c0_13, %c0_14] : memref<1x32xf32, #tpu.memory_space<vmem>>, vector<1x32xf32>
    %15 = vector.broadcast %14 : vector<1x32xf32> to vector<8x32xf32>
    %16 = arith.addf %13, %15 : vector<8x32xf32>
    %cst_15 = arith.constant 0.000000e+00 : f32
    %17 = vector.broadcast %cst_15 : f32 to vector<8x32xf32>
    %18 = arith.maximumf %16, %17 : vector<8x32xf32>
    %cst_16 = arith.constant 0.000000e+00 : f32
    %19 = vector.broadcast %cst_16 : f32 to vector<18x32xf32>
    %c0_17 = arith.constant 0 : index
    %c0_18 = arith.constant 0 : index
    %20 = vector.load %arg13[%c0_17, %c0_18] : memref<18x32xf32, #tpu.memory_space<vmem>>, vector<18x32xf32>
    tpu.vector_store %arg13[%c0_17, %c0_18], %19 {strides = array<i32>} : memref<18x32xf32, #tpu.memory_space<vmem>>, vector<18x32xf32>,
    %c5 = arith.constant 5 : index
    %c0_19 = arith.constant 0 : index
    %21 = vector.load %arg13[%c5, %c0_19] : memref<18x32xf32, #tpu.memory_space<vmem>>, vector<8x32xf32>
    tpu.vector_store %arg13[%c5, %c0_19], %18 {strides = array<i32>} : memref<18x32xf32, #tpu.memory_space<vmem>>, vector<8x32xf32>,
    %cst_20 = arith.constant 0.000000e+00 : f32
    %22 = vector.broadcast %cst_20 : f32 to vector<8x32xf32>
    %c4 = arith.constant 4 : index
    %c0_21 = arith.constant 0 : index
    %23 = vector.load %arg13[%c4, %c0_21] : memref<18x32xf32, #tpu.memory_space<vmem>>, vector<8x32xf32>
    %c0_22 = arith.constant 0 : index
    %c0_23 = arith.constant 0 : index
    %c0_24 = arith.constant 0 : index
    %c0_25 = arith.constant 0 : index
    %24 = vector.load %arg5[%c0_22, %c0_23, %c0_24, %c0_25] : memref<9x3x32x32xf32, #tpu.memory_space<vmem>>, vector<1x1x32x32xf32>
    %25 = vector.shape_cast %24 : vector<1x1x32x32xf32> to vector<32x32xf32>
    %cst_26 = arith.constant dense<0.000000e+00> : vector<8x32xf32>
    %26 = tpu.matmul %23, %25, %cst_26 {dimension_numbers = #tpu.dot_dimension_numbers<[1], [0], [0], [1], [0, 0, 1, 1], [], []>} : vector<8x32xf32>, vector<32x32xf32>, vector<8x32xf32> -> vector<8x32xf32>
    %27 = arith.addf %22, %26 : vector<8x32xf32>
    %c5_27 = arith.constant 5 : index
    %c0_28 = arith.constant 0 : index
    %28 = vector.load %arg13[%c5_27, %c0_28] : memref<18x32xf32, #tpu.memory_space<vmem>>, vector<8x32xf32>
    %c0_29 = arith.constant 0 : index
    %c1_30 = arith.constant 1 : index
    %c0_31 = arith.constant 0 : index
    %c0_32 = arith.constant 0 : index
    %29 = vector.load %arg5[%c0_29, %c1_30, %c0_31, %c0_32] : memref<9x3x32x32xf32, #tpu.memory_space<vmem>>, vector<1x1x32x32xf32>
    %30 = vector.shape_cast %29 : vector<1x1x32x32xf32> to vector<32x32xf32>
    %cst_33 = arith.constant dense<0.000000e+00> : vector<8x32xf32>
    %31 = tpu.matmul %28, %30, %cst_33 {dimension_numbers = #tpu.dot_dimension_numbers<[1], [0], [0], [1], [0, 0, 1, 1], [], []>} : vector<8x32xf32>, vector<32x32xf32>, vector<8x32xf32> -> vector<8x32xf32>
    %32 = arith.addf %27, %31 : vector<8x32xf32>
    %c6 = arith.constant 6 : index
    %c0_34 = arith.constant 0 : index
    %33 = vector.load %arg13[%c6, %c0_34] : memref<18x32xf32, #tpu.memory_space<vmem>>, vector<8x32xf32>
    %c0_35 = arith.constant 0 : index
    %c2 = arith.constant 2 : index
    %c0_36 = arith.constant 0 : index
    %c0_37 = arith.constant 0 : index
    %34 = vector.load %arg5[%c0_35, %c2, %c0_36, %c0_37] : memref<9x3x32x32xf32, #tpu.memory_space<vmem>>, vector<1x1x32x32xf32>
    %35 = vector.shape_cast %34 : vector<1x1x32x32xf32> to vector<32x32xf32>
    %cst_38 = arith.constant dense<0.000000e+00> : vector<8x32xf32>
    %36 = tpu.matmul %33, %35, %cst_38 {dimension_numbers = #tpu.dot_dimension_numbers<[1], [0], [0], [1], [0, 0, 1, 1], [], []>} : vector<8x32xf32>, vector<32x32xf32>, vector<8x32xf32> -> vector<8x32xf32>
    %37 = arith.addf %32, %36 : vector<8x32xf32>
    %c0_39 = arith.constant 0 : index
    %c0_40 = arith.constant 0 : index
    %c0_41 = arith.constant 0 : index
    %38 = vector.load %arg6[%c0_39, %c0_40, %c0_41] : memref<9x1x32xf32, #tpu.memory_space<vmem>>, vector<1x1x32xf32>
    %39 = vector.shape_cast %38 : vector<1x1x32xf32> to vector<1x32xf32>
    %40 = vector.broadcast %39 : vector<1x32xf32> to vector<8x32xf32>
    %41 = arith.addf %37, %40 : vector<8x32xf32>
    %c5_42 = arith.constant 5 : index
    %c0_43 = arith.constant 0 : index
    %42 = vector.load %arg13[%c5_42, %c0_43] : memref<18x32xf32, #tpu.memory_space<vmem>>, vector<8x32xf32>
    tpu.vector_store %arg13[%c5_42, %c0_43], %41 {strides = array<i32>} : memref<18x32xf32, #tpu.memory_space<vmem>>, vector<8x32xf32>,
    %cst_44 = arith.constant 0.000000e+00 : f32
    %43 = vector.broadcast %cst_44 : f32 to vector<8x32xf32>
    %c2_45 = arith.constant 2 : index
    %c0_46 = arith.constant 0 : index
    %44 = vector.load %arg13[%c2_45, %c0_46] : memref<18x32xf32, #tpu.memory_space<vmem>>, vector<8x32xf32>
    %c1_47 = arith.constant 1 : index
    %c0_48 = arith.constant 0 : index
    %c0_49 = arith.constant 0 : index
    %c0_50 = arith.constant 0 : index
    %45 = vector.load %arg5[%c1_47, %c0_48, %c0_49, %c0_50] : memref<9x3x32x32xf32, #tpu.memory_space<vmem>>, vector<1x1x32x32xf32>
    %46 = vector.shape_cast %45 : vector<1x1x32x32xf32> to vector<32x32xf32>
    %cst_51 = arith.constant dense<0.000000e+00> : vector<8x32xf32>
    %47 = tpu.matmul %44, %46, %cst_51 {dimension_numbers = #tpu.dot_dimension_numbers<[1], [0], [0], [1], [0, 0, 1, 1], [], []>} : vector<8x32xf32>, vector<32x32xf32>, vector<8x32xf32> -> vector<8x32xf32>
    %48 = arith.addf %43, %47 : vector<8x32xf32>
    %c5_52 = arith.constant 5 : index
    %c0_53 = arith.constant 0 : index
    %49 = vector.load %arg13[%c5_52, %c0_53] : memref<18x32xf32, #tpu.memory_space<vmem>>, vector<8x32xf32>
    %c1_54 = arith.constant 1 : index
    %c1_55 = arith.constant 1 : index
    %c0_56 = arith.constant 0 : index
    %c0_57 = arith.constant 0 : index
    %50 = vector.load %arg5[%c1_54, %c1_55, %c0_56, %c0_57] : memref<9x3x32x32xf32, #tpu.memory_space<vmem>>, vector<1x1x32x32xf32>
    %51 = vector.shape_cast %50 : vector<1x1x32x32xf32> to vector<32x32xf32>
    %cst_58 = arith.constant dense<0.000000e+00> : vector<8x32xf32>
    %52 = tpu.matmul %49, %51, %cst_58 {dimension_numbers = #tpu.dot_dimension_numbers<[1], [0], [0], [1], [0, 0, 1, 1], [], []>} : vector<8x32xf32>, vector<32x32xf32>, vector<8x32xf32> -> vector<8x32xf32>
    %53 = arith.addf %48, %52 : vector<8x32xf32>
    %c8 = arith.constant 8 : index
    %c0_59 = arith.constant 0 : index
    %54 = vector.load %arg13[%c8, %c0_59] : memref<18x32xf32, #tpu.memory_space<vmem>>, vector<8x32xf32>
    %c1_60 = arith.constant 1 : index
    %c2_61 = arith.constant 2 : index
    %c0_62 = arith.constant 0 : index
    %c0_63 = arith.constant 0 : index
    %55 = vector.load %arg5[%c1_60, %c2_61, %c0_62, %c0_63] : memref<9x3x32x32xf32, #tpu.memory_space<vmem>>, vector<1x1x32x32xf32>
    %56 = vector.shape_cast %55 : vector<1x1x32x32xf32> to vector<32x32xf32>
    %cst_64 = arith.constant dense<0.000000e+00> : vector<8x32xf32>
    %57 = tpu.matmul %54, %56, %cst_64 {dimension_numbers = #tpu.dot_dimension_numbers<[1], [0], [0], [1], [0, 0, 1, 1], [], []>} : vector<8x32xf32>, vector<32x32xf32>, vector<8x32xf32> -> vector<8x32xf32>
    %58 = arith.addf %53, %57 : vector<8x32xf32>
    %c1_65 = arith.constant 1 : index
    %c0_66 = arith.constant 0 : index
    %c0_67 = arith.constant 0 : index
    %59 = vector.load %arg6[%c1_65, %c0_66, %c0_67] : memref<9x1x32xf32, #tpu.memory_space<vmem>>, vector<1x1x32xf32>
    %60 = vector.shape_cast %59 : vector<1x1x32xf32> to vector<1x32xf32>
    %61 = vector.broadcast %60 : vector<1x32xf32> to vector<8x32xf32>
    %62 = arith.addf %58, %61 : vector<8x32xf32>
    %c5_68 = arith.constant 5 : index
    %c0_69 = arith.constant 0 : index
    %63 = vector.load %arg13[%c5_68, %c0_69] : memref<18x32xf32, #tpu.memory_space<vmem>>, vector<8x32xf32>
    tpu.vector_store %arg13[%c5_68, %c0_69], %62 {strides = array<i32>} : memref<18x32xf32, #tpu.memory_space<vmem>>, vector<8x32xf32>,
    %cst_70 = arith.constant 0.000000e+00 : f32
    %64 = vector.broadcast %cst_70 : f32 to vector<8x32xf32>
    %c0_71 = arith.constant 0 : index
    %c0_72 = arith.constant 0 : index
    %65 = vector.load %arg13[%c0_71, %c0_72] : memref<18x32xf32, #tpu.memory_space<vmem>>, vector<8x32xf32>
    %c2_73 = arith.constant 2 : index
    %c0_74 = arith.constant 0 : index
    %c0_75 = arith.constant 0 : index
    %c0_76 = arith.constant 0 : index
    %66 = vector.load %arg5[%c2_73, %c0_74, %c0_75, %c0_76] : memref<9x3x32x32xf32, #tpu.memory_space<vmem>>, vector<1x1x32x32xf32>
    %67 = vector.shape_cast %66 : vector<1x1x32x32xf32> to vector<32x32xf32>
    %cst_77 = arith.constant dense<0.000000e+00> : vector<8x32xf32>
    %68 = tpu.matmul %65, %67, %cst_77 {dimension_numbers = #tpu.dot_dimension_numbers<[1], [0], [0], [1], [0, 0, 1, 1], [], []>} : vector<8x32xf32>, vector<32x32xf32>, vector<8x32xf32> -> vector<8x32xf32>
    %69 = arith.addf %64, %68 : vector<8x32xf32>
    %c5_78 = arith.constant 5 : index
    %c0_79 = arith.constant 0 : index
    %70 = vector.load %arg13[%c5_78, %c0_79] : memref<18x32xf32, #tpu.memory_space<vmem>>, vector<8x32xf32>
    %c2_80 = arith.constant 2 : index
    %c1_81 = arith.constant 1 : index
    %c0_82 = arith.constant 0 : index
    %c0_83 = arith.constant 0 : index
    %71 = vector.load %arg5[%c2_80, %c1_81, %c0_82, %c0_83] : memref<9x3x32x32xf32, #tpu.memory_space<vmem>>, vector<1x1x32x32xf32>
    %72 = vector.shape_cast %71 : vector<1x1x32x32xf32> to vector<32x32xf32>
    %cst_84 = arith.constant dense<0.000000e+00> : vector<8x32xf32>
    %73 = tpu.matmul %70, %72, %cst_84 {dimension_numbers = #tpu.dot_dimension_numbers<[1], [0], [0], [1], [0, 0, 1, 1], [], []>} : vector<8x32xf32>, vector<32x32xf32>, vector<8x32xf32> -> vector<8x32xf32>
    %74 = arith.addf %69, %73 : vector<8x32xf32>
    %c10 = arith.constant 10 : index
    %c0_85 = arith.constant 0 : index
    %75 = vector.load %arg13[%c10, %c0_85] : memref<18x32xf32, #tpu.memory_space<vmem>>, vector<8x32xf32>
    %c2_86 = arith.constant 2 : index
    %c2_87 = arith.constant 2 : index
    %c0_88 = arith.constant 0 : index
    %c0_89 = arith.constant 0 : index
    %76 = vector.load %arg5[%c2_86, %c2_87, %c0_88, %c0_89] : memref<9x3x32x32xf32, #tpu.memory_space<vmem>>, vector<1x1x32x32xf32>
    %77 = vector.shape_cast %76 : vector<1x1x32x32xf32> to vector<32x32xf32>
    %cst_90 = arith.constant dense<0.000000e+00> : vector<8x32xf32>
    %78 = tpu.matmul %75, %77, %cst_90 {dimension_numbers = #tpu.dot_dimension_numbers<[1], [0], [0], [1], [0, 0, 1, 1], [], []>} : vector<8x32xf32>, vector<32x32xf32>, vector<8x32xf32> -> vector<8x32xf32>
    %79 = arith.addf %74, %78 : vector<8x32xf32>
    %c2_91 = arith.constant 2 : index
    %c0_92 = arith.constant 0 : index
    %c0_93 = arith.constant 0 : index
    %80 = vector.load %arg6[%c2_91, %c0_92, %c0_93] : memref<9x1x32xf32, #tpu.memory_space<vmem>>, vector<1x1x32xf32>
    %81 = vector.shape_cast %80 : vector<1x1x32xf32> to vector<1x32xf32>
    %82 = vector.broadcast %81 : vector<1x32xf32> to vector<8x32xf32>
    %83 = arith.addf %79, %82 : vector<8x32xf32>
    %84 = arith.addf %18, %83 : vector<8x32xf32>
    %c5_94 = arith.constant 5 : index
    %c0_95 = arith.constant 0 : index
    %85 = vector.load %arg13[%c5_94, %c0_95] : memref<18x32xf32, #tpu.memory_space<vmem>>, vector<8x32xf32>
    tpu.vector_store %arg13[%c5_94, %c0_95], %84 {strides = array<i32>} : memref<18x32xf32, #tpu.memory_space<vmem>>, vector<8x32xf32>,
    %cst_96 = arith.constant 0.000000e+00 : f32
    %86 = vector.broadcast %cst_96 : f32 to vector<8x32xf32>
    %c4_97 = arith.constant 4 : index
    %c0_98 = arith.constant 0 : index
    %87 = vector.load %arg13[%c4_97, %c0_98] : memref<18x32xf32, #tpu.memory_space<vmem>>, vector<8x32xf32>
    %c3 = arith.constant 3 : index
    %c0_99 = arith.constant 0 : index
    %c0_100 = arith.constant 0 : index
    %c0_101 = arith.constant 0 : index
    %88 = vector.load %arg5[%c3, %c0_99, %c0_100, %c0_101] : memref<9x3x32x32xf32, #tpu.memory_space<vmem>>, vector<1x1x32x32xf32>
    %89 = vector.shape_cast %88 : vector<1x1x32x32xf32> to vector<32x32xf32>
    %cst_102 = arith.constant dense<0.000000e+00> : vector<8x32xf32>
    %90 = tpu.matmul %87, %89, %cst_102 {dimension_numbers = #tpu.dot_dimension_numbers<[1], [0], [0], [1], [0, 0, 1, 1], [], []>} : vector<8x32xf32>, vector<32x32xf32>, vector<8x32xf32> -> vector<8x32xf32>
    %91 = arith.addf %86, %90 : vector<8x32xf32>
    %c5_103 = arith.constant 5 : index
    %c0_104 = arith.constant 0 : index
    %92 = vector.load %arg13[%c5_103, %c0_104] : memref<18x32xf32, #tpu.memory_space<vmem>>, vector<8x32xf32>
    %c3_105 = arith.constant 3 : index
    %c1_106 = arith.constant 1 : index
    %c0_107 = arith.constant 0 : index
    %c0_108 = arith.constant 0 : index
    %93 = vector.load %arg5[%c3_105, %c1_106, %c0_107, %c0_108] : memref<9x3x32x32xf32, #tpu.memory_space<vmem>>, vector<1x1x32x32xf32>
    %94 = vector.shape_cast %93 : vector<1x1x32x32xf32> to vector<32x32xf32>
    %cst_109 = arith.constant dense<0.000000e+00> : vector<8x32xf32>
    %95 = tpu.matmul %92, %94, %cst_109 {dimension_numbers = #tpu.dot_dimension_numbers<[1], [0], [0], [1], [0, 0, 1, 1], [], []>} : vector<8x32xf32>, vector<32x32xf32>, vector<8x32xf32> -> vector<8x32xf32>
    %96 = arith.addf %91, %95 : vector<8x32xf32>
    %c6_110 = arith.constant 6 : index
    %c0_111 = arith.constant 0 : index
    %97 = vector.load %arg13[%c6_110, %c0_111] : memref<18x32xf32, #tpu.memory_space<vmem>>, vector<8x32xf32>
    %c3_112 = arith.constant 3 : index
    %c2_113 = arith.constant 2 : index
    %c0_114 = arith.constant 0 : index
    %c0_115 = arith.constant 0 : index
    %98 = vector.load %arg5[%c3_112, %c2_113, %c0_114, %c0_115] : memref<9x3x32x32xf32, #tpu.memory_space<vmem>>, vector<1x1x32x32xf32>
    %99 = vector.shape_cast %98 : vector<1x1x32x32xf32> to vector<32x32xf32>
    %cst_116 = arith.constant dense<0.000000e+00> : vector<8x32xf32>
    %100 = tpu.matmul %97, %99, %cst_116 {dimension_numbers = #tpu.dot_dimension_numbers<[1], [0], [0], [1], [0, 0, 1, 1], [], []>} : vector<8x32xf32>, vector<32x32xf32>, vector<8x32xf32> -> vector<8x32xf32>
    %101 = arith.addf %96, %100 : vector<8x32xf32>
    %c3_117 = arith.constant 3 : index
    %c0_118 = arith.constant 0 : index
    %c0_119 = arith.constant 0 : index
    %102 = vector.load %arg6[%c3_117, %c0_118, %c0_119] : memref<9x1x32xf32, #tpu.memory_space<vmem>>, vector<1x1x32xf32>
    %103 = vector.shape_cast %102 : vector<1x1x32xf32> to vector<1x32xf32>
    %104 = vector.broadcast %103 : vector<1x32xf32> to vector<8x32xf32>
    %105 = arith.addf %101, %104 : vector<8x32xf32>
    %c5_120 = arith.constant 5 : index
    %c0_121 = arith.constant 0 : index
    %106 = vector.load %arg13[%c5_120, %c0_121] : memref<18x32xf32, #tpu.memory_space<vmem>>, vector<8x32xf32>
    tpu.vector_store %arg13[%c5_120, %c0_121], %105 {strides = array<i32>} : memref<18x32xf32, #tpu.memory_space<vmem>>, vector<8x32xf32>,
    %cst_122 = arith.constant 0.000000e+00 : f32
    %107 = vector.broadcast %cst_122 : f32 to vector<8x32xf32>
    %c2_123 = arith.constant 2 : index
    %c0_124 = arith.constant 0 : index
    %108 = vector.load %arg13[%c2_123, %c0_124] : memref<18x32xf32, #tpu.memory_space<vmem>>, vector<8x32xf32>
    %c4_125 = arith.constant 4 : index
    %c0_126 = arith.constant 0 : index
    %c0_127 = arith.constant 0 : index
    %c0_128 = arith.constant 0 : index
    %109 = vector.load %arg5[%c4_125, %c0_126, %c0_127, %c0_128] : memref<9x3x32x32xf32, #tpu.memory_space<vmem>>, vector<1x1x32x32xf32>
    %110 = vector.shape_cast %109 : vector<1x1x32x32xf32> to vector<32x32xf32>
    %cst_129 = arith.constant dense<0.000000e+00> : vector<8x32xf32>
    %111 = tpu.matmul %108, %110, %cst_129 {dimension_numbers = #tpu.dot_dimension_numbers<[1], [0], [0], [1], [0, 0, 1, 1], [], []>} : vector<8x32xf32>, vector<32x32xf32>, vector<8x32xf32> -> vector<8x32xf32>
    %112 = arith.addf %107, %111 : vector<8x32xf32>
    %c5_130 = arith.constant 5 : index
    %c0_131 = arith.constant 0 : index
    %113 = vector.load %arg13[%c5_130, %c0_131] : memref<18x32xf32, #tpu.memory_space<vmem>>, vector<8x32xf32>
    %c4_132 = arith.constant 4 : index
    %c1_133 = arith.constant 1 : index
    %c0_134 = arith.constant 0 : index
    %c0_135 = arith.constant 0 : index
    %114 = vector.load %arg5[%c4_132, %c1_133, %c0_134, %c0_135] : memref<9x3x32x32xf32, #tpu.memory_space<vmem>>, vector<1x1x32x32xf32>
    %115 = vector.shape_cast %114 : vector<1x1x32x32xf32> to vector<32x32xf32>
    %cst_136 = arith.constant dense<0.000000e+00> : vector<8x32xf32>
    %116 = tpu.matmul %113, %115, %cst_136 {dimension_numbers = #tpu.dot_dimension_numbers<[1], [0], [0], [1], [0, 0, 1, 1], [], []>} : vector<8x32xf32>, vector<32x32xf32>, vector<8x32xf32> -> vector<8x32xf32>
    %117 = arith.addf %112, %116 : vector<8x32xf32>
    %c8_137 = arith.constant 8 : index
    %c0_138 = arith.constant 0 : index
    %118 = vector.load %arg13[%c8_137, %c0_138] : memref<18x32xf32, #tpu.memory_space<vmem>>, vector<8x32xf32>
    %c4_139 = arith.constant 4 : index
    %c2_140 = arith.constant 2 : index
    %c0_141 = arith.constant 0 : index
    %c0_142 = arith.constant 0 : index
    %119 = vector.load %arg5[%c4_139, %c2_140, %c0_141, %c0_142] : memref<9x3x32x32xf32, #tpu.memory_space<vmem>>, vector<1x1x32x32xf32>
    %120 = vector.shape_cast %119 : vector<1x1x32x32xf32> to vector<32x32xf32>
    %cst_143 = arith.constant dense<0.000000e+00> : vector<8x32xf32>
    %121 = tpu.matmul %118, %120, %cst_143 {dimension_numbers = #tpu.dot_dimension_numbers<[1], [0], [0], [1], [0, 0, 1, 1], [], []>} : vector<8x32xf32>, vector<32x32xf32>, vector<8x32xf32> -> vector<8x32xf32>
    %122 = arith.addf %117, %121 : vector<8x32xf32>
    %c4_144 = arith.constant 4 : index
    %c0_145 = arith.constant 0 : index
    %c0_146 = arith.constant 0 : index
    %123 = vector.load %arg6[%c4_144, %c0_145, %c0_146] : memref<9x1x32xf32, #tpu.memory_space<vmem>>, vector<1x1x32xf32>
    %124 = vector.shape_cast %123 : vector<1x1x32xf32> to vector<1x32xf32>
    %125 = vector.broadcast %124 : vector<1x32xf32> to vector<8x32xf32>
    %126 = arith.addf %122, %125 : vector<8x32xf32>
    %c5_147 = arith.constant 5 : index
    %c0_148 = arith.constant 0 : index
    %127 = vector.load %arg13[%c5_147, %c0_148] : memref<18x32xf32, #tpu.memory_space<vmem>>, vector<8x32xf32>
    tpu.vector_store %arg13[%c5_147, %c0_148], %126 {strides = array<i32>} : memref<18x32xf32, #tpu.memory_space<vmem>>, vector<8x32xf32>,
    %cst_149 = arith.constant 0.000000e+00 : f32
    %128 = vector.broadcast %cst_149 : f32 to vector<8x32xf32>
    %c0_150 = arith.constant 0 : index
    %c0_151 = arith.constant 0 : index
    %129 = vector.load %arg13[%c0_150, %c0_151] : memref<18x32xf32, #tpu.memory_space<vmem>>, vector<8x32xf32>
    %c5_152 = arith.constant 5 : index
    %c0_153 = arith.constant 0 : index
    %c0_154 = arith.constant 0 : index
    %c0_155 = arith.constant 0 : index
    %130 = vector.load %arg5[%c5_152, %c0_153, %c0_154, %c0_155] : memref<9x3x32x32xf32, #tpu.memory_space<vmem>>, vector<1x1x32x32xf32>
    %131 = vector.shape_cast %130 : vector<1x1x32x32xf32> to vector<32x32xf32>
    %cst_156 = arith.constant dense<0.000000e+00> : vector<8x32xf32>
    %132 = tpu.matmul %129, %131, %cst_156 {dimension_numbers = #tpu.dot_dimension_numbers<[1], [0], [0], [1], [0, 0, 1, 1], [], []>} : vector<8x32xf32>, vector<32x32xf32>, vector<8x32xf32> -> vector<8x32xf32>
    %133 = arith.addf %128, %132 : vector<8x32xf32>
    %c5_157 = arith.constant 5 : index
    %c0_158 = arith.constant 0 : index
    %134 = vector.load %arg13[%c5_157, %c0_158] : memref<18x32xf32, #tpu.memory_space<vmem>>, vector<8x32xf32>
    %c5_159 = arith.constant 5 : index
    %c1_160 = arith.constant 1 : index
    %c0_161 = arith.constant 0 : index
    %c0_162 = arith.constant 0 : index
    %135 = vector.load %arg5[%c5_159, %c1_160, %c0_161, %c0_162] : memref<9x3x32x32xf32, #tpu.memory_space<vmem>>, vector<1x1x32x32xf32>
    %136 = vector.shape_cast %135 : vector<1x1x32x32xf32> to vector<32x32xf32>
    %cst_163 = arith.constant dense<0.000000e+00> : vector<8x32xf32>
    %137 = tpu.matmul %134, %136, %cst_163 {dimension_numbers = #tpu.dot_dimension_numbers<[1], [0], [0], [1], [0, 0, 1, 1], [], []>} : vector<8x32xf32>, vector<32x32xf32>, vector<8x32xf32> -> vector<8x32xf32>
    %138 = arith.addf %133, %137 : vector<8x32xf32>
    %c10_164 = arith.constant 10 : index
    %c0_165 = arith.constant 0 : index
    %139 = vector.load %arg13[%c10_164, %c0_165] : memref<18x32xf32, #tpu.memory_space<vmem>>, vector<8x32xf32>
    %c5_166 = arith.constant 5 : index
    %c2_167 = arith.constant 2 : index
    %c0_168 = arith.constant 0 : index
    %c0_169 = arith.constant 0 : index
    %140 = vector.load %arg5[%c5_166, %c2_167, %c0_168, %c0_169] : memref<9x3x32x32xf32, #tpu.memory_space<vmem>>, vector<1x1x32x32xf32>
    %141 = vector.shape_cast %140 : vector<1x1x32x32xf32> to vector<32x32xf32>
    %cst_170 = arith.constant dense<0.000000e+00> : vector<8x32xf32>
    %142 = tpu.matmul %139, %141, %cst_170 {dimension_numbers = #tpu.dot_dimension_numbers<[1], [0], [0], [1], [0, 0, 1, 1], [], []>} : vector<8x32xf32>, vector<32x32xf32>, vector<8x32xf32> -> vector<8x32xf32>
    %143 = arith.addf %138, %142 : vector<8x32xf32>
    %c5_171 = arith.constant 5 : index
    %c0_172 = arith.constant 0 : index
    %c0_173 = arith.constant 0 : index
    %144 = vector.load %arg6[%c5_171, %c0_172, %c0_173] : memref<9x1x32xf32, #tpu.memory_space<vmem>>, vector<1x1x32xf32>
    %145 = vector.shape_cast %144 : vector<1x1x32xf32> to vector<1x32xf32>
    %146 = vector.broadcast %145 : vector<1x32xf32> to vector<8x32xf32>
    %147 = arith.addf %143, %146 : vector<8x32xf32>
    %148 = arith.addf %18, %147 : vector<8x32xf32>
    %c5_174 = arith.constant 5 : index
    %c0_175 = arith.constant 0 : index
    %149 = vector.load %arg13[%c5_174, %c0_175] : memref<18x32xf32, #tpu.memory_space<vmem>>, vector<8x32xf32>
    tpu.vector_store %arg13[%c5_174, %c0_175], %148 {strides = array<i32>} : memref<18x32xf32, #tpu.memory_space<vmem>>, vector<8x32xf32>,
    %cst_176 = arith.constant 0.000000e+00 : f32
    %150 = vector.broadcast %cst_176 : f32 to vector<8x32xf32>
    %c4_177 = arith.constant 4 : index
    %c0_178 = arith.constant 0 : index
    %151 = vector.load %arg13[%c4_177, %c0_178] : memref<18x32xf32, #tpu.memory_space<vmem>>, vector<8x32xf32>
    %c6_179 = arith.constant 6 : index
    %c0_180 = arith.constant 0 : index
    %c0_181 = arith.constant 0 : index
    %c0_182 = arith.constant 0 : index
    %152 = vector.load %arg5[%c6_179, %c0_180, %c0_181, %c0_182] : memref<9x3x32x32xf32, #tpu.memory_space<vmem>>, vector<1x1x32x32xf32>
    %153 = vector.shape_cast %152 : vector<1x1x32x32xf32> to vector<32x32xf32>
    %cst_183 = arith.constant dense<0.000000e+00> : vector<8x32xf32>
    %154 = tpu.matmul %151, %153, %cst_183 {dimension_numbers = #tpu.dot_dimension_numbers<[1], [0], [0], [1], [0, 0, 1, 1], [], []>} : vector<8x32xf32>, vector<32x32xf32>, vector<8x32xf32> -> vector<8x32xf32>
    %155 = arith.addf %150, %154 : vector<8x32xf32>
    %c5_184 = arith.constant 5 : index
    %c0_185 = arith.constant 0 : index
    %156 = vector.load %arg13[%c5_184, %c0_185] : memref<18x32xf32, #tpu.memory_space<vmem>>, vector<8x32xf32>
    %c6_186 = arith.constant 6 : index
    %c1_187 = arith.constant 1 : index
    %c0_188 = arith.constant 0 : index
    %c0_189 = arith.constant 0 : index
    %157 = vector.load %arg5[%c6_186, %c1_187, %c0_188, %c0_189] : memref<9x3x32x32xf32, #tpu.memory_space<vmem>>, vector<1x1x32x32xf32>
    %158 = vector.shape_cast %157 : vector<1x1x32x32xf32> to vector<32x32xf32>
    %cst_190 = arith.constant dense<0.000000e+00> : vector<8x32xf32>
    %159 = tpu.matmul %156, %158, %cst_190 {dimension_numbers = #tpu.dot_dimension_numbers<[1], [0], [0], [1], [0, 0, 1, 1], [], []>} : vector<8x32xf32>, vector<32x32xf32>, vector<8x32xf32> -> vector<8x32xf32>
    %160 = arith.addf %155, %159 : vector<8x32xf32>
    %c6_191 = arith.constant 6 : index
    %c0_192 = arith.constant 0 : index
    %161 = vector.load %arg13[%c6_191, %c0_192] : memref<18x32xf32, #tpu.memory_space<vmem>>, vector<8x32xf32>
    %c6_193 = arith.constant 6 : index
    %c2_194 = arith.constant 2 : index
    %c0_195 = arith.constant 0 : index
    %c0_196 = arith.constant 0 : index
    %162 = vector.load %arg5[%c6_193, %c2_194, %c0_195, %c0_196] : memref<9x3x32x32xf32, #tpu.memory_space<vmem>>, vector<1x1x32x32xf32>
    %163 = vector.shape_cast %162 : vector<1x1x32x32xf32> to vector<32x32xf32>
    %cst_197 = arith.constant dense<0.000000e+00> : vector<8x32xf32>
    %164 = tpu.matmul %161, %163, %cst_197 {dimension_numbers = #tpu.dot_dimension_numbers<[1], [0], [0], [1], [0, 0, 1, 1], [], []>} : vector<8x32xf32>, vector<32x32xf32>, vector<8x32xf32> -> vector<8x32xf32>
    %165 = arith.addf %160, %164 : vector<8x32xf32>
    %c6_198 = arith.constant 6 : index
    %c0_199 = arith.constant 0 : index
    %c0_200 = arith.constant 0 : index
    %166 = vector.load %arg6[%c6_198, %c0_199, %c0_200] : memref<9x1x32xf32, #tpu.memory_space<vmem>>, vector<1x1x32xf32>
    %167 = vector.shape_cast %166 : vector<1x1x32xf32> to vector<1x32xf32>
    %168 = vector.broadcast %167 : vector<1x32xf32> to vector<8x32xf32>
    %169 = arith.addf %165, %168 : vector<8x32xf32>
    %c5_201 = arith.constant 5 : index
    %c0_202 = arith.constant 0 : index
    %170 = vector.load %arg13[%c5_201, %c0_202] : memref<18x32xf32, #tpu.memory_space<vmem>>, vector<8x32xf32>
    tpu.vector_store %arg13[%c5_201, %c0_202], %169 {strides = array<i32>} : memref<18x32xf32, #tpu.memory_space<vmem>>, vector<8x32xf32>,
    %cst_203 = arith.constant 0.000000e+00 : f32
    %171 = vector.broadcast %cst_203 : f32 to vector<8x32xf32>
    %c2_204 = arith.constant 2 : index
    %c0_205 = arith.constant 0 : index
    %172 = vector.load %arg13[%c2_204, %c0_205] : memref<18x32xf32, #tpu.memory_space<vmem>>, vector<8x32xf32>
    %c7 = arith.constant 7 : index
    %c0_206 = arith.constant 0 : index
    %c0_207 = arith.constant 0 : index
    %c0_208 = arith.constant 0 : index
    %173 = vector.load %arg5[%c7, %c0_206, %c0_207, %c0_208] : memref<9x3x32x32xf32, #tpu.memory_space<vmem>>, vector<1x1x32x32xf32>
    %174 = vector.shape_cast %173 : vector<1x1x32x32xf32> to vector<32x32xf32>
    %cst_209 = arith.constant dense<0.000000e+00> : vector<8x32xf32>
    %175 = tpu.matmul %172, %174, %cst_209 {dimension_numbers = #tpu.dot_dimension_numbers<[1], [0], [0], [1], [0, 0, 1, 1], [], []>} : vector<8x32xf32>, vector<32x32xf32>, vector<8x32xf32> -> vector<8x32xf32>
    %176 = arith.addf %171, %175 : vector<8x32xf32>
    %c5_210 = arith.constant 5 : index
    %c0_211 = arith.constant 0 : index
    %177 = vector.load %arg13[%c5_210, %c0_211] : memref<18x32xf32, #tpu.memory_space<vmem>>, vector<8x32xf32>
    %c7_212 = arith.constant 7 : index
    %c1_213 = arith.constant 1 : index
    %c0_214 = arith.constant 0 : index
    %c0_215 = arith.constant 0 : index
    %178 = vector.load %arg5[%c7_212, %c1_213, %c0_214, %c0_215] : memref<9x3x32x32xf32, #tpu.memory_space<vmem>>, vector<1x1x32x32xf32>
    %179 = vector.shape_cast %178 : vector<1x1x32x32xf32> to vector<32x32xf32>
    %cst_216 = arith.constant dense<0.000000e+00> : vector<8x32xf32>
    %180 = tpu.matmul %177, %179, %cst_216 {dimension_numbers = #tpu.dot_dimension_numbers<[1], [0], [0], [1], [0, 0, 1, 1], [], []>} : vector<8x32xf32>, vector<32x32xf32>, vector<8x32xf32> -> vector<8x32xf32>
    %181 = arith.addf %176, %180 : vector<8x32xf32>
    %c8_217 = arith.constant 8 : index
    %c0_218 = arith.constant 0 : index
    %182 = vector.load %arg13[%c8_217, %c0_218] : memref<18x32xf32, #tpu.memory_space<vmem>>, vector<8x32xf32>
    %c7_219 = arith.constant 7 : index
    %c2_220 = arith.constant 2 : index
    %c0_221 = arith.constant 0 : index
    %c0_222 = arith.constant 0 : index
    %183 = vector.load %arg5[%c7_219, %c2_220, %c0_221, %c0_222] : memref<9x3x32x32xf32, #tpu.memory_space<vmem>>, vector<1x1x32x32xf32>
    %184 = vector.shape_cast %183 : vector<1x1x32x32xf32> to vector<32x32xf32>
    %cst_223 = arith.constant dense<0.000000e+00> : vector<8x32xf32>
    %185 = tpu.matmul %182, %184, %cst_223 {dimension_numbers = #tpu.dot_dimension_numbers<[1], [0], [0], [1], [0, 0, 1, 1], [], []>} : vector<8x32xf32>, vector<32x32xf32>, vector<8x32xf32> -> vector<8x32xf32>
    %186 = arith.addf %181, %185 : vector<8x32xf32>
    %c7_224 = arith.constant 7 : index
    %c0_225 = arith.constant 0 : index
    %c0_226 = arith.constant 0 : index
    %187 = vector.load %arg6[%c7_224, %c0_225, %c0_226] : memref<9x1x32xf32, #tpu.memory_space<vmem>>, vector<1x1x32xf32>
    %188 = vector.shape_cast %187 : vector<1x1x32xf32> to vector<1x32xf32>
    %189 = vector.broadcast %188 : vector<1x32xf32> to vector<8x32xf32>
    %190 = arith.addf %186, %189 : vector<8x32xf32>
    %c5_227 = arith.constant 5 : index
    %c0_228 = arith.constant 0 : index
    %191 = vector.load %arg13[%c5_227, %c0_228] : memref<18x32xf32, #tpu.memory_space<vmem>>, vector<8x32xf32>
    tpu.vector_store %arg13[%c5_227, %c0_228], %190 {strides = array<i32>} : memref<18x32xf32, #tpu.memory_space<vmem>>, vector<8x32xf32>,
    %cst_229 = arith.constant 0.000000e+00 : f32
    %192 = vector.broadcast %cst_229 : f32 to vector<8x32xf32>
    %c0_230 = arith.constant 0 : index
    %c0_231 = arith.constant 0 : index
    %193 = vector.load %arg13[%c0_230, %c0_231] : memref<18x32xf32, #tpu.memory_space<vmem>>, vector<8x32xf32>
    %c8_232 = arith.constant 8 : index
    %c0_233 = arith.constant 0 : index
    %c0_234 = arith.constant 0 : index
    %c0_235 = arith.constant 0 : index
    %194 = vector.load %arg5[%c8_232, %c0_233, %c0_234, %c0_235] : memref<9x3x32x32xf32, #tpu.memory_space<vmem>>, vector<1x1x32x32xf32>
    %195 = vector.shape_cast %194 : vector<1x1x32x32xf32> to vector<32x32xf32>
    %cst_236 = arith.constant dense<0.000000e+00> : vector<8x32xf32>
    %196 = tpu.matmul %193, %195, %cst_236 {dimension_numbers = #tpu.dot_dimension_numbers<[1], [0], [0], [1], [0, 0, 1, 1], [], []>} : vector<8x32xf32>, vector<32x32xf32>, vector<8x32xf32> -> vector<8x32xf32>
    %197 = arith.addf %192, %196 : vector<8x32xf32>
    %c5_237 = arith.constant 5 : index
    %c0_238 = arith.constant 0 : index
    %198 = vector.load %arg13[%c5_237, %c0_238] : memref<18x32xf32, #tpu.memory_space<vmem>>, vector<8x32xf32>
    %c8_239 = arith.constant 8 : index
    %c1_240 = arith.constant 1 : index
    %c0_241 = arith.constant 0 : index
    %c0_242 = arith.constant 0 : index
    %199 = vector.load %arg5[%c8_239, %c1_240, %c0_241, %c0_242] : memref<9x3x32x32xf32, #tpu.memory_space<vmem>>, vector<1x1x32x32xf32>
    %200 = vector.shape_cast %199 : vector<1x1x32x32xf32> to vector<32x32xf32>
    %cst_243 = arith.constant dense<0.000000e+00> : vector<8x32xf32>
    %201 = tpu.matmul %198, %200, %cst_243 {dimension_numbers = #tpu.dot_dimension_numbers<[1], [0], [0], [1], [0, 0, 1, 1], [], []>} : vector<8x32xf32>, vector<32x32xf32>, vector<8x32xf32> -> vector<8x32xf32>
    %202 = arith.addf %197, %201 : vector<8x32xf32>
    %c10_244 = arith.constant 10 : index
    %c0_245 = arith.constant 0 : index
    %203 = vector.load %arg13[%c10_244, %c0_245] : memref<18x32xf32, #tpu.memory_space<vmem>>, vector<8x32xf32>
    %c8_246 = arith.constant 8 : index
    %c2_247 = arith.constant 2 : index
    %c0_248 = arith.constant 0 : index
    %c0_249 = arith.constant 0 : index
    %204 = vector.load %arg5[%c8_246, %c2_247, %c0_248, %c0_249] : memref<9x3x32x32xf32, #tpu.memory_space<vmem>>, vector<1x1x32x32xf32>
    %205 = vector.shape_cast %204 : vector<1x1x32x32xf32> to vector<32x32xf32>
    %cst_250 = arith.constant dense<0.000000e+00> : vector<8x32xf32>
    %206 = tpu.matmul %203, %205, %cst_250 {dimension_numbers = #tpu.dot_dimension_numbers<[1], [0], [0], [1], [0, 0, 1, 1], [], []>} : vector<8x32xf32>, vector<32x32xf32>, vector<8x32xf32> -> vector<8x32xf32>
    %207 = arith.addf %202, %206 : vector<8x32xf32>
    %c8_251 = arith.constant 8 : index
    %c0_252 = arith.constant 0 : index
    %c0_253 = arith.constant 0 : index
    %208 = vector.load %arg6[%c8_251, %c0_252, %c0_253] : memref<9x1x32xf32, #tpu.memory_space<vmem>>, vector<1x1x32xf32>
    %209 = vector.shape_cast %208 : vector<1x1x32xf32> to vector<1x32xf32>
    %210 = vector.broadcast %209 : vector<1x32xf32> to vector<8x32xf32>
    %211 = arith.addf %207, %210 : vector<8x32xf32>
    %c0_254 = arith.constant 0 : index
    %c0_255 = arith.constant 0 : index
    %c0_256 = arith.constant 0 : index
    %212 = vector.load %arg7[%c0_254, %c0_255, %c0_256] : memref<3x32x32xf32, #tpu.memory_space<vmem>>, vector<1x32x32xf32>
    %213 = vector.shape_cast %212 : vector<1x32x32xf32> to vector<32x32xf32>
    %cst_257 = arith.constant dense<0.000000e+00> : vector<8x32xf32>
    %214 = tpu.matmul %83, %213, %cst_257 {dimension_numbers = #tpu.dot_dimension_numbers<[1], [0], [0], [1], [0, 0, 1, 1], [], []>} : vector<8x32xf32>, vector<32x32xf32>, vector<8x32xf32> -> vector<8x32xf32>
    %c1_258 = arith.constant 1 : index
    %c0_259 = arith.constant 0 : index
    %c0_260 = arith.constant 0 : index
    %215 = vector.load %arg7[%c1_258, %c0_259, %c0_260] : memref<3x32x32xf32, #tpu.memory_space<vmem>>, vector<1x32x32xf32>
    %216 = vector.shape_cast %215 : vector<1x32x32xf32> to vector<32x32xf32>
    %cst_261 = arith.constant dense<0.000000e+00> : vector<8x32xf32>
    %217 = tpu.matmul %147, %216, %cst_261 {dimension_numbers = #tpu.dot_dimension_numbers<[1], [0], [0], [1], [0, 0, 1, 1], [], []>} : vector<8x32xf32>, vector<32x32xf32>, vector<8x32xf32> -> vector<8x32xf32>
    %218 = arith.addf %214, %217 : vector<8x32xf32>
    %c2_262 = arith.constant 2 : index
    %c0_263 = arith.constant 0 : index
    %c0_264 = arith.constant 0 : index
    %219 = vector.load %arg7[%c2_262, %c0_263, %c0_264] : memref<3x32x32xf32, #tpu.memory_space<vmem>>, vector<1x32x32xf32>
    %220 = vector.shape_cast %219 : vector<1x32x32xf32> to vector<32x32xf32>
    %cst_265 = arith.constant dense<0.000000e+00> : vector<8x32xf32>
    %221 = tpu.matmul %211, %220, %cst_265 {dimension_numbers = #tpu.dot_dimension_numbers<[1], [0], [0], [1], [0, 0, 1, 1], [], []>} : vector<8x32xf32>, vector<32x32xf32>, vector<8x32xf32> -> vector<8x32xf32>
    %222 = arith.addf %218, %221 : vector<8x32xf32>
    %c0_266 = arith.constant 0 : index
    %c0_267 = arith.constant 0 : index
    %223 = vector.load %arg8[%c0_266, %c0_267] : memref<1x32xf32, #tpu.memory_space<vmem>>, vector<1x32xf32>
    %224 = vector.broadcast %223 : vector<1x32xf32> to vector<8x32xf32>
    %225 = arith.addf %222, %224 : vector<8x32xf32>
    %226 = arith.addf %18, %225 : vector<8x32xf32>
    %c5_268 = arith.constant 5 : index
    %c0_269 = arith.constant 0 : index
    %227 = vector.load %arg13[%c5_268, %c0_269] : memref<18x32xf32, #tpu.memory_space<vmem>>, vector<8x32xf32>
    tpu.vector_store %arg13[%c5_268, %c0_269], %226 {strides = array<i32>} : memref<18x32xf32, #tpu.memory_space<vmem>>, vector<8x32xf32>,
    %cst_270 = arith.constant 0.000000e+00 : f32
    %228 = vector.broadcast %cst_270 : f32 to vector<8x128xf32>
    %c4_271 = arith.constant 4 : index
    %c0_272 = arith.constant 0 : index
    %229 = vector.load %arg13[%c4_271, %c0_272] : memref<18x32xf32, #tpu.memory_space<vmem>>, vector<8x32xf32>
    %c0_273 = arith.constant 0 : index
    %c0_274 = arith.constant 0 : index
    %c0_275 = arith.constant 0 : index
    %230 = vector.load %arg9[%c0_273, %c0_274, %c0_275] : memref<3x32x128xf32, #tpu.memory_space<vmem>>, vector<1x32x128xf32>
    %231 = vector.shape_cast %230 : vector<1x32x128xf32> to vector<32x128xf32>
    %cst_276 = arith.constant dense<0.000000e+00> : vector<8x128xf32>
    %232 = tpu.matmul %229, %231, %cst_276 {dimension_numbers = #tpu.dot_dimension_numbers<[1], [0], [0], [1], [0, 0, 1, 1], [], []>} : vector<8x32xf32>, vector<32x128xf32>, vector<8x128xf32> -> vector<8x128xf32>
    %233 = arith.addf %228, %232 : vector<8x128xf32>
    %c5_277 = arith.constant 5 : index
    %c0_278 = arith.constant 0 : index
    %234 = vector.load %arg13[%c5_277, %c0_278] : memref<18x32xf32, #tpu.memory_space<vmem>>, vector<8x32xf32>
    %c1_279 = arith.constant 1 : index
    %c0_280 = arith.constant 0 : index
    %c0_281 = arith.constant 0 : index
    %235 = vector.load %arg9[%c1_279, %c0_280, %c0_281] : memref<3x32x128xf32, #tpu.memory_space<vmem>>, vector<1x32x128xf32>
    %236 = vector.shape_cast %235 : vector<1x32x128xf32> to vector<32x128xf32>
    %cst_282 = arith.constant dense<0.000000e+00> : vector<8x128xf32>
    %237 = tpu.matmul %234, %236, %cst_282 {dimension_numbers = #tpu.dot_dimension_numbers<[1], [0], [0], [1], [0, 0, 1, 1], [], []>} : vector<8x32xf32>, vector<32x128xf32>, vector<8x128xf32> -> vector<8x128xf32>
    %238 = arith.addf %233, %237 : vector<8x128xf32>
    %c6_283 = arith.constant 6 : index
    %c0_284 = arith.constant 0 : index
    %239 = vector.load %arg13[%c6_283, %c0_284] : memref<18x32xf32, #tpu.memory_space<vmem>>, vector<8x32xf32>
    %c2_285 = arith.constant 2 : index
    %c0_286 = arith.constant 0 : index
    %c0_287 = arith.constant 0 : index
    %240 = vector.load %arg9[%c2_285, %c0_286, %c0_287] : memref<3x32x128xf32, #tpu.memory_space<vmem>>, vector<1x32x128xf32>
    %241 = vector.shape_cast %240 : vector<1x32x128xf32> to vector<32x128xf32>
    %cst_288 = arith.constant dense<0.000000e+00> : vector<8x128xf32>
    %242 = tpu.matmul %239, %241, %cst_288 {dimension_numbers = #tpu.dot_dimension_numbers<[1], [0], [0], [1], [0, 0, 1, 1], [], []>} : vector<8x32xf32>, vector<32x128xf32>, vector<8x128xf32> -> vector<8x128xf32>
    %243 = arith.addf %238, %242 : vector<8x128xf32>
    %c0_289 = arith.constant 0 : index
    %c0_290 = arith.constant 0 : index
    %244 = vector.load %arg10[%c0_289, %c0_290] : memref<1x128xf32, #tpu.memory_space<vmem>>, vector<1x128xf32>
    %245 = vector.broadcast %244 : vector<1x128xf32> to vector<8x128xf32>
    %246 = arith.mulf %243, %245 : vector<8x128xf32>
    %c0_291 = arith.constant 0 : index
    %c0_292 = arith.constant 0 : index
    %247 = vector.load %arg11[%c0_291, %c0_292] : memref<1x128xf32, #tpu.memory_space<vmem>>, vector<1x128xf32>
    %248 = vector.broadcast %247 : vector<1x128xf32> to vector<8x128xf32>
    %249 = arith.addf %246, %248 : vector<8x128xf32>
    %cst_293 = arith.constant 0.000000e+00 : f32
    %250 = vector.broadcast %cst_293 : f32 to vector<8x128xf32>
    %251 = arith.maximumf %249, %250 : vector<8x128xf32>
    %c0_294 = arith.constant 0 : index
    %c0_295 = arith.constant 0 : index
    %c0_296 = arith.constant 0 : index
    %252 = vector.load %arg12[%c0_294, %c0_295, %c0_296] : memref<1x8x128xf32, #tpu.memory_space<vmem>>, vector<1x8x128xf32>
    %253 = vector.shape_cast %252 : vector<1x8x128xf32> to vector<8x128xf32>
    %254 = vector.shape_cast %251 : vector<8x128xf32> to vector<1x8x128xf32>
    tpu.vector_store %arg12[%c0_294, %c0_295, %c0_296], %254 {strides = array<i32>} : memref<1x8x128xf32, #tpu.memory_space<vmem>>, vector<1x8x128xf32>,
    return
  }
  func.func @transform_0(%arg0: i32) -> (i32, i32, i32) {
    %c0_i32 = arith.constant 0 : i32
    %c0_i32_0 = arith.constant 0 : i32
    %c0_i32_1 = arith.constant 0 : i32
    return %arg0, %c0_i32, %c0_i32_0 : i32, i32, i32
  }
  func.func @transform_1(%arg0: i32) -> (i32, i32, i32) {
    %c0_i32 = arith.constant 0 : i32
    %c0_i32_0 = arith.constant 0 : i32
    %c0_i32_1 = arith.constant 0 : i32
    %c0_i32_2 = arith.constant 0 : i32
    return %c0_i32, %c0_i32_0, %c0_i32_1 : i32, i32, i32
  }
  func.func @transform_2(%arg0: i32) -> (i32, i32) {
    %c0_i32 = arith.constant 0 : i32
    %c0_i32_0 = arith.constant 0 : i32
    %c0_i32_1 = arith.constant 0 : i32
    return %c0_i32, %c0_i32_0 : i32, i32
  }
  func.func @transform_3(%arg0: i32) -> (i32, i32) {
    %c0_i32 = arith.constant 0 : i32
    %c0_i32_0 = arith.constant 0 : i32
    %c0_i32_1 = arith.constant 0 : i32
    return %c0_i32, %c0_i32_0 : i32, i32
  }
  func.func @transform_4(%arg0: i32) -> (i32, i32, i32, i32) {
    %c0_i32 = arith.constant 0 : i32
    %c0_i32_0 = arith.constant 0 : i32
    %c0_i32_1 = arith.constant 0 : i32
    %c0_i32_2 = arith.constant 0 : i32
    %c0_i32_3 = arith.constant 0 : i32
    return %c0_i32, %c0_i32_0, %c0_i32_1, %c0_i32_2 : i32, i32, i32, i32
  }
  func.func @transform_5(%arg0: i32) -> (i32, i32, i32) {
    %c0_i32 = arith.constant 0 : i32
    %c0_i32_0 = arith.constant 0 : i32
    %c0_i32_1 = arith.constant 0 : i32
    %c0_i32_2 = arith.constant 0 : i32
    return %c0_i32, %c0_i32_0, %c0_i32_1 : i32, i32, i32
  }
  func.func @transform_6(%arg0: i32) -> (i32, i32, i32) {
    %c0_i32 = arith.constant 0 : i32
    %c0_i32_0 = arith.constant 0 : i32
    %c0_i32_1 = arith.constant 0 : i32
    %c0_i32_2 = arith.constant 0 : i32
    return %c0_i32, %c0_i32_0, %c0_i32_1 : i32, i32, i32
  }
  func.func @transform_7(%arg0: i32) -> (i32, i32) {
    %c0_i32 = arith.constant 0 : i32
    %c0_i32_0 = arith.constant 0 : i32
    %c0_i32_1 = arith.constant 0 : i32
    return %c0_i32, %c0_i32_0 : i32, i32
  }
  func.func @transform_8(%arg0: i32) -> (i32, i32, i32) {
    %c0_i32 = arith.constant 0 : i32
    %c0_i32_0 = arith.constant 0 : i32
    %c0_i32_1 = arith.constant 0 : i32
    %c0_i32_2 = arith.constant 0 : i32
    return %c0_i32, %c0_i32_0, %c0_i32_1 : i32, i32, i32
  }
  func.func @transform_9(%arg0: i32) -> (i32, i32) {
    %c0_i32 = arith.constant 0 : i32
    %c0_i32_0 = arith.constant 0 : i32
    %c0_i32_1 = arith.constant 0 : i32
    return %c0_i32, %c0_i32_0 : i32, i32
  }
  func.func @transform_10(%arg0: i32) -> (i32, i32) {
    %c0_i32 = arith.constant 0 : i32
    %c0_i32_0 = arith.constant 0 : i32
    %c0_i32_1 = arith.constant 0 : i32
    return %c0_i32, %c0_i32_0 : i32, i32
  }
  func.func @transform_11(%arg0: i32) -> (i32, i32, i32) {
    %c0_i32 = arith.constant 0 : i32
    %c0_i32_0 = arith.constant 0 : i32
    %c0_i32_1 = arith.constant 0 : i32
    return %arg0, %c0_i32, %c0_i32_0 : i32, i32, i32
  }
}

</mosaic_0001>

<llo_original>
// kernel: contextual_block_forward.1
$region0: #{contextual_block_forward.1}
  #allocation0 [shape = 'u32[]', space=smem, size = 0x4, offset = 0x4, fixed_abs, tag = 'smem constant byte address 0x4 - core index']
  #allocation1 [shape = 'u32[144,128]{1,0:T(1,128)}', space=vmem, size = 0x12000, scoped, tag = 'internal scratch']
  #allocation2 [shape = 'f32[18,32]{1,0:T(8,128)}', space=vmem, size = 0x3000, scoped, tag = 'scratch operand']
  %s0 = inlined_call_operand.vmem [shape: f32[2,9,144], index: 0, kind: input, shape index: {}]
  %s1 = inlined_call_operand.vmem [shape: f32[2,144,32], index: 1, kind: input, shape index: {}]
  %s2 = inlined_call_operand.vmem [shape: f32[1,32], index: 2, kind: input, shape index: {}]
  %s3 = inlined_call_operand.vmem [shape: f32[1,32], index: 3, kind: input, shape index: {}]
  %s4 = inlined_call_operand.vmem [shape: f32[9,3,32,32], index: 4, kind: input, shape index: {}]
  %s5 = inlined_call_operand.vmem [shape: f32[9,1,32], index: 5, kind: input, shape index: {}]
  %s6 = inlined_call_operand.vmem [shape: f32[3,32,32], index: 6, kind: input, shape index: {}]
  %s7 = inlined_call_operand.vmem [shape: f32[1,32], index: 7, kind: input, shape index: {}]
  %s8 = inlined_call_operand.vmem [shape: f32[3,32,128], index: 8, kind: input, shape index: {}]
  %s9 = inlined_call_operand.vmem [shape: f32[1,128], index: 9, kind: input, shape index: {}]
  %s10 = inlined_call_operand.vmem [shape: f32[1,128], index: 10, kind: input, shape index: {}]
  %s11 = inlined_call_operand.vmem [shape: f32[2,8,128], index: 11, kind: output, shape index: {}]
  %s12 = sld [smem:[#allocation0]]
  $region77: #{contextual_block_forward.1} parent=0
    _
  %s14 = ssub.s32 1, %s12
  %s15 = scalar_select 0, %s14, %s12
  loop: start=0, step=1, limit=4
  $region2: #{contextual_block_forward.1} parent=0 // loop_pre_header
    _
  $region3: #{contextual_block_forward.1} parent=0 // loop_header
    %s17 = sphi 0, %s21
    %p18 = scmp.ge.s32.totalorder %s17, 4
    %s27 = sphi 0, %s29
    %s30 = sphi 0, %s27
    %s31 = sphi 0, %s30
    %s47 = sphi 0, %s31
    %s51 = sphi 0, %s51
    %s53 = sphi 0, %s51
    %s54 = sphi 0, %s53
    %s68 = sphi 0, %s54
    %s72 = sphi 0, %s72
    %s74 = sphi 0, %s72
    %s75 = sphi 0, %s74
    %s89 = sphi 0, %s75
    %s93 = sphi 0, %s93
    %s95 = sphi 0, %s93
    %s96 = sphi 0, %s95
    %s110 = sphi 0, %s96
    %s114 = sphi 0, %s114
    %s116 = sphi 0, %s114
    %s117 = sphi 0, %s116
    %s131 = sphi 0, %s117
    %s135 = sphi 0, %s135
    %s137 = sphi 0, %s135
    %s138 = sphi 0, %s137
    %s152 = sphi 0, %s138
    %s156 = sphi 0, %s156
    %s158 = sphi 0, %s156
    %s159 = sphi 0, %s158
    %s173 = sphi 0, %s159
    %s177 = sphi 0, %s177
    %s179 = sphi 0, %s177
    %s180 = sphi 0, %s179
    %s194 = sphi 0, %s180
    %s198 = sphi 0, %s198
    %s200 = sphi 0, %s198
    %s201 = sphi 0, %s200
    %s215 = sphi 0, %s201
    %s219 = sphi 0, %s219
    %s221 = sphi 0, %s219
    %s222 = sphi 0, %s221
    %s236 = sphi 0, %s222
    %s240 = sphi 0, %s240
    %s242 = sphi 0, %s240
    %s243 = sphi 0, %s242
    %s257 = sphi 0, %s243
    %s263 = sphi 0, %s265
    %s266 = sphi 0, %s263
    %s267 = sphi 0, %s266
    %s283 = sphi 0, %s267
  $region4: #{contextual_block_forward.1} parent=0 // loop_header_branch
    %20 = sbr.rel (%p18) target = $region8
  $region5: #{contextual_block_forward.1} parent=0 // loop_body
    %s22 = ssub.s32 %s17, 1
    %s23 = ssub.s32 %s17, 2
    %s24 = sadd.s32 %s17, 1
    %s25 = ssub.s32 %s17, %s24
    %p26 = scmp.eq.s32.totalorder %s25, 0
    %s28 = sadd.s32 %s27, 1
    %s29 = scalar_select %p26, %s27, %s28
    %p32 = pneg %p26
    %p33 = scmp.eq.s32.totalorder %s17, 1
    %p34 = por %p32, %p33
    %p35 = scmp.ne.s32.totalorder %s27, %s30
    %p36 = scmp.eq.s32.totalorder %s17, 0
    %p37 = por %p35, %p36
    %p38 = scmp.ne.s32.totalorder %s27, %s30
    %p39 = scmp.eq.s32.totalorder %s22, 1
    %p40 = por %p38, %p39
    %p41 = scmp.ne.s32.totalorder %s30, %s31
    %p42 = scmp.eq.s32.totalorder %s22, 0
    %p43 = por %p41, %p42
    %p44 = scmp.ne.s32.totalorder %s30, %s31
    %p45 = scmp.eq.s32.totalorder %s23, 1
    %p46 = por %p44, %p45
    %p48 = scmp.ne.s32.totalorder %s31, %s47
    %p49 = scmp.eq.s32.totalorder %s23, 0
    %p50 = por %p48, %p49
    %s52 = sadd.s32 %s51, 1
    %p55 = scmp.eq.s32.totalorder %s17, 1
    %p56 = scmp.ne.s32.totalorder %s51, %s53
    %p57 = scmp.eq.s32.totalorder %s17, 0
    %p58 = por %p56, %p57
    %p59 = scmp.ne.s32.totalorder %s51, %s53
    %p60 = scmp.eq.s32.totalorder %s22, 1
    %p61 = por %p59, %p60
    %p62 = scmp.ne.s32.totalorder %s53, %s54
    %p63 = scmp.eq.s32.totalorder %s22, 0
    %p64 = por %p62, %p63
    %p65 = scmp.ne.s32.totalorder %s53, %s54
    %p66 = scmp.eq.s32.totalorder %s23, 1
    %p67 = por %p65, %p66
    %p69 = scmp.ne.s32.totalorder %s54, %s68
    %p70 = scmp.eq.s32.totalorder %s23, 0
    %p71 = por %p69, %p70
    %s73 = sadd.s32 %s72, 1
    %p76 = scmp.eq.s32.totalorder %s17, 1
    %p77 = scmp.ne.s32.totalorder %s72, %s74
    %p78 = scmp.eq.s32.totalorder %s17, 0
    %p79 = por %p77, %p78
    %p80 = scmp.ne.s32.totalorder %s72, %s74
    %p81 = scmp.eq.s32.totalorder %s22, 1
    %p82 = por %p80, %p81
    %p83 = scmp.ne.s32.totalorder %s74, %s75
    %p84 = scmp.eq.s32.totalorder %s22, 0
    %p85 = por %p83, %p84
    %p86 = scmp.ne.s32.totalorder %s74, %s75
    %p87 = scmp.eq.s32.totalorder %s23, 1
    %p88 = por %p86, %p87
    %p90 = scmp.ne.s32.totalorder %s75, %s89
    %p91 = scmp.eq.s32.totalorder %s23, 0
    %p92 = por %p90, %p91
    %s94 = sadd.s32 %s93, 1
    %p97 = scmp.eq.s32.totalorder %s17, 1
    %p98 = scmp.ne.s32.totalorder %s93, %s95
    %p99 = scmp.eq.s32.totalorder %s17, 0
    %p100 = por %p98, %p99
    %p101 = scmp.ne.s32.totalorder %s93, %s95
    %p102 = scmp.eq.s32.totalorder %s22, 1
    %p103 = por %p101, %p102
    %p104 = scmp.ne.s32.totalorder %s95, %s96
    %p105 = scmp.eq.s32.totalorder %s22, 0
    %p106 = por %p104, %p105
    %p107 = scmp.ne.s32.totalorder %s95, %s96
    %p108 = scmp.eq.s32.totalorder %s23, 1
    %p109 = por %p107, %p108
    %p111 = scmp.ne.s32.totalorder %s96, %s110
    %p112 = scmp.eq.s32.totalorder %s23, 0
    %p113 = por %p111, %p112
    %s115 = sadd.s32 %s114, 1
    %p118 = scmp.eq.s32.totalorder %s17, 1
    %p119 = scmp.ne.s32.totalorder %s114, %s116
    %p120 = scmp.eq.s32.totalorder %s17, 0
    %p121 = por %p119, %p120
    %p122 = scmp.ne.s32.totalorder %s114, %s116
    %p123 = scmp.eq.s32.totalorder %s22, 1
    %p124 = por %p122, %p123
    %p125 = scmp.ne.s32.totalorder %s116, %s117
    %p126 = scmp.eq.s32.totalorder %s22, 0
    %p127 = por %p125, %p126
    %p128 = scmp.ne.s32.totalorder %s116, %s117
    %p129 = scmp.eq.s32.totalorder %s23, 1
    %p130 = por %p128, %p129
    %p132 = scmp.ne.s32.totalorder %s117, %s131
    %p133 = scmp.eq.s32.totalorder %s23, 0
    %p134 = por %p132, %p133
    %s136 = sadd.s32 %s135, 1
    %p139 = scmp.eq.s32.totalorder %s17, 1
    %p140 = scmp.ne.s32.totalorder %s135, %s137
    %p141 = scmp.eq.s32.totalorder %s17, 0
    %p142 = por %p140, %p141
    %p143 = scmp.ne.s32.totalorder %s135, %s137
    %p144 = scmp.eq.s32.totalorder %s22, 1
    %p145 = por %p143, %p144
    %p146 = scmp.ne.s32.totalorder %s137, %s138
    %p147 = scmp.eq.s32.totalorder %s22, 0
    %p148 = por %p146, %p147
    %p149 = scmp.ne.s32.totalorder %s137, %s138
    %p150 = scmp.eq.s32.totalorder %s23, 1
    %p151 = por %p149, %p150
    %p153 = scmp.ne.s32.totalorder %s138, %s152
    %p154 = scmp.eq.s32.totalorder %s23, 0
    %p155 = por %p153, %p154
    %s157 = sadd.s32 %s156, 1
    %p160 = scmp.eq.s32.totalorder %s17, 1
    %p161 = scmp.ne.s32.totalorder %s156, %s158
    %p162 = scmp.eq.s32.totalorder %s17, 0
    %p163 = por %p161, %p162
    %p164 = scmp.ne.s32.totalorder %s156, %s158
    %p165 = scmp.eq.s32.totalorder %s22, 1
    %p166 = por %p164, %p165
    %p167 = scmp.ne.s32.totalorder %s158, %s159
    %p168 = scmp.eq.s32.totalorder %s22, 0
    %p169 = por %p167, %p168
    %p170 = scmp.ne.s32.totalorder %s158, %s159
    %p171 = scmp.eq.s32.totalorder %s23, 1
    %p172 = por %p170, %p171
    %p174 = scmp.ne.s32.totalorder %s159, %s173
    %p175 = scmp.eq.s32.totalorder %s23, 0
    %p176 = por %p174, %p175
    %s178 = sadd.s32 %s177, 1
    %p181 = scmp.eq.s32.totalorder %s17, 1
    %p182 = scmp.ne.s32.totalorder %s177, %s179
    %p183 = scmp.eq.s32.totalorder %s17, 0
    %p184 = por %p182, %p183
    %p185 = scmp.ne.s32.totalorder %s177, %s179
    %p186 = scmp.eq.s32.totalorder %s22, 1
    %p187 = por %p185, %p186
    %p188 = scmp.ne.s32.totalorder %s179, %s180
    %p189 = scmp.eq.s32.totalorder %s22, 0
    %p190 = por %p188, %p189
    %p191 = scmp.ne.s32.totalorder %s179, %s180
    %p192 = scmp.eq.s32.totalorder %s23, 1
    %p193 = por %p191, %p192
    %p195 = scmp.ne.s32.totalorder %s180, %s194
    %p196 = scmp.eq.s32.totalorder %s23, 0
    %p197 = por %p195, %p196
    %s199 = sadd.s32 %s198, 1
    %p202 = scmp.eq.s32.totalorder %s17, 1
    %p203 = scmp.ne.s32.totalorder %s198, %s200
    %p204 = scmp.eq.s32.totalorder %s17, 0
    %p205 = por %p203, %p204
    %p206 = scmp.ne.s32.totalorder %s198, %s200
    %p207 = scmp.eq.s32.totalorder %s22, 1
    %p208 = por %p206, %p207
    %p209 = scmp.ne.s32.totalorder %s200, %s201
    %p210 = scmp.eq.s32.totalorder %s22, 0
    %p211 = por %p209, %p210
    %p212 = scmp.ne.s32.totalorder %s200, %s201
    %p213 = scmp.eq.s32.totalorder %s23, 1
    %p214 = por %p212, %p213
    %p216 = scmp.ne.s32.totalorder %s201, %s215
    %p217 = scmp.eq.s32.totalorder %s23, 0
    %p218 = por %p216, %p217
    %s220 = sadd.s32 %s219, 1
    %p223 = scmp.eq.s32.totalorder %s17, 1
    %p224 = scmp.ne.s32.totalorder %s219, %s221
    %p225 = scmp.eq.s32.totalorder %s17, 0
    %p226 = por %p224, %p225
    %p227 = scmp.ne.s32.totalorder %s219, %s221
    %p228 = scmp.eq.s32.totalorder %s22, 1
    %p229 = por %p227, %p228
    %p230 = scmp.ne.s32.totalorder %s221, %s222
    %p231 = scmp.eq.s32.totalorder %s22, 0
    %p232 = por %p230, %p231
    %p233 = scmp.ne.s32.totalorder %s221, %s222
    %p234 = scmp.eq.s32.totalorder %s23, 1
    %p235 = por %p233, %p234
    %p237 = scmp.ne.s32.totalorder %s222, %s236
    %p238 = scmp.eq.s32.totalorder %s23, 0
    %p239 = por %p237, %p238
    %s241 = sadd.s32 %s240, 1
    %p244 = scmp.eq.s32.totalorder %s17, 1
    %p245 = scmp.ne.s32.totalorder %s240, %s242
    %p246 = scmp.eq.s32.totalorder %s17, 0
    %p247 = por %p245, %p246
    %p248 = scmp.ne.s32.totalorder %s240, %s242
    %p249 = scmp.eq.s32.totalorder %s22, 1
    %p250 = por %p248, %p249
    %p251 = scmp.ne.s32.totalorder %s242, %s243
    %p252 = scmp.eq.s32.totalorder %s22, 0
    %p253 = por %p251, %p252
    %p254 = scmp.ne.s32.totalorder %s242, %s243
    %p255 = scmp.eq.s32.totalorder %s23, 1
    %p256 = por %p254, %p255
    %p258 = scmp.ne.s32.totalorder %s243, %s257
    %p259 = scmp.eq.s32.totalorder %s23, 0
    %p260 = por %p258, %p259
    %s261 = ssub.s32 %s17, %s24
    %p262 = scmp.eq.s32.totalorder %s261, 0
    %s264 = sadd.s32 %s263, 1
    %s265 = scalar_select %p262, %s263, %s264
    %p268 = pneg %p262
    %p269 = scmp.eq.s32.totalorder %s17, 1
    %p270 = por %p268, %p269
    %p271 = scmp.ne.s32.totalorder %s263, %s266
    %p272 = scmp.eq.s32.totalorder %s17, 0
    %p273 = por %p271, %p272
    %p274 = scmp.ne.s32.totalorder %s263, %s266
    %p275 = scmp.eq.s32.totalorder %s22, 1
    %p276 = por %p274, %p275
    %p277 = scmp.ne.s32.totalorder %s266, %s267
    %p278 = scmp.eq.s32.totalorder %s22, 0
    %p279 = por %p277, %p278
    %p280 = scmp.ne.s32.totalorder %s266, %s267
    %p281 = scmp.eq.s32.totalorder %s23, 1
    %p282 = por %p280, %p281
    %p284 = scmp.ne.s32.totalorder %s267, %s283
    %p285 = scmp.eq.s32.totalorder %s23, 0
    %p286 = por %p284, %p285
    %p287 = scmp.le.s32.totalorder 1, %s17
    %p288 = scmp.lt.s32.totalorder %s17, 3
    %p289 = pnand %p287, %p288
    %p290 = pneg %p289
    // Predicated region
    $region9: #{contextual_block_forward.1} parent=5 // pred_check
      _
    $region10: #{contextual_block_forward.1} parent=5 // pred_check_branch
      %292 = sbr.rel (%p289) target = $region12
    $region11: #{contextual_block_forward.1} parent=5 // pred_region
      %s293 = ssub.s32 %s17, 1
      // Predicated region
      $region13: #{contextual_block_forward.1} parent=11 // pred_check
        %p294 = pneg %p64
      $region14: #{contextual_block_forward.1} parent=11 // pred_check_branch
        %296 = sbr.rel (%p294) target = $region16
      $region15: #{contextual_block_forward.1} parent=11 // pred_region
        _
      $region16: #{contextual_block_forward.1} parent=11 // pred_fallthru
        _
      // Predicated region
      $region17: #{contextual_block_forward.1} parent=11 // pred_check
        %p297 = pneg %p85
      $region18: #{contextual_block_forward.1} parent=11 // pred_check_branch
        %299 = sbr.rel (%p297) target = $region20
      $region19: #{contextual_block_forward.1} parent=11 // pred_region
        _
      $region20: #{contextual_block_forward.1} parent=11 // pred_fallthru
        _
      // Predicated region
      $region21: #{contextual_block_forward.1} parent=11 // pred_check
        %p300 = pneg %p106
      $region22: #{contextual_block_forward.1} parent=11 // pred_check_branch
        %302 = sbr.rel (%p300) target = $region24
      $region23: #{contextual_block_forward.1} parent=11 // pred_region
        _
      $region24: #{contextual_block_forward.1} parent=11 // pred_fallthru
        _
      // Predicated region
      $region25: #{contextual_block_forward.1} parent=11 // pred_check
        %p303 = pneg %p127
      $region26: #{contextual_block_forward.1} parent=11 // pred_check_branch
        %305 = sbr.rel (%p303) target = $region28
      $region27: #{contextual_block_forward.1} parent=11 // pred_region
        _
      $region28: #{contextual_block_forward.1} parent=11 // pred_fallthru
        _
      // Predicated region
      $region29: #{contextual_block_forward.1} parent=11 // pred_check
        %p306 = pneg %p148
      $region30: #{contextual_block_forward.1} parent=11 // pred_check_branch
        %308 = sbr.rel (%p306) target = $region32
      $region31: #{contextual_block_forward.1} parent=11 // pred_region
        _
      $region32: #{contextual_block_forward.1} parent=11 // pred_fallthru
        _
      // Predicated region
      $region33: #{contextual_block_forward.1} parent=11 // pred_check
        %p309 = pneg %p169
      $region34: #{contextual_block_forward.1} parent=11 // pred_check_branch
        %311 = sbr.rel (%p309) target = $region36
      $region35: #{contextual_block_forward.1} parent=11 // pred_region
        _
      $region36: #{contextual_block_forward.1} parent=11 // pred_fallthru
        _
      // Predicated region
      $region37: #{contextual_block_forward.1} parent=11 // pred_check
        %p312 = pneg %p190
      $region38: #{contextual_block_forward.1} parent=11 // pred_check_branch
        %314 = sbr.rel (%p312) target = $region40
      $region39: #{contextual_block_forward.1} parent=11 // pred_region
        _
      $region40: #{contextual_block_forward.1} parent=11 // pred_fallthru
        _
      // Predicated region
      $region41: #{contextual_block_forward.1} parent=11 // pred_check
        %p315 = pneg %p211
      $region42: #{contextual_block_forward.1} parent=11 // pred_check_branch
        %317 = sbr.rel (%p315) target = $region44
      $region43: #{contextual_block_forward.1} parent=11 // pred_region
        _
      $region44: #{contextual_block_forward.1} parent=11 // pred_fallthru
        _
      // Predicated region
      $region45: #{contextual_block_forward.1} parent=11 // pred_check
        %p318 = pneg %p232
      $region46: #{contextual_block_forward.1} parent=11 // pred_check_branch
        %320 = sbr.rel (%p318) target = $region48
      $region47: #{contextual_block_forward.1} parent=11 // pred_region
        _
      $region48: #{contextual_block_forward.1} parent=11 // pred_fallthru
        _
      // Predicated region
      $region49: #{contextual_block_forward.1} parent=11 // pred_check
        %p321 = pneg %p253
      $region50: #{contextual_block_forward.1} parent=11 // pred_check_branch
        %323 = sbr.rel (%p321) target = $region52
      $region51: #{contextual_block_forward.1} parent=11 // pred_region
        _
      $region52: #{contextual_block_forward.1} parent=11 // pred_fallthru
        _
    $region12: #{contextual_block_forward.1} parent=5 // pred_fallthru
      _
    %p324 = scmp.lt.s32.totalorder %s17, 2
    // Predicated region
    $region53: #{contextual_block_forward.1} parent=5 // pred_check
      %p325 = pneg %p324
    $region54: #{contextual_block_forward.1} parent=5 // pred_check_branch
      %327 = sbr.rel (%p325) target = $region56
    $region55: #{contextual_block_forward.1} parent=5 // pred_region
      // Predicated region
      $region57: #{contextual_block_forward.1} parent=55 // pred_check
        %p328 = pneg %p37
      $region58: #{contextual_block_forward.1} parent=55 // pred_check_branch
        %330 = sbr.rel (%p328) target = $region60
      $region59: #{contextual_block_forward.1} parent=55 // pred_region
        %p331 = scmp.lt.s32.totalorder %s17, 1
        %s332 = scalar_select %p331, %s17, 1
        %s333 = smul.addr %s332, 4
        %s334 = smul.addr %s333, 8
        %s335 = scalar_lea.vmem %s0, %s334
      $region60: #{contextual_block_forward.1} parent=55 // pred_fallthru
        _
    $region56: #{contextual_block_forward.1} parent=5 // pred_fallthru
      _
    %p336 = scmp.le.s32.totalorder 1, %s17
    %p337 = scmp.lt.s32.totalorder %s17, 3
    %p338 = pnand %p336, %p337
    %p339 = pneg %p338
    // Predicated region
    $region61: #{contextual_block_forward.1} parent=5 // pred_check
      _
    $region62: #{contextual_block_forward.1} parent=5 // pred_check_branch
      %341 = sbr.rel (%p338) target = $region64
    $region63: #{contextual_block_forward.1} parent=5 // pred_region
      %s342 = ssub.s32 %s17, 1
      %p343 = scmp.lt.s32.totalorder %s22, 1
      %s344 = scalar_select %p343, %s22, 1
      %s345 = smul.addr %s344, 4
      %s346 = smul.addr %s345, 8
      %s347 = scalar_lea.vmem %s0, %s346
      %p348 = pneg %p43
      %p349 = pneg %p40
      %p350 = pneg %p64
      %p351 = pneg %p61
      %p352 = pneg %p85
      %p353 = pneg %p82
      %p354 = pneg %p106
      %p355 = pneg %p103
      %p356 = pneg %p127
      %p357 = pneg %p124
      %p358 = pneg %p148
      %p359 = pneg %p145
      %p360 = pneg %p169
      %p361 = pneg %p166
      %p362 = pneg %p190
      %p363 = pneg %p187
      %p364 = pneg %p211
      %p365 = pneg %p208
      %p366 = pneg %p232
      %p367 = pneg %p229
      %p368 = pneg %p253
      %p369 = pneg %p250
      %p370 = pneg %p279
      %p371 = pneg %p276
      %p372 = scmp.lt.s32.totalorder %s22, 1
      %s373 = scalar_select %p372, %s22, 1
      %s374 = smul.addr %s373, 8
      %s375 = scalar_lea.vmem %s11, %s374
      %p376 = scmp.lt.s32.totalorder %s22, 1
      %s377 = scalar_select %p376, %s22, 1
      %s378 = smul.addr %s377, 4
      %s379 = smul.addr %s378, 8
      %s380 = scalar_lea.vmem %s0, %s379
      %p381 = scmp.lt.s32.totalorder %s22, 1
      %s382 = scalar_select %p381, %s22, 1
      %s383 = smul.addr %s382, 8
      %s384 = scalar_lea.vmem %s11, %s383
      %v385 = vld [vmem:[%s380] sm:$0xff]
      %v386 = vld [vmem:[%s380 + $0x8] sm:$0xff]
      %v387 = vld [vmem:[%s1] sm:$0xff]
      %v388 = vld [vmem:[%s1 + $0x8] sm:$0xff]
      %v389 = vld [vmem:[%s1 + $0x10] sm:$0xff]
      %v390 = vld [vmem:[%s1 + $0x18] sm:$0xff]
      %v391 = vld [vmem:[%s1 + $0x20] sm:$0xff]
      %v392 = vld [vmem:[%s1 + $0x28] sm:$0xff]
      %v393 = vld [vmem:[%s1 + $0x30] sm:$0xff]
      %v394 = vld [vmem:[%s1 + $0x38] sm:$0xff]
      %v395 = vld [vmem:[%s1 + $0x40] sm:$0xff]
      %v396 = vld [vmem:[%s1 + $0x48] sm:$0xff]
      %v397 = vld [vmem:[%s1 + $0x50] sm:$0xff]
      %v398 = vld [vmem:[%s1 + $0x58] sm:$0xff]
      %v399 = vld [vmem:[%s1 + $0x60] sm:$0xff]
      %v400 = vld [vmem:[%s1 + $0x68] sm:$0xff]
      %v401 = vld [vmem:[%s1 + $0x70] sm:$0xff]
      %v402 = vld [vmem:[%s1 + $0x78] sm:$0xff]
      %v403 = vld [vmem:[%s1 + $0x80] sm:$0xff]
      %v404 = vld [vmem:[%s1 + $0x88] sm:$0xff]
      %v405 = vld [vmem:[%s380] sm:$0xfe]
      %v406 = vld [vmem:[%s380 + $0x8] sm:$0xfe]
      %v407 = vld [vmem:[%s380 + $0x10] sm:$0x1]
      %v408 = vld [vmem:[%s380 + $0x18] sm:$0x1]
      %s409 = scalar_lea.vmem %s1, 144
      %v410 = vld [vmem:[%s409] sm:$0xff]
      %v411 = vld [vmem:[%s409 + $0x8] sm:$0xff]
      %v412 = vld [vmem:[%s409 + $0x10] sm:$0xff]
      %v413 = vld [vmem:[%s409 + $0x18] sm:$0xff]
      %v414 = vld [vmem:[%s409 + $0x20] sm:$0xff]
      %v415 = vld [vmem:[%s409 + $0x28] sm:$0xff]
      %v416 = vld [vmem:[%s409 + $0x30] sm:$0xff]
      %v417 = vld [vmem:[%s409 + $0x38] sm:$0xff]
      %v418 = vld [vmem:[%s409 + $0x40] sm:$0xff]
      %v419 = vld [vmem:[%s409 + $0x48] sm:$0xff]
      %v420 = vld [vmem:[%s409 + $0x50] sm:$0xff]
      %v421 = vld [vmem:[%s409 + $0x58] sm:$0xff]
      %v422 = vld [vmem:[%s409 + $0x60] sm:$0xff]
      %v423 = vld [vmem:[%s409 + $0x68] sm:$0xff]
      %v424 = vld [vmem:[%s409 + $0x70] sm:$0xff]
      %v425 = vld [vmem:[%s409 + $0x78] sm:$0xff]
      %v426 = vld [vmem:[%s409 + $0x80] sm:$0xff]
      %v427 = vld [vmem:[%s409 + $0x88] sm:$0xff]
      %vm432 = vcmask 1046528
      %v433 = vrot.slane %v405, 1
      %v434 = vrot.slane %v407, 1
      %v435 = vsel %vm432, %v433, %v434
      %v436 = vrot.slane %v406, 1
      %v437 = vrot.slane %v408, 1
      %v438 = vsel %vm432, %v436, %v437
      %vm440 = vcmask 130048
      %v441 = vsel %vm440, %v438, 0
      %443 = vmatprep.subr.mxu0 0.0
      %444 = vmatpush1.msra.mxu0 %v410
      %445 = vmatprep.subr.mxu0 0.0
      %446 = vmatpush1.msra.mxu0 %v411
      %447 = vmatprep.subr.mxu0 0.0
      %448 = vmatpush1.msra.mxu0 %v412
      %449 = vmatprep.subr.mxu0 0.0
      %450 = vmatpush1.msra.mxu0 %v413
      %451 = vmatprep.subr.mxu0 0.0
      %452 = vmatpush1.msra.mxu0 %v414
      %453 = vmatprep.subr.mxu0 0.0
      %454 = vmatpush1.msra.mxu0 %v415
      %455 = vmatprep.subr.mxu0 0.0
      %456 = vmatpush1.msra.mxu0 %v416
      %457 = vmatprep.subr.mxu0 0.0
      %458 = vmatpush1.msra.mxu0 %v417
      %459 = vmatprep.subr.mxu0 0.0
      %460 = vmatpush1.msra.mxu0 %v418
      %461 = vmatprep.subr.mxu0 0.0
      %462 = vmatpush1.msra.mxu0 %v419
      %463 = vmatprep.subr.mxu0 0.0
      %464 = vmatpush1.msra.mxu0 %v420
      %465 = vmatprep.subr.mxu0 0.0
      %466 = vmatpush1.msra.mxu0 %v421
      %467 = vmatprep.subr.mxu0 0.0
      %468 = vmatpush1.msra.mxu0 %v422
      %469 = vmatprep.subr.mxu0 0.0
      %470 = vmatpush1.msra.mxu0 %v423
      %471 = vmatprep.subr.mxu0 0.0
      %472 = vmatpush1.msra.mxu0 %v424
      %473 = vmatprep.subr.mxu0 0.0
      %474 = vmatpush1.msra.mxu0 %v425
      %475 = vmatprep.subr.mxu0 0.0
      %476 = vmatpush1.msra.mxu0 %v426
      %477 = vmatprep.subr.mxu0 0.0
      %478 = vmatpush1.msra.mxu0 %v427
      %479 = vmatprep.subr.mxu0 0.0
      %480 = vmatpush1.msra.mxu0 0.0
      %481 = vmatprep.subr.mxu0 0.0
      %482 = vmatpush1.msra.mxu0 0.0
      %483 = vmatprep.subr.mxu0 0.0
      %484 = vmatpush1.msra.mxu0 0.0
      %485 = vmatprep.subr.mxu0 0.0
      %486 = vmatpush1.msra.mxu0 0.0
      %487 = vmatprep.subr.mxu0 0.0
      %488 = vmatpush1.msra.mxu0 0.0
      %489 = vmatprep.subr.mxu0 0.0
      %490 = vmatpush1.msra.mxu0 0.0
      %491 = vmatprep.subr.mxu0 0.0
      %492 = vmatpush1.msra.mxu0 0.0
      %493 = vmatprep.subr.mxu0 0.0
      %494 = vmatpush1.msra.mxu0 0.0
      %495 = vmatprep.subr.mxu0 0.0
      %496 = vmatpush1.msra.mxu0 0.0
      %497 = vmatprep.subr.mxu0 0.0
      %498 = vmatpush1.msra.mxu0 0.0
      %499 = vmatprep.subr.mxu0 0.0
      %500 = vmatpush1.msra.mxu0 0.0
      %501 = vmatprep.subr.mxu0 0.0
      %502 = vmatpush1.msra.mxu0 0.0
      %503 = vmatprep.subr.mxu0 0.0
      %504 = vmatpush1.msra.mxu0 0.0
      %505 = vmatprep.subr.mxu0 0.0
      %506 = vmatpush1.msra.mxu0 0.0
      %507 = vmatprep.mubr.f32.mxu0 %v441
      %508 = vmatmul.mubr.f32.gmra.mrb[0].mxu0 %v435
      %v509 = vpop.f32.mrb[0].mxu0
      %v510 = vadd.f32 0.0, %v509
      %v511 = vpop.f32.mrb[0].mxu0
      %512 = vdwg.mxu0
      %v514 = vsel %vm440, %v386, 0
      %516 = vmatprep.subr.mxu0 0.0
      %517 = vmatpush1.msra.mxu0 %v387
      %518 = vmatprep.subr.mxu0 0.0
      %519 = vmatpush1.msra.mxu0 %v388
      %520 = vmatprep.subr.mxu0 0.0
      %521 = vmatpush1.msra.mxu0 %v389
      %522 = vmatprep.subr.mxu0 0.0
      %523 = vmatpush1.msra.mxu0 %v390
      %524 = vmatprep.subr.mxu0 0.0
      %525 = vmatpush1.msra.mxu0 %v391
      %526 = vmatprep.subr.mxu0 0.0
      %527 = vmatpush1.msra.mxu0 %v392
      %528 = vmatprep.subr.mxu0 0.0
      %529 = vmatpush1.msra.mxu0 %v393
      %530 = vmatprep.subr.mxu0 0.0
      %531 = vmatpush1.msra.mxu0 %v394
      %532 = vmatprep.subr.mxu0 0.0
      %533 = vmatpush1.msra.mxu0 %v395
      %534 = vmatprep.subr.mxu0 0.0
      %535 = vmatpush1.msra.mxu0 %v396
      %536 = vmatprep.subr.mxu0 0.0
      %537 = vmatpush1.msra.mxu0 %v397
      %538 = vmatprep.subr.mxu0 0.0
      %539 = vmatpush1.msra.mxu0 %v398
      %540 = vmatprep.subr.mxu0 0.0
      %541 = vmatpush1.msra.mxu0 %v399
      %542 = vmatprep.subr.mxu0 0.0
      %543 = vmatpush1.msra.mxu0 %v400
      %544 = vmatprep.subr.mxu0 0.0
      %545 = vmatpush1.msra.mxu0 %v401
      %546 = vmatprep.subr.mxu0 0.0
      %547 = vmatpush1.msra.mxu0 %v402
      %548 = vmatprep.subr.mxu0 0.0
      %549 = vmatpush1.msra.mxu0 %v403
      %550 = vmatprep.subr.mxu0 0.0
      %551 = vmatpush1.msra.mxu0 %v404
      %552 = vmatprep.subr.mxu0 0.0
      %553 = vmatpush1.msra.mxu0 0.0
      %554 = vmatprep.subr.mxu0 0.0
      %555 = vmatpush1.msra.mxu0 0.0
      %556 = vmatprep.subr.mxu0 0.0
      %557 = vmatpush1.msra.mxu0 0.0
      %558 = vmatprep.subr.mxu0 0.0
      %559 = vmatpush1.msra.mxu0 0.0
      %560 = vmatprep.subr.mxu0 0.0
      %561 = vmatpush1.msra.mxu0 0.0
      %562 = vmatprep.subr.mxu0 0.0
      %563 = vmatpush1.msra.mxu0 0.0
      %564 = vmatprep.subr.mxu0 0.0
      %565 = vmatpush1.msra.mxu0 0.0
      %566 = vmatprep.subr.mxu0 0.0
      %567 = vmatpush1.msra.mxu0 0.0
      %568 = vmatprep.subr.mxu0 0.0
      %569 = vmatpush1.msra.mxu0 0.0
      %570 = vmatprep.subr.mxu0 0.0
      %571 = vmatpush1.msra.mxu0 0.0
      %572 = vmatprep.subr.mxu0 0.0
      %573 = vmatpush1.msra.mxu0 0.0
      %574 = vmatprep.subr.mxu0 0.0
      %575 = vmatpush1.msra.mxu0 0.0
      %576 = vmatprep.subr.mxu0 0.0
      %577 = vmatpush1.msra.mxu0 0.0
      %578 = vmatprep.subr.mxu0 0.0
      %579 = vmatpush1.msra.mxu0 0.0
      %580 = vmatprep.mubr.f32.mxu0 %v514
      %581 = vmatmul.mubr.f32.gmra.mrb[0].mxu0 %v385
      %v582 = vpop.f32.mrb[0].mxu0
      %v583 = vadd.f32 %v510, %v582
      %v584 = vpop.f32.mrb[0].mxu0
      %585 = vdwg.mxu0
      %v586 = vld [vmem:[%s2] sm:$0x1]
      %v588 = vlaneseq
      %v589 = vshrl.u32 %v588, 7
      %v590 = vsub.s32 0, %v589
      %v591 = vrot.slane %v586, %v590
      %v593 = vmul.f32 %v583, %v591
      %v594 = vld [vmem:[%s3] sm:$0x1]
      %v596 = vlaneseq
      %v597 = vshrl.u32 %v596, 7
      %v598 = vsub.s32 0, %v597
      %v599 = vrot.slane %v594, %v598
      %v601 = vadd.f32 %v593, %v599
      %v602 = vmax.f32 %v601, 0.0
      %vm603 = vcmask 261120
      %604 = vst.msk [vmem:[#allocation2] sm:$0xff] %vm603, 0.0
      %605 = vst.msk [vmem:[#allocation2 + $0x8] sm:$0xff] %vm603, 0.0
      %vm606 = vcmask 254976
      %607 = vst.msk [vmem:[#allocation2 + $0x10] sm:$0x3] %vm606, 0.0
      %608 = vst.msk [vmem:[#allocation2 + $0x5] sm:$0xff] %vm603, %v602
      %v609 = vld [vmem:[#allocation2 + $0x4] sm:$0xff]
      %v610 = vld [vmem:[%s4] sm:$0xff]
      %v611 = vld [vmem:[%s4 + $0x8] sm:$0xff]
      %v612 = vld [vmem:[%s4 + $0x10] sm:$0xff]
      %v613 = vld [vmem:[%s4 + $0x18] sm:$0xff]
      %v614 = vld [vmem:[#allocation2 + $0x5] sm:$0xff]
      %s615 = scalar_lea.vmem %s4, 32
      %v616 = vld [vmem:[%s615] sm:$0xff]
      %v617 = vld [vmem:[%s615 + $0x8] sm:$0xff]
      %v618 = vld [vmem:[%s615 + $0x10] sm:$0xff]
      %v619 = vld [vmem:[%s615 + $0x18] sm:$0xff]
      %v621 = vsel %vm603, %v614, 0
      %623 = vmatprep.subr.mxu0 0.0
      %624 = vmatpush1.msra.mxu0 %v616
      %625 = vmatprep.subr.mxu0 0.0
      %626 = vmatpush1.msra.mxu0 %v617
      %627 = vmatprep.subr.mxu0 0.0
      %628 = vmatpush1.msra.mxu0 %v618
      %629 = vmatprep.subr.mxu0 0.0
      %630 = vmatpush1.msra.mxu0 %v619
      %631 = vmatprep.subr.mxu0 0.0
      %632 = vmatpush1.msra.mxu0 0.0
      %633 = vmatprep.subr.mxu0 0.0
      %634 = vmatpush1.msra.mxu0 0.0
      %635 = vmatprep.subr.mxu0 0.0
      %636 = vmatpush1.msra.mxu0 0.0
      %637 = vmatprep.subr.mxu0 0.0
      %638 = vmatpush1.msra.mxu0 0.0
      %639 = vmatprep.subr.mxu0 0.0
      %640 = vmatpush1.msra.mxu0 0.0
      %641 = vmatprep.subr.mxu0 0.0
      %642 = vmatpush1.msra.mxu0 0.0
      %643 = vmatprep.subr.mxu0 0.0
      %644 = vmatpush1.msra.mxu0 0.0
      %645 = vmatprep.subr.mxu0 0.0
      %646 = vmatpush1.msra.mxu0 0.0
      %647 = vmatprep.subr.mxu0 0.0
      %648 = vmatpush1.msra.mxu0 0.0
      %649 = vmatprep.subr.mxu0 0.0
      %650 = vmatpush1.msra.mxu0 0.0
      %651 = vmatprep.subr.mxu0 0.0
      %652 = vmatpush1.msra.mxu0 0.0
      %653 = vmatprep.subr.mxu0 0.0
      %654 = vmatpush1.msra.mxu0 0.0
      %655 = vmatprep.subr.mxu0 0.0
      %656 = vmatpush1.msra.mxu0 0.0
      %657 = vmatprep.subr.mxu0 0.0
      %658 = vmatpush1.msra.mxu0 0.0
      %659 = vmatprep.subr.mxu0 0.0
      %660 = vmatpush1.msra.mxu0 0.0
      %661 = vmatprep.subr.mxu0 0.0
      %662 = vmatpush1.msra.mxu0 0.0
      %663 = vmatprep.subr.mxu0 0.0
      %664 = vmatpush1.msra.mxu0 0.0
      %665 = vmatprep.subr.mxu0 0.0
      %666 = vmatpush1.msra.mxu0 0.0
      %667 = vmatprep.subr.mxu0 0.0
      %668 = vmatpush1.msra.mxu0 0.0
      %669 = vmatprep.subr.mxu0 0.0
      %670 = vmatpush1.msra.mxu0 0.0
      %671 = vmatprep.subr.mxu0 0.0
      %672 = vmatpush1.msra.mxu0 0.0
      %673 = vmatprep.subr.mxu0 0.0
      %674 = vmatpush1.msra.mxu0 0.0
      %675 = vmatprep.subr.mxu0 0.0
      %676 = vmatpush1.msra.mxu0 0.0
      %677 = vmatprep.subr.mxu0 0.0
      %678 = vmatpush1.msra.mxu0 0.0
      %679 = vmatprep.subr.mxu0 0.0
      %680 = vmatpush1.msra.mxu0 0.0
      %681 = vmatprep.subr.mxu0 0.0
      %682 = vmatpush1.msra.mxu0 0.0
      %683 = vmatprep.subr.mxu0 0.0
      %684 = vmatpush1.msra.mxu0 0.0
      %685 = vmatprep.subr.mxu0 0.0
      %686 = vmatpush1.msra.mxu0 0.0
      %687 = vmatprep.mubr.f32.mxu0 0.0
      %688 = vmatmul.mubr.f32.gmra.mrb[0].mxu0 %v621
      %v689 = vpop.f32.mrb[0].mxu0
      %v690 = vadd.f32 0.0, %v689
      %v691 = vpop.f32.mrb[0].mxu0
      %692 = vdwg.mxu0
      %v694 = vsel %vm603, %v609, 0
      %696 = vmatprep.subr.mxu0 0.0
      %697 = vmatpush1.msra.mxu0 %v610
      %698 = vmatprep.subr.mxu0 0.0
      %699 = vmatpush1.msra.mxu0 %v611
      %700 = vmatprep.subr.mxu0 0.0
      %701 = vmatpush1.msra.mxu0 %v612
      %702 = vmatprep.subr.mxu0 0.0
      %703 = vmatpush1.msra.mxu0 %v613
      %704 = vmatprep.subr.mxu0 0.0
      %705 = vmatpush1.msra.mxu0 0.0
      %706 = vmatprep.subr.mxu0 0.0
      %707 = vmatpush1.msra.mxu0 0.0
      %708 = vmatprep.subr.mxu0 0.0
      %709 = vmatpush1.msra.mxu0 0.0
      %710 = vmatprep.subr.mxu0 0.0
      %711 = vmatpush1.msra.mxu0 0.0
      %712 = vmatprep.subr.mxu0 0.0
      %713 = vmatpush1.msra.mxu0 0.0
      %714 = vmatprep.subr.mxu0 0.0
      %715 = vmatpush1.msra.mxu0 0.0
      %716 = vmatprep.subr.mxu0 0.0
      %717 = vmatpush1.msra.mxu0 0.0
      %718 = vmatprep.subr.mxu0 0.0
      %719 = vmatpush1.msra.mxu0 0.0
      %720 = vmatprep.subr.mxu0 0.0
      %721 = vmatpush1.msra.mxu0 0.0
      %722 = vmatprep.subr.mxu0 0.0
      %723 = vmatpush1.msra.mxu0 0.0
      %724 = vmatprep.subr.mxu0 0.0
      %725 = vmatpush1.msra.mxu0 0.0
      %726 = vmatprep.subr.mxu0 0.0
      %727 = vmatpush1.msra.mxu0 0.0
      %728 = vmatprep.subr.mxu0 0.0
      %729 = vmatpush1.msra.mxu0 0.0
      %730 = vmatprep.subr.mxu0 0.0
      %731 = vmatpush1.msra.mxu0 0.0
      %732 = vmatprep.subr.mxu0 0.0
      %733 = vmatpush1.msra.mxu0 0.0
      %734 = vmatprep.subr.mxu0 0.0
      %735 = vmatpush1.msra.mxu0 0.0
      %736 = vmatprep.subr.mxu0 0.0
      %737 = vmatpush1.msra.mxu0 0.0
      %738 = vmatprep.subr.mxu0 0.0
      %739 = vmatpush1.msra.mxu0 0.0
      %740 = vmatprep.subr.mxu0 0.0
      %741 = vmatpush1.msra.mxu0 0.0
      %742 = vmatprep.subr.mxu0 0.0
      %743 = vmatpush1.msra.mxu0 0.0
      %744 = vmatprep.subr.mxu0 0.0
      %745 = vmatpush1.msra.mxu0 0.0
      %746 = vmatprep.subr.mxu0 0.0
      %747 = vmatpush1.msra.mxu0 0.0
      %748 = vmatprep.subr.mxu0 0.0
      %749 = vmatpush1.msra.mxu0 0.0
      %750 = vmatprep.subr.mxu0 0.0
      %751 = vmatpush1.msra.mxu0 0.0
      %752 = vmatprep.subr.mxu0 0.0
      %753 = vmatpush1.msra.mxu0 0.0
      %754 = vmatprep.subr.mxu0 0.0
      %755 = vmatpush1.msra.mxu0 0.0
      %756 = vmatprep.subr.mxu0 0.0
      %757 = vmatpush1.msra.mxu0 0.0
      %758 = vmatprep.subr.mxu0 0.0
      %759 = vmatpush1.msra.mxu0 0.0
      %760 = vmatprep.mubr.f32.mxu0 0.0
      %761 = vmatmul.mubr.f32.gmra.mrb[0].mxu0 %v694
      %v762 = vpop.f32.mrb[0].mxu0
      %v763 = vadd.f32 %v690, %v762
      %v764 = vpop.f32.mrb[0].mxu0
      %765 = vdwg.mxu0
      %v766 = vld [vmem:[#allocation2 + $0x6] sm:$0xff]
      %s767 = scalar_lea.vmem %s4, 64
      %v768 = vld [vmem:[%s767] sm:$0xff]
      %v769 = vld [vmem:[%s767 + $0x8] sm:$0xff]
      %v770 = vld [vmem:[%s767 + $0x10] sm:$0xff]
      %v771 = vld [vmem:[%s767 + $0x18] sm:$0xff]
      %v773 = vsel %vm603, %v766, 0
      %775 = vmatprep.subr.mxu0 0.0
      %776 = vmatpush1.msra.mxu0 %v768
      %777 = vmatprep.subr.mxu0 0.0
      %778 = vmatpush1.msra.mxu0 %v769
      %779 = vmatprep.subr.mxu0 0.0
      %780 = vmatpush1.msra.mxu0 %v770
      %781 = vmatprep.subr.mxu0 0.0
      %782 = vmatpush1.msra.mxu0 %v771
      %783 = vmatprep.subr.mxu0 0.0
      %784 = vmatpush1.msra.mxu0 0.0
      %785 = vmatprep.subr.mxu0 0.0
      %786 = vmatpush1.msra.mxu0 0.0
      %787 = vmatprep.subr.mxu0 0.0
      %788 = vmatpush1.msra.mxu0 0.0
      %789 = vmatprep.subr.mxu0 0.0
      %790 = vmatpush1.msra.mxu0 0.0
      %791 = vmatprep.subr.mxu0 0.0
      %792 = vmatpush1.msra.mxu0 0.0
      %793 = vmatprep.subr.mxu0 0.0
      %794 = vmatpush1.msra.mxu0 0.0
      %795 = vmatprep.subr.mxu0 0.0
      %796 = vmatpush1.msra.mxu0 0.0
      %797 = vmatprep.subr.mxu0 0.0
      %798 = vmatpush1.msra.mxu0 0.0
      %799 = vmatprep.subr.mxu0 0.0
      %800 = vmatpush1.msra.mxu0 0.0
      %801 = vmatprep.subr.mxu0 0.0
      %802 = vmatpush1.msra.mxu0 0.0
      %803 = vmatprep.subr.mxu0 0.0
      %804 = vmatpush1.msra.mxu0 0.0
      %805 = vmatprep.subr.mxu0 0.0
      %806 = vmatpush1.msra.mxu0 0.0
      %807 = vmatprep.subr.mxu0 0.0
      %808 = vmatpush1.msra.mxu0 0.0
      %809 = vmatprep.subr.mxu0 0.0
      %810 = vmatpush1.msra.mxu0 0.0
      %811 = vmatprep.subr.mxu0 0.0
      %812 = vmatpush1.msra.mxu0 0.0
      %813 = vmatprep.subr.mxu0 0.0
      %814 = vmatpush1.msra.mxu0 0.0
      %815 = vmatprep.subr.mxu0 0.0
      %816 = vmatpush1.msra.mxu0 0.0
      %817 = vmatprep.subr.mxu0 0.0
      %818 = vmatpush1.msra.mxu0 0.0
      %819 = vmatprep.subr.mxu0 0.0
      %820 = vmatpush1.msra.mxu0 0.0
      %821 = vmatprep.subr.mxu0 0.0
      %822 = vmatpush1.msra.mxu0 0.0
      %823 = vmatprep.subr.mxu0 0.0
      %824 = vmatpush1.msra.mxu0 0.0
      %825 = vmatprep.subr.mxu0 0.0
      %826 = vmatpush1.msra.mxu0 0.0
      %827 = vmatprep.subr.mxu0 0.0
      %828 = vmatpush1.msra.mxu0 0.0
      %829 = vmatprep.subr.mxu0 0.0
      %830 = vmatpush1.msra.mxu0 0.0
      %831 = vmatprep.subr.mxu0 0.0
      %832 = vmatpush1.msra.mxu0 0.0
      %833 = vmatprep.subr.mxu0 0.0
      %834 = vmatpush1.msra.mxu0 0.0
      %835 = vmatprep.subr.mxu0 0.0
      %836 = vmatpush1.msra.mxu0 0.0
      %837 = vmatprep.subr.mxu0 0.0
      %838 = vmatpush1.msra.mxu0 0.0
      %839 = vmatprep.mubr.f32.mxu0 0.0
      %840 = vmatmul.mubr.f32.gmra.mrb[0].mxu0 %v773
      %v841 = vpop.f32.mrb[0].mxu0
      %v842 = vadd.f32 0.0, %v841
      %v843 = vpop.f32.mrb[0].mxu0
      %844 = vdwg.mxu0
      %v845 = vadd.f32 %v763, %v842
      %v846 = vld [vmem:[%s5] sm:$0x1]
      %v848 = vlaneseq
      %v849 = vshrl.u32 %v848, 7
      %v850 = vsub.s32 0, %v849
      %v851 = vrot.slane %v846, %v850
      %v853 = vadd.f32 %v845, %v851
      %854 = vst.msk [vmem:[#allocation2 + $0x5] sm:$0xff] %vm603, %v853
      %v855 = vld [vmem:[#allocation2 + $0x2] sm:$0xff]
      %s856 = scalar_lea.vmem %s4, 96
      %v857 = vld [vmem:[%s856] sm:$0xff]
      %v858 = vld [vmem:[%s856 + $0x8] sm:$0xff]
      %v859 = vld [vmem:[%s856 + $0x10] sm:$0xff]
      %v860 = vld [vmem:[%s856 + $0x18] sm:$0xff]
      %v861 = vld [vmem:[#allocation2 + $0x5] sm:$0xff]
      %s862 = scalar_lea.vmem %s4, 128
      %v863 = vld [vmem:[%s862] sm:$0xff]
      %v864 = vld [vmem:[%s862 + $0x8] sm:$0xff]
      %v865 = vld [vmem:[%s862 + $0x10] sm:$0xff]
      %v866 = vld [vmem:[%s862 + $0x18] sm:$0xff]
      %v868 = vsel %vm603, %v861, 0
      %870 = vmatprep.subr.mxu0 0.0
      %871 = vmatpush1.msra.mxu0 %v863
      %872 = vmatprep.subr.mxu0 0.0
      %873 = vmatpush1.msra.mxu0 %v864
      %874 = vmatprep.subr.mxu0 0.0
      %875 = vmatpush1.msra.mxu0 %v865
      %876 = vmatprep.subr.mxu0 0.0
      %877 = vmatpush1.msra.mxu0 %v866
      %878 = vmatprep.subr.mxu0 0.0
      %879 = vmatpush1.msra.mxu0 0.0
      %880 = vmatprep.subr.mxu0 0.0
      %881 = vmatpush1.msra.mxu0 0.0
      %882 = vmatprep.subr.mxu0 0.0
      %883 = vmatpush1.msra.mxu0 0.0
      %884 = vmatprep.subr.mxu0 0.0
      %885 = vmatpush1.msra.mxu0 0.0
      %886 = vmatprep.subr.mxu0 0.0
      %887 = vmatpush1.msra.mxu0 0.0
      %888 = vmatprep.subr.mxu0 0.0
      %889 = vmatpush1.msra.mxu0 0.0
      %890 = vmatprep.subr.mxu0 0.0
      %891 = vmatpush1.msra.mxu0 0.0
      %892 = vmatprep.subr.mxu0 0.0
      %893 = vmatpush1.msra.mxu0 0.0
      %894 = vmatprep.subr.mxu0 0.0
      %895 = vmatpush1.msra.mxu0 0.0
      %896 = vmatprep.subr.mxu0 0.0
      %897 = vmatpush1.msra.mxu0 0.0
      %898 = vmatprep.subr.mxu0 0.0
      %899 = vmatpush1.msra.mxu0 0.0
      %900 = vmatprep.subr.mxu0 0.0
      %901 = vmatpush1.msra.mxu0 0.0
      %902 = vmatprep.subr.mxu0 0.0
      %903 = vmatpush1.msra.mxu0 0.0
      %904 = vmatprep.subr.mxu0 0.0
      %905 = vmatpush1.msra.mxu0 0.0
      %906 = vmatprep.subr.mxu0 0.0
      %907 = vmatpush1.msra.mxu0 0.0
      %908 = vmatprep.subr.mxu0 0.0
      %909 = vmatpush1.msra.mxu0 0.0
      %910 = vmatprep.subr.mxu0 0.0
      %911 = vmatpush1.msra.mxu0 0.0
      %912 = vmatprep.subr.mxu0 0.0
      %913 = vmatpush1.msra.mxu0 0.0
      %914 = vmatprep.subr.mxu0 0.0
      %915 = vmatpush1.msra.mxu0 0.0
      %916 = vmatprep.subr.mxu0 0.0
      %917 = vmatpush1.msra.mxu0 0.0
      %918 = vmatprep.subr.mxu0 0.0
      %919 = vmatpush1.msra.mxu0 0.0
      %920 = vmatprep.subr.mxu0 0.0
      %921 = vmatpush1.msra.mxu0 0.0
      %922 = vmatprep.subr.mxu0 0.0
      %923 = vmatpush1.msra.mxu0 0.0
      %924 = vmatprep.subr.mxu0 0.0
      %925 = vmatpush1.msra.mxu0 0.0
      %926 = vmatprep.subr.mxu0 0.0
      %927 = vmatpush1.msra.mxu0 0.0
      %928 = vmatprep.subr.mxu0 0.0
      %929 = vmatpush1.msra.mxu0 0.0
      %930 = vmatprep.subr.mxu0 0.0
      %931 = vmatpush1.msra.mxu0 0.0
      %932 = vmatprep.subr.mxu0 0.0
      %933 = vmatpush1.msra.mxu0 0.0
      %934 = vmatprep.mubr.f32.mxu0 0.0
      %935 = vmatmul.mubr.f32.gmra.mrb[0].mxu0 %v868
      %v936 = vpop.f32.mrb[0].mxu0
      %v937 = vadd.f32 0.0, %v936
      %v938 = vpop.f32.mrb[0].mxu0
      %939 = vdwg.mxu0
      %v941 = vsel %vm603, %v855, 0
      %943 = vmatprep.subr.mxu0 0.0
      %944 = vmatpush1.msra.mxu0 %v857
      %945 = vmatprep.subr.mxu0 0.0
      %946 = vmatpush1.msra.mxu0 %v858
      %947 = vmatprep.subr.mxu0 0.0
      %948 = vmatpush1.msra.mxu0 %v859
      %949 = vmatprep.subr.mxu0 0.0
      %950 = vmatpush1.msra.mxu0 %v860
      %951 = vmatprep.subr.mxu0 0.0
      %952 = vmatpush1.msra.mxu0 0.0
      %953 = vmatprep.subr.mxu0 0.0
      %954 = vmatpush1.msra.mxu0 0.0
      %955 = vmatprep.subr.mxu0 0.0
      %956 = vmatpush1.msra.mxu0 0.0
      %957 = vmatprep.subr.mxu0 0.0
      %958 = vmatpush1.msra.mxu0 0.0
      %959 = vmatprep.subr.mxu0 0.0
      %960 = vmatpush1.msra.mxu0 0.0
      %961 = vmatprep.subr.mxu0 0.0
      %962 = vmatpush1.msra.mxu0 0.0
      %963 = vmatprep.subr.mxu0 0.0
      %964 = vmatpush1.msra.mxu0 0.0
      %965 = vmatprep.subr.mxu0 0.0
      %966 = vmatpush1.msra.mxu0 0.0
      %967 = vmatprep.subr.mxu0 0.0
      %968 = vmatpush1.msra.mxu0 0.0
      %969 = vmatprep.subr.mxu0 0.0
      %970 = vmatpush1.msra.mxu0 0.0
      %971 = vmatprep.subr.mxu0 0.0
      %972 = vmatpush1.msra.mxu0 0.0
      %973 = vmatprep.subr.mxu0 0.0
      %974 = vmatpush1.msra.mxu0 0.0
      %975 = vmatprep.subr.mxu0 0.0
      %976 = vmatpush1.msra.mxu0 0.0
      %977 = vmatprep.subr.mxu0 0.0
      %978 = vmatpush1.msra.mxu0 0.0
      %979 = vmatprep.subr.mxu0 0.0
      %980 = vmatpush1.msra.mxu0 0.0
      %981 = vmatprep.subr.mxu0 0.0
      %982 = vmatpush1.msra.mxu0 0.0
      %983 = vmatprep.subr.mxu0 0.0
      %984 = vmatpush1.msra.mxu0 0.0
      %985 = vmatprep.subr.mxu0 0.0
      %986 = vmatpush1.msra.mxu0 0.0
      %987 = vmatprep.subr.mxu0 0.0
      %988 = vmatpush1.msra.mxu0 0.0
      %989 = vmatprep.subr.mxu0 0.0
      %990 = vmatpush1.msra.mxu0 0.0
      %991 = vmatprep.subr.mxu0 0.0
      %992 = vmatpush1.msra.mxu0 0.0
      %993 = vmatprep.subr.mxu0 0.0
      %994 = vmatpush1.msra.mxu0 0.0
      %995 = vmatprep.subr.mxu0 0.0
      %996 = vmatpush1.msra.mxu0 0.0
      %997 = vmatprep.subr.mxu0 0.0
      %998 = vmatpush1.msra.mxu0 0.0
      %999 = vmatprep.subr.mxu0 0.0
      %1000 = vmatpush1.msra.mxu0 0.0
      %1001 = vmatprep.subr.mxu0 0.0
      %1002 = vmatpush1.msra.mxu0 0.0
      %1003 = vmatprep.subr.mxu0 0.0
      %1004 = vmatpush1.msra.mxu0 0.0
      %1005 = vmatprep.subr.mxu0 0.0
      %1006 = vmatpush1.msra.mxu0 0.0
      %1007 = vmatprep.mubr.f32.mxu0 0.0
      %1008 = vmatmul.mubr.f32.gmra.mrb[0].mxu0 %v941
      %v1009 = vpop.f32.mrb[0].mxu0
      %v1010 = vadd.f32 %v937, %v1009
      %v1011 = vpop.f32.mrb[0].mxu0
      %1012 = vdwg.mxu0
      %v1013 = vld [vmem:[#allocation2 + $0x8] sm:$0xff]
      %s1014 = scalar_lea.vmem %s4, 160
      %v1015 = vld [vmem:[%s1014] sm:$0xff]
      %v1016 = vld [vmem:[%s1014 + $0x8] sm:$0xff]
      %v1017 = vld [vmem:[%s1014 + $0x10] sm:$0xff]
      %v1018 = vld [vmem:[%s1014 + $0x18] sm:$0xff]
      %v1020 = vsel %vm603, %v1013, 0
      %1022 = vmatprep.subr.mxu0 0.0
      %1023 = vmatpush1.msra.mxu0 %v1015
      %1024 = vmatprep.subr.mxu0 0.0
      %1025 = vmatpush1.msra.mxu0 %v1016
      %1026 = vmatprep.subr.mxu0 0.0
      %1027 = vmatpush1.msra.mxu0 %v1017
      %1028 = vmatprep.subr.mxu0 0.0
      %1029 = vmatpush1.msra.mxu0 %v1018
      %1030 = vmatprep.subr.mxu0 0.0
      %1031 = vmatpush1.msra.mxu0 0.0
      %1032 = vmatprep.subr.mxu0 0.0
      %1033 = vmatpush1.msra.mxu0 0.0
      %1034 = vmatprep.subr.mxu0 0.0
      %1035 = vmatpush1.msra.mxu0 0.0
      %1036 = vmatprep.subr.mxu0 0.0
      %1037 = vmatpush1.msra.mxu0 0.0
      %1038 = vmatprep.subr.mxu0 0.0
      %1039 = vmatpush1.msra.mxu0 0.0
      %1040 = vmatprep.subr.mxu0 0.0
      %1041 = vmatpush1.msra.mxu0 0.0
      %1042 = vmatprep.subr.mxu0 0.0
      %1043 = vmatpush1.msra.mxu0 0.0
      %1044 = vmatprep.subr.mxu0 0.0
      %1045 = vmatpush1.msra.mxu0 0.0
      %1046 = vmatprep.subr.mxu0 0.0
      %1047 = vmatpush1.msra.mxu0 0.0
      %1048 = vmatprep.subr.mxu0 0.0
      %1049 = vmatpush1.msra.mxu0 0.0
      %1050 = vmatprep.subr.mxu0 0.0
      %1051 = vmatpush1.msra.mxu0 0.0
      %1052 = vmatprep.subr.mxu0 0.0
      %1053 = vmatpush1.msra.mxu0 0.0
      %1054 = vmatprep.subr.mxu0 0.0
      %1055 = vmatpush1.msra.mxu0 0.0
      %1056 = vmatprep.subr.mxu0 0.0
      %1057 = vmatpush1.msra.mxu0 0.0
      %1058 = vmatprep.subr.mxu0 0.0
      %1059 = vmatpush1.msra.mxu0 0.0
      %1060 = vmatprep.subr.mxu0 0.0
      %1061 = vmatpush1.msra.mxu0 0.0
      %1062 = vmatprep.subr.mxu0 0.0
      %1063 = vmatpush1.msra.mxu0 0.0
      %1064 = vmatprep.subr.mxu0 0.0
      %1065 = vmatpush1.msra.mxu0 0.0
      %1066 = vmatprep.subr.mxu0 0.0
      %1067 = vmatpush1.msra.mxu0 0.0
      %1068 = vmatprep.subr.mxu0 0.0
      %1069 = vmatpush1.msra.mxu0 0.0
      %1070 = vmatprep.subr.mxu0 0.0
      %1071 = vmatpush1.msra.mxu0 0.0
      %1072 = vmatprep.subr.mxu0 0.0
      %1073 = vmatpush1.msra.mxu0 0.0
      %1074 = vmatprep.subr.mxu0 0.0
      %1075 = vmatpush1.msra.mxu0 0.0
      %1076 = vmatprep.subr.mxu0 0.0
      %1077 = vmatpush1.msra.mxu0 0.0
      %1078 = vmatprep.subr.mxu0 0.0
      %1079 = vmatpush1.msra.mxu0 0.0
      %1080 = vmatprep.subr.mxu0 0.0
      %1081 = vmatpush1.msra.mxu0 0.0
      %1082 = vmatprep.subr.mxu0 0.0
      %1083 = vmatpush1.msra.mxu0 0.0
      %1084 = vmatprep.subr.mxu0 0.0
      %1085 = vmatpush1.msra.mxu0 0.0
      %1086 = vmatprep.mubr.f32.mxu0 0.0
      %1087 = vmatmul.mubr.f32.gmra.mrb[0].mxu0 %v1020
      %v1088 = vpop.f32.mrb[0].mxu0
      %v1089 = vadd.f32 0.0, %v1088
      %v1090 = vpop.f32.mrb[0].mxu0
      %1091 = vdwg.mxu0
      %v1092 = vadd.f32 %v1010, %v1089
      %s1093 = scalar_lea.vmem %s5, 1
      %v1094 = vld [vmem:[%s1093] sm:$0x1]
      %v1096 = vlaneseq
      %v1097 = vshrl.u32 %v1096, 7
      %v1098 = vsub.s32 0, %v1097
      %v1099 = vrot.slane %v1094, %v1098
      %v1101 = vadd.f32 %v1092, %v1099
      %1102 = vst.msk [vmem:[#allocation2 + $0x5] sm:$0xff] %vm603, %v1101
      %v1103 = vld [vmem:[#allocation2] sm:$0xff]
      %s1104 = scalar_lea.vmem %s4, 192
      %v1105 = vld [vmem:[%s1104] sm:$0xff]
      %v1106 = vld [vmem:[%s1104 + $0x8] sm:$0xff]
      %v1107 = vld [vmem:[%s1104 + $0x10] sm:$0xff]
      %v1108 = vld [vmem:[%s1104 + $0x18] sm:$0xff]
      %v1109 = vld [vmem:[#allocation2 + $0x5] sm:$0xff]
      %s1110 = scalar_lea.vmem %s4, 224
      %v1111 = vld [vmem:[%s1110] sm:$0xff]
      %v1112 = vld [vmem:[%s1110 + $0x8] sm:$0xff]
      %v1113 = vld [vmem:[%s1110 + $0x10] sm:$0xff]
      %v1114 = vld [vmem:[%s1110 + $0x18] sm:$0xff]
      %v1116 = vsel %vm603, %v1109, 0
      %1118 = vmatprep.subr.mxu0 0.0
      %1119 = vmatpush1.msra.mxu0 %v1111
      %1120 = vmatprep.subr.mxu0 0.0
      %1121 = vmatpush1.msra.mxu0 %v1112
      %1122 = vmatprep.subr.mxu0 0.0
      %1123 = vmatpush1.msra.mxu0 %v1113
      %1124 = vmatprep.subr.mxu0 0.0
      %1125 = vmatpush1.msra.mxu0 %v1114
      %1126 = vmatprep.subr.mxu0 0.0
      %1127 = vmatpush1.msra.mxu0 0.0
      %1128 = vmatprep.subr.mxu0 0.0
      %1129 = vmatpush1.msra.mxu0 0.0
      %1130 = vmatprep.subr.mxu0 0.0
      %1131 = vmatpush1.msra.mxu0 0.0
      %1132 = vmatprep.subr.mxu0 0.0
      %1133 = vmatpush1.msra.mxu0 0.0
      %1134 = vmatprep.subr.mxu0 0.0
      %1135 = vmatpush1.msra.mxu0 0.0
      %1136 = vmatprep.subr.mxu0 0.0
      %1137 = vmatpush1.msra.mxu0 0.0
      %1138 = vmatprep.subr.mxu0 0.0
      %1139 = vmatpush1.msra.mxu0 0.0
      %1140 = vmatprep.subr.mxu0 0.0
      %1141 = vmatpush1.msra.mxu0 0.0
      %1142 = vmatprep.subr.mxu0 0.0
      %1143 = vmatpush1.msra.mxu0 0.0
      %1144 = vmatprep.subr.mxu0 0.0
      %1145 = vmatpush1.msra.mxu0 0.0
      %1146 = vmatprep.subr.mxu0 0.0
      %1147 = vmatpush1.msra.mxu0 0.0
      %1148 = vmatprep.subr.mxu0 0.0
      %1149 = vmatpush1.msra.mxu0 0.0
      %1150 = vmatprep.subr.mxu0 0.0
      %1151 = vmatpush1.msra.mxu0 0.0
      %1152 = vmatprep.subr.mxu0 0.0
      %1153 = vmatpush1.msra.mxu0 0.0
      %1154 = vmatprep.subr.mxu0 0.0
      %1155 = vmatpush1.msra.mxu0 0.0
      %1156 = vmatprep.subr.mxu0 0.0
      %1157 = vmatpush1.msra.mxu0 0.0
      %1158 = vmatprep.subr.mxu0 0.0
      %1159 = vmatpush1.msra.mxu0 0.0
      %1160 = vmatprep.subr.mxu0 0.0
      %1161 = vmatpush1.msra.mxu0 0.0
      %1162 = vmatprep.subr.mxu0 0.0
      %1163 = vmatpush1.msra.mxu0 0.0
      %1164 = vmatprep.subr.mxu0 0.0
      %1165 = vmatpush1.msra.mxu0 0.0
      %1166 = vmatprep.subr.mxu0 0.0
      %1167 = vmatpush1.msra.mxu0 0.0
      %1168 = vmatprep.subr.mxu0 0.0
      %1169 = vmatpush1.msra.mxu0 0.0
      %1170 = vmatprep.subr.mxu0 0.0
      %1171 = vmatpush1.msra.mxu0 0.0
      %1172 = vmatprep.subr.mxu0 0.0
      %1173 = vmatpush1.msra.mxu0 0.0
      %1174 = vmatprep.subr.mxu0 0.0
      %1175 = vmatpush1.msra.mxu0 0.0
      %1176 = vmatprep.subr.mxu0 0.0
      %1177 = vmatpush1.msra.mxu0 0.0
      %1178 = vmatprep.subr.mxu0 0.0
      %1179 = vmatpush1.msra.mxu0 0.0
      %1180 = vmatprep.subr.mxu0 0.0
      %1181 = vmatpush1.msra.mxu0 0.0
      %1182 = vmatprep.mubr.f32.mxu0 0.0
      %1183 = vmatmul.mubr.f32.gmra.mrb[0].mxu0 %v1116
      %v1184 = vpop.f32.mrb[0].mxu0
      %v1185 = vadd.f32 0.0, %v1184
      %v1186 = vpop.f32.mrb[0].mxu0
      %1187 = vdwg.mxu0
      %v1189 = vsel %vm603, %v1103, 0
      %1191 = vmatprep.subr.mxu0 0.0
      %1192 = vmatpush1.msra.mxu0 %v1105
      %1193 = vmatprep.subr.mxu0 0.0
      %1194 = vmatpush1.msra.mxu0 %v1106
      %1195 = vmatprep.subr.mxu0 0.0
      %1196 = vmatpush1.msra.mxu0 %v1107
      %1197 = vmatprep.subr.mxu0 0.0
      %1198 = vmatpush1.msra.mxu0 %v1108
      %1199 = vmatprep.subr.mxu0 0.0
      %1200 = vmatpush1.msra.mxu0 0.0
      %1201 = vmatprep.subr.mxu0 0.0
      %1202 = vmatpush1.msra.mxu0 0.0
      %1203 = vmatprep.subr.mxu0 0.0
      %1204 = vmatpush1.msra.mxu0 0.0
      %1205 = vmatprep.subr.mxu0 0.0
      %1206 = vmatpush1.msra.mxu0 0.0
      %1207 = vmatprep.subr.mxu0 0.0
      %1208 = vmatpush1.msra.mxu0 0.0
      %1209 = vmatprep.subr.mxu0 0.0
      %1210 = vmatpush1.msra.mxu0 0.0
      %1211 = vmatprep.subr.mxu0 0.0
      %1212 = vmatpush1.msra.mxu0 0.0
      %1213 = vmatprep.subr.mxu0 0.0
      %1214 = vmatpush1.msra.mxu0 0.0
      %1215 = vmatprep.subr.mxu0 0.0
      %1216 = vmatpush1.msra.mxu0 0.0
      %1217 = vmatprep.subr.mxu0 0.0
      %1218 = vmatpush1.msra.mxu0 0.0
      %1219 = vmatprep.subr.mxu0 0.0
      %1220 = vmatpush1.msra.mxu0 0.0
      %1221 = vmatprep.subr.mxu0 0.0
      %1222 = vmatpush1.msra.mxu0 0.0
      %1223 = vmatprep.subr.mxu0 0.0
      %1224 = vmatpush1.msra.mxu0 0.0
      %1225 = vmatprep.subr.mxu0 0.0
      %1226 = vmatpush1.msra.mxu0 0.0
      %1227 = vmatprep.subr.mxu0 0.0
      %1228 = vmatpush1.msra.mxu0 0.0
      %1229 = vmatprep.subr.mxu0 0.0
      %1230 = vmatpush1.msra.mxu0 0.0
      %1231 = vmatprep.subr.mxu0 0.0
      %1232 = vmatpush1.msra.mxu0 0.0
      %1233 = vmatprep.subr.mxu0 0.0
      %1234 = vmatpush1.msra.mxu0 0.0
      %1235 = vmatprep.subr.mxu0 0.0
      %1236 = vmatpush1.msra.mxu0 0.0
      %1237 = vmatprep.subr.mxu0 0.0
      %1238 = vmatpush1.msra.mxu0 0.0
      %1239 = vmatprep.subr.mxu0 0.0
      %1240 = vmatpush1.msra.mxu0 0.0
      %1241 = vmatprep.subr.mxu0 0.0
      %1242 = vmatpush1.msra.mxu0 0.0
      %1243 = vmatprep.subr.mxu0 0.0
      %1244 = vmatpush1.msra.mxu0 0.0
      %1245 = vmatprep.subr.mxu0 0.0
      %1246 = vmatpush1.msra.mxu0 0.0
      %1247 = vmatprep.subr.mxu0 0.0
      %1248 = vmatpush1.msra.mxu0 0.0
      %1249 = vmatprep.subr.mxu0 0.0
      %1250 = vmatpush1.msra.mxu0 0.0
      %1251 = vmatprep.subr.mxu0 0.0
      %1252 = vmatpush1.msra.mxu0 0.0
      %1253 = vmatprep.subr.mxu0 0.0
      %1254 = vmatpush1.msra.mxu0 0.0
      %1255 = vmatprep.mubr.f32.mxu0 0.0
      %1256 = vmatmul.mubr.f32.gmra.mrb[0].mxu0 %v1189
      %v1257 = vpop.f32.mrb[0].mxu0
      %v1258 = vadd.f32 %v1185, %v1257
      %v1259 = vpop.f32.mrb[0].mxu0
      %1260 = vdwg.mxu0
      %v1261 = vld [vmem:[#allocation2 + $0xa] sm:$0xff]
      %s1262 = scalar_lea.vmem %s4, 256
      %v1263 = vld [vmem:[%s1262] sm:$0xff]
      %v1264 = vld [vmem:[%s1262 + $0x8] sm:$0xff]
      %v1265 = vld [vmem:[%s1262 + $0x10] sm:$0xff]
      %v1266 = vld [vmem:[%s1262 + $0x18] sm:$0xff]
      %v1268 = vsel %vm603, %v1261, 0
      %1270 = vmatprep.subr.mxu0 0.0
      %1271 = vmatpush1.msra.mxu0 %v1263
      %1272 = vmatprep.subr.mxu0 0.0
      %1273 = vmatpush1.msra.mxu0 %v1264
      %1274 = vmatprep.subr.mxu0 0.0
      %1275 = vmatpush1.msra.mxu0 %v1265
      %1276 = vmatprep.subr.mxu0 0.0
      %1277 = vmatpush1.msra.mxu0 %v1266
      %1278 = vmatprep.subr.mxu0 0.0
      %1279 = vmatpush1.msra.mxu0 0.0
      %1280 = vmatprep.subr.mxu0 0.0
      %1281 = vmatpush1.msra.mxu0 0.0
      %1282 = vmatprep.subr.mxu0 0.0
      %1283 = vmatpush1.msra.mxu0 0.0
      %1284 = vmatprep.subr.mxu0 0.0
      %1285 = vmatpush1.msra.mxu0 0.0
      %1286 = vmatprep.subr.mxu0 0.0
      %1287 = vmatpush1.msra.mxu0 0.0
      %1288 = vmatprep.subr.mxu0 0.0
      %1289 = vmatpush1.msra.mxu0 0.0
      %1290 = vmatprep.subr.mxu0 0.0
      %1291 = vmatpush1.msra.mxu0 0.0
      %1292 = vmatprep.subr.mxu0 0.0
      %1293 = vmatpush1.msra.mxu0 0.0
      %1294 = vmatprep.subr.mxu0 0.0
      %1295 = vmatpush1.msra.mxu0 0.0
      %1296 = vmatprep.subr.mxu0 0.0
      %1297 = vmatpush1.msra.mxu0 0.0
      %1298 = vmatprep.subr.mxu0 0.0
      %1299 = vmatpush1.msra.mxu0 0.0
      %1300 = vmatprep.subr.mxu0 0.0
      %1301 = vmatpush1.msra.mxu0 0.0
      %1302 = vmatprep.subr.mxu0 0.0
      %1303 = vmatpush1.msra.mxu0 0.0
      %1304 = vmatprep.subr.mxu0 0.0
      %1305 = vmatpush1.msra.mxu0 0.0
      %1306 = vmatprep.subr.mxu0 0.0
      %1307 = vmatpush1.msra.mxu0 0.0
      %1308 = vmatprep.subr.mxu0 0.0
      %1309 = vmatpush1.msra.mxu0 0.0
      %1310 = vmatprep.subr.mxu0 0.0
      %1311 = vmatpush1.msra.mxu0 0.0
      %1312 = vmatprep.subr.mxu0 0.0
      %1313 = vmatpush1.msra.mxu0 0.0
      %1314 = vmatprep.subr.mxu0 0.0
      %1315 = vmatpush1.msra.mxu0 0.0
      %1316 = vmatprep.subr.mxu0 0.0
      %1317 = vmatpush1.msra.mxu0 0.0
      %1318 = vmatprep.subr.mxu0 0.0
      %1319 = vmatpush1.msra.mxu0 0.0
      %1320 = vmatprep.subr.mxu0 0.0
      %1321 = vmatpush1.msra.mxu0 0.0
      %1322 = vmatprep.subr.mxu0 0.0
      %1323 = vmatpush1.msra.mxu0 0.0
      %1324 = vmatprep.subr.mxu0 0.0
      %1325 = vmatpush1.msra.mxu0 0.0
      %1326 = vmatprep.subr.mxu0 0.0
      %1327 = vmatpush1.msra.mxu0 0.0
      %1328 = vmatprep.subr.mxu0 0.0
      %1329 = vmatpush1.msra.mxu0 0.0
      %1330 = vmatprep.subr.mxu0 0.0
      %1331 = vmatpush1.msra.mxu0 0.0
      %1332 = vmatprep.subr.mxu0 0.0
      %1333 = vmatpush1.msra.mxu0 0.0
      %1334 = vmatprep.mubr.f32.mxu0 0.0
      %1335 = vmatmul.mubr.f32.gmra.mrb[0].mxu0 %v1268
      %v1336 = vpop.f32.mrb[0].mxu0
      %v1337 = vadd.f32 0.0, %v1336
      %v1338 = vpop.f32.mrb[0].mxu0
      %1339 = vdwg.mxu0
      %v1340 = vadd.f32 %v1258, %v1337
      %s1341 = scalar_lea.vmem %s5, 2
      %v1342 = vld [vmem:[%s1341] sm:$0x1]
      %v1344 = vlaneseq
      %v1345 = vshrl.u32 %v1344, 7
      %v1346 = vsub.s32 0, %v1345
      %v1347 = vrot.slane %v1342, %v1346
      %v1349 = vadd.f32 %v1340, %v1347
      %v1350 = vadd.f32 %v602, %v1349
      %1351 = vst.msk [vmem:[#allocation2 + $0x5] sm:$0xff] %vm603, %v1350
      %v1352 = vld [vmem:[#allocation2 + $0x4] sm:$0xff]
      %s1353 = scalar_lea.vmem %s4, 288
      %v1354 = vld [vmem:[%s1353] sm:$0xff]
      %v1355 = vld [vmem:[%s1353 + $0x8] sm:$0xff]
      %v1356 = vld [vmem:[%s1353 + $0x10] sm:$0xff]
      %v1357 = vld [vmem:[%s1353 + $0x18] sm:$0xff]
      %v1358 = vld [vmem:[#allocation2 + $0x5] sm:$0xff]
      %s1359 = scalar_lea.vmem %s4, 320
      %v1360 = vld [vmem:[%s1359] sm:$0xff]
      %v1361 = vld [vmem:[%s1359 + $0x8] sm:$0xff]
      %v1362 = vld [vmem:[%s1359 + $0x10] sm:$0xff]
      %v1363 = vld [vmem:[%s1359 + $0x18] sm:$0xff]
      %v1365 = vsel %vm603, %v1358, 0
      %1367 = vmatprep.subr.mxu0 0.0
      %1368 = vmatpush1.msra.mxu0 %v1360
      %1369 = vmatprep.subr.mxu0 0.0
      %1370 = vmatpush1.msra.mxu0 %v1361
      %1371 = vmatprep.subr.mxu0 0.0
      %1372 = vmatpush1.msra.mxu0 %v1362
      %1373 = vmatprep.subr.mxu0 0.0
      %1374 = vmatpush1.msra.mxu0 %v1363
      %1375 = vmatprep.subr.mxu0 0.0
      %1376 = vmatpush1.msra.mxu0 0.0
      %1377 = vmatprep.subr.mxu0 0.0
      %1378 = vmatpush1.msra.mxu0 0.0
      %1379 = vmatprep.subr.mxu0 0.0
      %1380 = vmatpush1.msra.mxu0 0.0
      %1381 = vmatprep.subr.mxu0 0.0
      %1382 = vmatpush1.msra.mxu0 0.0
      %1383 = vmatprep.subr.mxu0 0.0
      %1384 = vmatpush1.msra.mxu0 0.0
      %1385 = vmatprep.subr.mxu0 0.0
      %1386 = vmatpush1.msra.mxu0 0.0
      %1387 = vmatprep.subr.mxu0 0.0
      %1388 = vmatpush1.msra.mxu0 0.0
      %1389 = vmatprep.subr.mxu0 0.0
      %1390 = vmatpush1.msra.mxu0 0.0
      %1391 = vmatprep.subr.mxu0 0.0
      %1392 = vmatpush1.msra.mxu0 0.0
      %1393 = vmatprep.subr.mxu0 0.0
      %1394 = vmatpush1.msra.mxu0 0.0
      %1395 = vmatprep.subr.mxu0 0.0
      %1396 = vmatpush1.msra.mxu0 0.0
      %1397 = vmatprep.subr.mxu0 0.0
      %1398 = vmatpush1.msra.mxu0 0.0
      %1399 = vmatprep.subr.mxu0 0.0
      %1400 = vmatpush1.msra.mxu0 0.0
      %1401 = vmatprep.subr.mxu0 0.0
      %1402 = vmatpush1.msra.mxu0 0.0
      %1403 = vmatprep.subr.mxu0 0.0
      %1404 = vmatpush1.msra.mxu0 0.0
      %1405 = vmatprep.subr.mxu0 0.0
      %1406 = vmatpush1.msra.mxu0 0.0
      %1407 = vmatprep.subr.mxu0 0.0
      %1408 = vmatpush1.msra.mxu0 0.0
      %1409 = vmatprep.subr.mxu0 0.0
      %1410 = vmatpush1.msra.mxu0 0.0
      %1411 = vmatprep.subr.mxu0 0.0
      %1412 = vmatpush1.msra.mxu0 0.0
      %1413 = vmatprep.subr.mxu0 0.0
      %1414 = vmatpush1.msra.mxu0 0.0
      %1415 = vmatprep.subr.mxu0 0.0
      %1416 = vmatpush1.msra.mxu0 0.0
      %1417 = vmatprep.subr.mxu0 0.0
      %1418 = vmatpush1.msra.mxu0 0.0
      %1419 = vmatprep.subr.mxu0 0.0
      %1420 = vmatpush1.msra.mxu0 0.0
      %1421 = vmatprep.subr.mxu0 0.0
      %1422 = vmatpush1.msra.mxu0 0.0
      %1423 = vmatprep.subr.mxu0 0.0
      %1424 = vmatpush1.msra.mxu0 0.0
      %1425 = vmatprep.subr.mxu0 0.0
      %1426 = vmatpush1.msra.mxu0 0.0
      %1427 = vmatprep.subr.mxu0 0.0
      %1428 = vmatpush1.msra.mxu0 0.0
      %1429 = vmatprep.subr.mxu0 0.0
      %1430 = vmatpush1.msra.mxu0 0.0
      %1431 = vmatprep.mubr.f32.mxu0 0.0
      %1432 = vmatmul.mubr.f32.gmra.mrb[0].mxu0 %v1365
      %v1433 = vpop.f32.mrb[0].mxu0
      %v1434 = vadd.f32 0.0, %v1433
      %v1435 = vpop.f32.mrb[0].mxu0
      %1436 = vdwg.mxu0
      %v1438 = vsel %vm603, %v1352, 0
      %1440 = vmatprep.subr.mxu0 0.0
      %1441 = vmatpush1.msra.mxu0 %v1354
      %1442 = vmatprep.subr.mxu0 0.0
      %1443 = vmatpush1.msra.mxu0 %v1355
      %1444 = vmatprep.subr.mxu0 0.0
      %1445 = vmatpush1.msra.mxu0 %v1356
      %1446 = vmatprep.subr.mxu0 0.0
      %1447 = vmatpush1.msra.mxu0 %v1357
      %1448 = vmatprep.subr.mxu0 0.0
      %1449 = vmatpush1.msra.mxu0 0.0
      %1450 = vmatprep.subr.mxu0 0.0
      %1451 = vmatpush1.msra.mxu0 0.0
      %1452 = vmatprep.subr.mxu0 0.0
      %1453 = vmatpush1.msra.mxu0 0.0
      %1454 = vmatprep.subr.mxu0 0.0
      %1455 = vmatpush1.msra.mxu0 0.0
      %1456 = vmatprep.subr.mxu0 0.0
      %1457 = vmatpush1.msra.mxu0 0.0
      %1458 = vmatprep.subr.mxu0 0.0
      %1459 = vmatpush1.msra.mxu0 0.0
      %1460 = vmatprep.subr.mxu0 0.0
      %1461 = vmatpush1.msra.mxu0 0.0
      %1462 = vmatprep.subr.mxu0 0.0
      %1463 = vmatpush1.msra.mxu0 0.0
      %1464 = vmatprep.subr.mxu0 0.0
      %1465 = vmatpush1.msra.mxu0 0.0
      %1466 = vmatprep.subr.mxu0 0.0
      %1467 = vmatpush1.msra.mxu0 0.0
      %1468 = vmatprep.subr.mxu0 0.0
      %1469 = vmatpush1.msra.mxu0 0.0
      %1470 = vmatprep.subr.mxu0 0.0
      %1471 = vmatpush1.msra.mxu0 0.0
      %1472 = vmatprep.subr.mxu0 0.0
      %1473 = vmatpush1.msra.mxu0 0.0
      %1474 = vmatprep.subr.mxu0 0.0
      %1475 = vmatpush1.msra.mxu0 0.0
      %1476 = vmatprep.subr.mxu0 0.0
      %1477 = vmatpush1.msra.mxu0 0.0
      %1478 = vmatprep.subr.mxu0 0.0
      %1479 = vmatpush1.msra.mxu0 0.0
      %1480 = vmatprep.subr.mxu0 0.0
      %1481 = vmatpush1.msra.mxu0 0.0
      %1482 = vmatprep.subr.mxu0 0.0
      %1483 = vmatpush1.msra.mxu0 0.0
      %1484 = vmatprep.subr.mxu0 0.0
      %1485 = vmatpush1.msra.mxu0 0.0
      %1486 = vmatprep.subr.mxu0 0.0
      %1487 = vmatpush1.msra.mxu0 0.0
      %1488 = vmatprep.subr.mxu0 0.0
      %1489 = vmatpush1.msra.mxu0 0.0
      %1490 = vmatprep.subr.mxu0 0.0
      %1491 = vmatpush1.msra.mxu0 0.0
      %1492 = vmatprep.subr.mxu0 0.0
      %1493 = vmatpush1.msra.mxu0 0.0
      %1494 = vmatprep.subr.mxu0 0.0
      %1495 = vmatpush1.msra.mxu0 0.0
      %1496 = vmatprep.subr.mxu0 0.0
      %1497 = vmatpush1.msra.mxu0 0.0
      %1498 = vmatprep.subr.mxu0 0.0
      %1499 = vmatpush1.msra.mxu0 0.0
      %1500 = vmatprep.subr.mxu0 0.0
      %1501 = vmatpush1.msra.mxu0 0.0
      %1502 = vmatprep.subr.mxu0 0.0
      %1503 = vmatpush1.msra.mxu0 0.0
      %1504 = vmatprep.mubr.f32.mxu0 0.0
      %1505 = vmatmul.mubr.f32.gmra.mrb[0].mxu0 %v1438
      %v1506 = vpop.f32.mrb[0].mxu0
      %v1507 = vadd.f32 %v1434, %v1506
      %v1508 = vpop.f32.mrb[0].mxu0
      %1509 = vdwg.mxu0
      %v1510 = vld [vmem:[#allocation2 + $0x6] sm:$0xff]
      %s1511 = scalar_lea.vmem %s4, 352
      %v1512 = vld [vmem:[%s1511] sm:$0xff]
      %v1513 = vld [vmem:[%s1511 + $0x8] sm:$0xff]
      %v1514 = vld [vmem:[%s1511 + $0x10] sm:$0xff]
      %v1515 = vld [vmem:[%s1511 + $0x18] sm:$0xff]
      %v1517 = vsel %vm603, %v1510, 0
      %1519 = vmatprep.subr.mxu0 0.0
      %1520 = vmatpush1.msra.mxu0 %v1512
      %1521 = vmatprep.subr.mxu0 0.0
      %1522 = vmatpush1.msra.mxu0 %v1513
      %1523 = vmatprep.subr.mxu0 0.0
      %1524 = vmatpush1.msra.mxu0 %v1514
      %1525 = vmatprep.subr.mxu0 0.0
      %1526 = vmatpush1.msra.mxu0 %v1515
      %1527 = vmatprep.subr.mxu0 0.0
      %1528 = vmatpush1.msra.mxu0 0.0
      %1529 = vmatprep.subr.mxu0 0.0
      %1530 = vmatpush1.msra.mxu0 0.0
      %1531 = vmatprep.subr.mxu0 0.0
      %1532 = vmatpush1.msra.mxu0 0.0
      %1533 = vmatprep.subr.mxu0 0.0
      %1534 = vmatpush1.msra.mxu0 0.0
      %1535 = vmatprep.subr.mxu0 0.0
      %1536 = vmatpush1.msra.mxu0 0.0
      %1537 = vmatprep.subr.mxu0 0.0
      %1538 = vmatpush1.msra.mxu0 0.0
      %1539 = vmatprep.subr.mxu0 0.0
      %1540 = vmatpush1.msra.mxu0 0.0
      %1541 = vmatprep.subr.mxu0 0.0
      %1542 = vmatpush1.msra.mxu0 0.0
      %1543 = vmatprep.subr.mxu0 0.0
      %1544 = vmatpush1.msra.mxu0 0.0
      %1545 = vmatprep.subr.mxu0 0.0
      %1546 = vmatpush1.msra.mxu0 0.0
      %1547 = vmatprep.subr.mxu0 0.0
      %1548 = vmatpush1.msra.mxu0 0.0
      %1549 = vmatprep.subr.mxu0 0.0
      %1550 = vmatpush1.msra.mxu0 0.0
      %1551 = vmatprep.subr.mxu0 0.0
      %1552 = vmatpush1.msra.mxu0 0.0
      %1553 = vmatprep.subr.mxu0 0.0
      %1554 = vmatpush1.msra.mxu0 0.0
      %1555 = vmatprep.subr.mxu0 0.0
      %1556 = vmatpush1.msra.mxu0 0.0
      %1557 = vmatprep.subr.mxu0 0.0
      %1558 = vmatpush1.msra.mxu0 0.0
      %1559 = vmatprep.subr.mxu0 0.0
      %1560 = vmatpush1.msra.mxu0 0.0
      %1561 = vmatprep.subr.mxu0 0.0
      %1562 = vmatpush1.msra.mxu0 0.0
      %1563 = vmatprep.subr.mxu0 0.0
      %1564 = vmatpush1.msra.mxu0 0.0
      %1565 = vmatprep.subr.mxu0 0.0
      %1566 = vmatpush1.msra.mxu0 0.0
      %1567 = vmatprep.subr.mxu0 0.0
      %1568 = vmatpush1.msra.mxu0 0.0
      %1569 = vmatprep.subr.mxu0 0.0
      %1570 = vmatpush1.msra.mxu0 0.0
      %1571 = vmatprep.subr.mxu0 0.0
      %1572 = vmatpush1.msra.mxu0 0.0
      %1573 = vmatprep.subr.mxu0 0.0
      %1574 = vmatpush1.msra.mxu0 0.0
      %1575 = vmatprep.subr.mxu0 0.0
      %1576 = vmatpush1.msra.mxu0 0.0
      %1577 = vmatprep.subr.mxu0 0.0
      %1578 = vmatpush1.msra.mxu0 0.0
      %1579 = vmatprep.subr.mxu0 0.0
      %1580 = vmatpush1.msra.mxu0 0.0
      %1581 = vmatprep.subr.mxu0 0.0
      %1582 = vmatpush1.msra.mxu0 0.0
      %1583 = vmatprep.mubr.f32.mxu0 0.0
      %1584 = vmatmul.mubr.f32.gmra.mrb[0].mxu0 %v1517
      %v1585 = vpop.f32.mrb[0].mxu0
      %v1586 = vadd.f32 0.0, %v1585
      %v1587 = vpop.f32.mrb[0].mxu0
      %1588 = vdwg.mxu0
      %v1589 = vadd.f32 %v1507, %v1586
      %s1590 = scalar_lea.vmem %s5, 3
      %v1591 = vld [vmem:[%s1590] sm:$0x1]
      %v1593 = vlaneseq
      %v1594 = vshrl.u32 %v1593, 7
      %v1595 = vsub.s32 0, %v1594
      %v1596 = vrot.slane %v1591, %v1595
      %v1598 = vadd.f32 %v1589, %v1596
      %1599 = vst.msk [vmem:[#allocation2 + $0x5] sm:$0xff] %vm603, %v1598
      %v1600 = vld [vmem:[#allocation2 + $0x2] sm:$0xff]
      %s1601 = scalar_lea.vmem %s4, 384
      %v1602 = vld [vmem:[%s1601] sm:$0xff]
      %v1603 = vld [vmem:[%s1601 + $0x8] sm:$0xff]
      %v1604 = vld [vmem:[%s1601 + $0x10] sm:$0xff]
      %v1605 = vld [vmem:[%s1601 + $0x18] sm:$0xff]
      %v1606 = vld [vmem:[#allocation2 + $0x5] sm:$0xff]
      %s1607 = scalar_lea.vmem %s4, 416
      %v1608 = vld [vmem:[%s1607] sm:$0xff]
      %v1609 = vld [vmem:[%s1607 + $0x8] sm:$0xff]
      %v1610 = vld [vmem:[%s1607 + $0x10] sm:$0xff]
      %v1611 = vld [vmem:[%s1607 + $0x18] sm:$0xff]
      %v1613 = vsel %vm603, %v1606, 0
      %1615 = vmatprep.subr.mxu0 0.0
      %1616 = vmatpush1.msra.mxu0 %v1608
      %1617 = vmatprep.subr.mxu0 0.0
      %1618 = vmatpush1.msra.mxu0 %v1609
      %1619 = vmatprep.subr.mxu0 0.0
      %1620 = vmatpush1.msra.mxu0 %v1610
      %1621 = vmatprep.subr.mxu0 0.0
      %1622 = vmatpush1.msra.mxu0 %v1611
      %1623 = vmatprep.subr.mxu0 0.0
      %1624 = vmatpush1.msra.mxu0 0.0
      %1625 = vmatprep.subr.mxu0 0.0
      %1626 = vmatpush1.msra.mxu0 0.0
      %1627 = vmatprep.subr.mxu0 0.0
      %1628 = vmatpush1.msra.mxu0 0.0
      %1629 = vmatprep.subr.mxu0 0.0
      %1630 = vmatpush1.msra.mxu0 0.0
      %1631 = vmatprep.subr.mxu0 0.0
      %1632 = vmatpush1.msra.mxu0 0.0
      %1633 = vmatprep.subr.mxu0 0.0
      %1634 = vmatpush1.msra.mxu0 0.0
      %1635 = vmatprep.subr.mxu0 0.0
      %1636 = vmatpush1.msra.mxu0 0.0
      %1637 = vmatprep.subr.mxu0 0.0
      %1638 = vmatpush1.msra.mxu0 0.0
      %1639 = vmatprep.subr.mxu0 0.0
      %1640 = vmatpush1.msra.mxu0 0.0
      %1641 = vmatprep.subr.mxu0 0.0
      %1642 = vmatpush1.msra.mxu0 0.0
      %1643 = vmatprep.subr.mxu0 0.0
      %1644 = vmatpush1.msra.mxu0 0.0
      %1645 = vmatprep.subr.mxu0 0.0
      %1646 = vmatpush1.msra.mxu0 0.0
      %1647 = vmatprep.subr.mxu0 0.0
      %1648 = vmatpush1.msra.mxu0 0.0
      %1649 = vmatprep.subr.mxu0 0.0
      %1650 = vmatpush1.msra.mxu0 0.0
      %1651 = vmatprep.subr.mxu0 0.0
      %1652 = vmatpush1.msra.mxu0 0.0
      %1653 = vmatprep.subr.mxu0 0.0
      %1654 = vmatpush1.msra.mxu0 0.0
      %1655 = vmatprep.subr.mxu0 0.0
      %1656 = vmatpush1.msra.mxu0 0.0
      %1657 = vmatprep.subr.mxu0 0.0
      %1658 = vmatpush1.msra.mxu0 0.0
      %1659 = vmatprep.subr.mxu0 0.0
      %1660 = vmatpush1.msra.mxu0 0.0
      %1661 = vmatprep.subr.mxu0 0.0
      %1662 = vmatpush1.msra.mxu0 0.0
      %1663 = vmatprep.subr.mxu0 0.0
      %1664 = vmatpush1.msra.mxu0 0.0
      %1665 = vmatprep.subr.mxu0 0.0
      %1666 = vmatpush1.msra.mxu0 0.0
      %1667 = vmatprep.subr.mxu0 0.0
      %1668 = vmatpush1.msra.mxu0 0.0
      %1669 = vmatprep.subr.mxu0 0.0
      %1670 = vmatpush1.msra.mxu0 0.0
      %1671 = vmatprep.subr.mxu0 0.0
      %1672 = vmatpush1.msra.mxu0 0.0
      %1673 = vmatprep.subr.mxu0 0.0
      %1674 = vmatpush1.msra.mxu0 0.0
      %1675 = vmatprep.subr.mxu0 0.0
      %1676 = vmatpush1.msra.mxu0 0.0
      %1677 = vmatprep.subr.mxu0 0.0
      %1678 = vmatpush1.msra.mxu0 0.0
      %1679 = vmatprep.mubr.f32.mxu0 0.0
      %1680 = vmatmul.mubr.f32.gmra.mrb[0].mxu0 %v1613
      %v1681 = vpop.f32.mrb[0].mxu0
      %v1682 = vadd.f32 0.0, %v1681
      %v1683 = vpop.f32.mrb[0].mxu0
      %1684 = vdwg.mxu0
      %v1686 = vsel %vm603, %v1600, 0
      %1688 = vmatprep.subr.mxu0 0.0
      %1689 = vmatpush1.msra.mxu0 %v1602
      %1690 = vmatprep.subr.mxu0 0.0
      %1691 = vmatpush1.msra.mxu0 %v1603
      %1692 = vmatprep.subr.mxu0 0.0
      %1693 = vmatpush1.msra.mxu0 %v1604
      %1694 = vmatprep.subr.mxu0 0.0
      %1695 = vmatpush1.msra.mxu0 %v1605
      %1696 = vmatprep.subr.mxu0 0.0
      %1697 = vmatpush1.msra.mxu0 0.0
      %1698 = vmatprep.subr.mxu0 0.0
      %1699 = vmatpush1.msra.mxu0 0.0
      %1700 = vmatprep.subr.mxu0 0.0
      %1701 = vmatpush1.msra.mxu0 0.0
      %1702 = vmatprep.subr.mxu0 0.0
      %1703 = vmatpush1.msra.mxu0 0.0
      %1704 = vmatprep.subr.mxu0 0.0
      %1705 = vmatpush1.msra.mxu0 0.0
      %1706 = vmatprep.subr.mxu0 0.0
      %1707 = vmatpush1.msra.mxu0 0.0
      %1708 = vmatprep.subr.mxu0 0.0
      %1709 = vmatpush1.msra.mxu0 0.0
      %1710 = vmatprep.subr.mxu0 0.0
      %1711 = vmatpush1.msra.mxu0 0.0
      %1712 = vmatprep.subr.mxu0 0.0
      %1713 = vmatpush1.msra.mxu0 0.0
      %1714 = vmatprep.subr.mxu0 0.0
      %1715 = vmatpush1.msra.mxu0 0.0
      %1716 = vmatprep.subr.mxu0 0.0
      %1717 = vmatpush1.msra.mxu0 0.0
      %1718 = vmatprep.subr.mxu0 0.0
      %1719 = vmatpush1.msra.mxu0 0.0
      %1720 = vmatprep.subr.mxu0 0.0
      %1721 = vmatpush1.msra.mxu0 0.0
      %1722 = vmatprep.subr.mxu0 0.0
      %1723 = vmatpush1.msra.mxu0 0.0
      %1724 = vmatprep.subr.mxu0 0.0
      %1725 = vmatpush1.msra.mxu0 0.0
      %1726 = vmatprep.subr.mxu0 0.0
      %1727 = vmatpush1.msra.mxu0 0.0
      %1728 = vmatprep.subr.mxu0 0.0
      %1729 = vmatpush1.msra.mxu0 0.0
      %1730 = vmatprep.subr.mxu0 0.0
      %1731 = vmatpush1.msra.mxu0 0.0
      %1732 = vmatprep.subr.mxu0 0.0
      %1733 = vmatpush1.msra.mxu0 0.0
      %1734 = vmatprep.subr.mxu0 0.0
      %1735 = vmatpush1.msra.mxu0 0.0
      %1736 = vmatprep.subr.mxu0 0.0
      %1737 = vmatpush1.msra.mxu0 0.0
      %1738 = vmatprep.subr.mxu0 0.0
      %1739 = vmatpush1.msra.mxu0 0.0
      %1740 = vmatprep.subr.mxu0 0.0
      %1741 = vmatpush1.msra.mxu0 0.0
      %1742 = vmatprep.subr.mxu0 0.0
      %1743 = vmatpush1.msra.mxu0 0.0
      %1744 = vmatprep.subr.mxu0 0.0
      %1745 = vmatpush1.msra.mxu0 0.0
      %1746 = vmatprep.subr.mxu0 0.0
      %1747 = vmatpush1.msra.mxu0 0.0
      %1748 = vmatprep.subr.mxu0 0.0
      %1749 = vmatpush1.msra.mxu0 0.0
      %1750 = vmatprep.subr.mxu0 0.0
      %1751 = vmatpush1.msra.mxu0 0.0
      %1752 = vmatprep.mubr.f32.mxu0 0.0
      %1753 = vmatmul.mubr.f32.gmra.mrb[0].mxu0 %v1686
      %v1754 = vpop.f32.mrb[0].mxu0
      %v1755 = vadd.f32 %v1682, %v1754
      %v1756 = vpop.f32.mrb[0].mxu0
      %1757 = vdwg.mxu0
      %v1758 = vld [vmem:[#allocation2 + $0x8] sm:$0xff]
      %s1759 = scalar_lea.vmem %s4, 448
      %v1760 = vld [vmem:[%s1759] sm:$0xff]
      %v1761 = vld [vmem:[%s1759 + $0x8] sm:$0xff]
      %v1762 = vld [vmem:[%s1759 + $0x10] sm:$0xff]
      %v1763 = vld [vmem:[%s1759 + $0x18] sm:$0xff]
      %v1765 = vsel %vm603, %v1758, 0
      %1767 = vmatprep.subr.mxu0 0.0
      %1768 = vmatpush1.msra.mxu0 %v1760
      %1769 = vmatprep.subr.mxu0 0.0
      %1770 = vmatpush1.msra.mxu0 %v1761
      %1771 = vmatprep.subr.mxu0 0.0
      %1772 = vmatpush1.msra.mxu0 %v1762
      %1773 = vmatprep.subr.mxu0 0.0
      %1774 = vmatpush1.msra.mxu0 %v1763
      %1775 = vmatprep.subr.mxu0 0.0
      %1776 = vmatpush1.msra.mxu0 0.0
      %1777 = vmatprep.subr.mxu0 0.0
      %1778 = vmatpush1.msra.mxu0 0.0
      %1779 = vmatprep.subr.mxu0 0.0
      %1780 = vmatpush1.msra.mxu0 0.0
      %1781 = vmatprep.subr.mxu0 0.0
      %1782 = vmatpush1.msra.mxu0 0.0
      %1783 = vmatprep.subr.mxu0 0.0
      %1784 = vmatpush1.msra.mxu0 0.0
      %1785 = vmatprep.subr.mxu0 0.0
      %1786 = vmatpush1.msra.mxu0 0.0
      %1787 = vmatprep.subr.mxu0 0.0
      %1788 = vmatpush1.msra.mxu0 0.0
      %1789 = vmatprep.subr.mxu0 0.0
      %1790 = vmatpush1.msra.mxu0 0.0
      %1791 = vmatprep.subr.mxu0 0.0
      %1792 = vmatpush1.msra.mxu0 0.0
      %1793 = vmatprep.subr.mxu0 0.0
      %1794 = vmatpush1.msra.mxu0 0.0
      %1795 = vmatprep.subr.mxu0 0.0
      %1796 = vmatpush1.msra.mxu0 0.0
      %1797 = vmatprep.subr.mxu0 0.0
      %1798 = vmatpush1.msra.mxu0 0.0
      %1799 = vmatprep.subr.mxu0 0.0
      %1800 = vmatpush1.msra.mxu0 0.0
      %1801 = vmatprep.subr.mxu0 0.0
      %1802 = vmatpush1.msra.mxu0 0.0
      %1803 = vmatprep.subr.mxu0 0.0
      %1804 = vmatpush1.msra.mxu0 0.0
      %1805 = vmatprep.subr.mxu0 0.0
      %1806 = vmatpush1.msra.mxu0 0.0
      %1807 = vmatprep.subr.mxu0 0.0
      %1808 = vmatpush1.msra.mxu0 0.0
      %1809 = vmatprep.subr.mxu0 0.0
      %1810 = vmatpush1.msra.mxu0 0.0
      %1811 = vmatprep.subr.mxu0 0.0
      %1812 = vmatpush1.msra.mxu0 0.0
      %1813 = vmatprep.subr.mxu0 0.0
      %1814 = vmatpush1.msra.mxu0 0.0
      %1815 = vmatprep.subr.mxu0 0.0
      %1816 = vmatpush1.msra.mxu0 0.0
      %1817 = vmatprep.subr.mxu0 0.0
      %1818 = vmatpush1.msra.mxu0 0.0
      %1819 = vmatprep.subr.mxu0 0.0
      %1820 = vmatpush1.msra.mxu0 0.0
      %1821 = vmatprep.subr.mxu0 0.0
      %1822 = vmatpush1.msra.mxu0 0.0
      %1823 = vmatprep.subr.mxu0 0.0
      %1824 = vmatpush1.msra.mxu0 0.0
      %1825 = vmatprep.subr.mxu0 0.0
      %1826 = vmatpush1.msra.mxu0 0.0
      %1827 = vmatprep.subr.mxu0 0.0
      %1828 = vmatpush1.msra.mxu0 0.0
      %1829 = vmatprep.subr.mxu0 0.0
      %1830 = vmatpush1.msra.mxu0 0.0
      %1831 = vmatprep.mubr.f32.mxu0 0.0
      %1832 = vmatmul.mubr.f32.gmra.mrb[0].mxu0 %v1765
      %v1833 = vpop.f32.mrb[0].mxu0
      %v1834 = vadd.f32 0.0, %v1833
      %v1835 = vpop.f32.mrb[0].mxu0
      %1836 = vdwg.mxu0
      %v1837 = vadd.f32 %v1755, %v1834
      %s1838 = scalar_lea.vmem %s5, 4
      %v1839 = vld [vmem:[%s1838] sm:$0x1]
      %v1841 = vlaneseq
      %v1842 = vshrl.u32 %v1841, 7
      %v1843 = vsub.s32 0, %v1842
      %v1844 = vrot.slane %v1839, %v1843
      %v1846 = vadd.f32 %v1837, %v1844
      %1847 = vst.msk [vmem:[#allocation2 + $0x5] sm:$0xff] %vm603, %v1846
      %v1848 = vld [vmem:[#allocation2] sm:$0xff]
      %s1849 = scalar_lea.vmem %s4, 480
      %v1850 = vld [vmem:[%s1849] sm:$0xff]
      %v1851 = vld [vmem:[%s1849 + $0x8] sm:$0xff]
      %v1852 = vld [vmem:[%s1849 + $0x10] sm:$0xff]
      %v1853 = vld [vmem:[%s1849 + $0x18] sm:$0xff]
      %v1854 = vld [vmem:[#allocation2 + $0x5] sm:$0xff]
      %s1855 = scalar_lea.vmem %s4, 512
      %v1856 = vld [vmem:[%s1855] sm:$0xff]
      %v1857 = vld [vmem:[%s1855 + $0x8] sm:$0xff]
      %v1858 = vld [vmem:[%s1855 + $0x10] sm:$0xff]
      %v1859 = vld [vmem:[%s1855 + $0x18] sm:$0xff]
      %v1861 = vsel %vm603, %v1854, 0
      %1863 = vmatprep.subr.mxu0 0.0
      %1864 = vmatpush1.msra.mxu0 %v1856
      %1865 = vmatprep.subr.mxu0 0.0
      %1866 = vmatpush1.msra.mxu0 %v1857
      %1867 = vmatprep.subr.mxu0 0.0
      %1868 = vmatpush1.msra.mxu0 %v1858
      %1869 = vmatprep.subr.mxu0 0.0
      %1870 = vmatpush1.msra.mxu0 %v1859
      %1871 = vmatprep.subr.mxu0 0.0
      %1872 = vmatpush1.msra.mxu0 0.0
      %1873 = vmatprep.subr.mxu0 0.0
      %1874 = vmatpush1.msra.mxu0 0.0
      %1875 = vmatprep.subr.mxu0 0.0
      %1876 = vmatpush1.msra.mxu0 0.0
      %1877 = vmatprep.subr.mxu0 0.0
      %1878 = vmatpush1.msra.mxu0 0.0
      %1879 = vmatprep.subr.mxu0 0.0
      %1880 = vmatpush1.msra.mxu0 0.0
      %1881 = vmatprep.subr.mxu0 0.0
      %1882 = vmatpush1.msra.mxu0 0.0
      %1883 = vmatprep.subr.mxu0 0.0
      %1884 = vmatpush1.msra.mxu0 0.0
      %1885 = vmatprep.subr.mxu0 0.0
      %1886 = vmatpush1.msra.mxu0 0.0
      %1887 = vmatprep.subr.mxu0 0.0
      %1888 = vmatpush1.msra.mxu0 0.0
      %1889 = vmatprep.subr.mxu0 0.0
      %1890 = vmatpush1.msra.mxu0 0.0
      %1891 = vmatprep.subr.mxu0 0.0
      %1892 = vmatpush1.msra.mxu0 0.0
      %1893 = vmatprep.subr.mxu0 0.0
      %1894 = vmatpush1.msra.mxu0 0.0
      %1895 = vmatprep.subr.mxu0 0.0
      %1896 = vmatpush1.msra.mxu0 0.0
      %1897 = vmatprep.subr.mxu0 0.0
      %1898 = vmatpush1.msra.mxu0 0.0
      %1899 = vmatprep.subr.mxu0 0.0
      %1900 = vmatpush1.msra.mxu0 0.0
      %1901 = vmatprep.subr.mxu0 0.0
      %1902 = vmatpush1.msra.mxu0 0.0
      %1903 = vmatprep.subr.mxu0 0.0
      %1904 = vmatpush1.msra.mxu0 0.0
      %1905 = vmatprep.subr.mxu0 0.0
      %1906 = vmatpush1.msra.mxu0 0.0
      %1907 = vmatprep.subr.mxu0 0.0
      %1908 = vmatpush1.msra.mxu0 0.0
      %1909 = vmatprep.subr.mxu0 0.0
      %1910 = vmatpush1.msra.mxu0 0.0
      %1911 = vmatprep.subr.mxu0 0.0
      %1912 = vmatpush1.msra.mxu0 0.0
      %1913 = vmatprep.subr.mxu0 0.0
      %1914 = vmatpush1.msra.mxu0 0.0
      %1915 = vmatprep.subr.mxu0 0.0
      %1916 = vmatpush1.msra.mxu0 0.0
      %1917 = vmatprep.subr.mxu0 0.0
      %1918 = vmatpush1.msra.mxu0 0.0
      %1919 = vmatprep.subr.mxu0 0.0
      %1920 = vmatpush1.msra.mxu0 0.0
      %1921 = vmatprep.subr.mxu0 0.0
      %1922 = vmatpush1.msra.mxu0 0.0
      %1923 = vmatprep.subr.mxu0 0.0
      %1924 = vmatpush1.msra.mxu0 0.0
      %1925 = vmatprep.subr.mxu0 0.0
      %1926 = vmatpush1.msra.mxu0 0.0
      %1927 = vmatprep.mubr.f32.mxu0 0.0
      %1928 = vmatmul.mubr.f32.gmra.mrb[0].mxu0 %v1861
      %v1929 = vpop.f32.mrb[0].mxu0
      %v1930 = vadd.f32 0.0, %v1929
      %v1931 = vpop.f32.mrb[0].mxu0
      %1932 = vdwg.mxu0
      %v1934 = vsel %vm603, %v1848, 0
      %1936 = vmatprep.subr.mxu0 0.0
      %1937 = vmatpush1.msra.mxu0 %v1850
      %1938 = vmatprep.subr.mxu0 0.0
      %1939 = vmatpush1.msra.mxu0 %v1851
      %1940 = vmatprep.subr.mxu0 0.0
      %1941 = vmatpush1.msra.mxu0 %v1852
      %1942 = vmatprep.subr.mxu0 0.0
      %1943 = vmatpush1.msra.mxu0 %v1853
      %1944 = vmatprep.subr.mxu0 0.0
      %1945 = vmatpush1.msra.mxu0 0.0
      %1946 = vmatprep.subr.mxu0 0.0
      %1947 = vmatpush1.msra.mxu0 0.0
      %1948 = vmatprep.subr.mxu0 0.0
      %1949 = vmatpush1.msra.mxu0 0.0
      %1950 = vmatprep.subr.mxu0 0.0
      %1951 = vmatpush1.msra.mxu0 0.0
      %1952 = vmatprep.subr.mxu0 0.0
      %1953 = vmatpush1.msra.mxu0 0.0
      %1954 = vmatprep.subr.mxu0 0.0
      %1955 = vmatpush1.msra.mxu0 0.0
      %1956 = vmatprep.subr.mxu0 0.0
      %1957 = vmatpush1.msra.mxu0 0.0
      %1958 = vmatprep.subr.mxu0 0.0
      %1959 = vmatpush1.msra.mxu0 0.0
      %1960 = vmatprep.subr.mxu0 0.0
      %1961 = vmatpush1.msra.mxu0 0.0
      %1962 = vmatprep.subr.mxu0 0.0
      %1963 = vmatpush1.msra.mxu0 0.0
      %1964 = vmatprep.subr.mxu0 0.0
      %1965 = vmatpush1.msra.mxu0 0.0
      %1966 = vmatprep.subr.mxu0 0.0
      %1967 = vmatpush1.msra.mxu0 0.0
      %1968 = vmatprep.subr.mxu0 0.0
      %1969 = vmatpush1.msra.mxu0 0.0
      %1970 = vmatprep.subr.mxu0 0.0
      %1971 = vmatpush1.msra.mxu0 0.0
      %1972 = vmatprep.subr.mxu0 0.0
      %1973 = vmatpush1.msra.mxu0 0.0
      %1974 = vmatprep.subr.mxu0 0.0
      %1975 = vmatpush1.msra.mxu0 0.0
      %1976 = vmatprep.subr.mxu0 0.0
      %1977 = vmatpush1.msra.mxu0 0.0
      %1978 = vmatprep.subr.mxu0 0.0
      %1979 = vmatpush1.msra.mxu0 0.0
      %1980 = vmatprep.subr.mxu0 0.0
      %1981 = vmatpush1.msra.mxu0 0.0
      %1982 = vmatprep.subr.mxu0 0.0
      %1983 = vmatpush1.msra.mxu0 0.0
      %1984 = vmatprep.subr.mxu0 0.0
      %1985 = vmatpush1.msra.mxu0 0.0
      %1986 = vmatprep.subr.mxu0 0.0
      %1987 = vmatpush1.msra.mxu0 0.0
      %1988 = vmatprep.subr.mxu0 0.0
      %1989 = vmatpush1.msra.mxu0 0.0
      %1990 = vmatprep.subr.mxu0 0.0
      %1991 = vmatpush1.msra.mxu0 0.0
      %1992 = vmatprep.subr.mxu0 0.0
      %1993 = vmatpush1.msra.mxu0 0.0
      %1994 = vmatprep.subr.mxu0 0.0
      %1995 = vmatpush1.msra.mxu0 0.0
      %1996 = vmatprep.subr.mxu0 0.0
      %1997 = vmatpush1.msra.mxu0 0.0
      %1998 = vmatprep.subr.mxu0 0.0
      %1999 = vmatpush1.msra.mxu0 0.0
      %2000 = vmatprep.mubr.f32.mxu0 0.0
      %2001 = vmatmul.mubr.f32.gmra.mrb[0].mxu0 %v1934
      %v2002 = vpop.f32.mrb[0].mxu0
      %v2003 = vadd.f32 %v1930, %v2002
      %v2004 = vpop.f32.mrb[0].mxu0
      %2005 = vdwg.mxu0
      %v2006 = vld [vmem:[#allocation2 + $0xa] sm:$0xff]
      %s2007 = scalar_lea.vmem %s4, 544
      %v2008 = vld [vmem:[%s2007] sm:$0xff]
      %v2009 = vld [vmem:[%s2007 + $0x8] sm:$0xff]
      %v2010 = vld [vmem:[%s2007 + $0x10] sm:$0xff]
      %v2011 = vld [vmem:[%s2007 + $0x18] sm:$0xff]
      %v2013 = vsel %vm603, %v2006, 0
      %2015 = vmatprep.subr.mxu0 0.0
      %2016 = vmatpush1.msra.mxu0 %v2008
      %2017 = vmatprep.subr.mxu0 0.0
      %2018 = vmatpush1.msra.mxu0 %v2009
      %2019 = vmatprep.subr.mxu0 0.0
      %2020 = vmatpush1.msra.mxu0 %v2010
      %2021 = vmatprep.subr.mxu0 0.0
      %2022 = vmatpush1.msra.mxu0 %v2011
      %2023 = vmatprep.subr.mxu0 0.0
      %2024 = vmatpush1.msra.mxu0 0.0
      %2025 = vmatprep.subr.mxu0 0.0
      %2026 = vmatpush1.msra.mxu0 0.0
      %2027 = vmatprep.subr.mxu0 0.0
      %2028 = vmatpush1.msra.mxu0 0.0
      %2029 = vmatprep.subr.mxu0 0.0
      %2030 = vmatpush1.msra.mxu0 0.0
      %2031 = vmatprep.subr.mxu0 0.0
      %2032 = vmatpush1.msra.mxu0 0.0
      %2033 = vmatprep.subr.mxu0 0.0
      %2034 = vmatpush1.msra.mxu0 0.0
      %2035 = vmatprep.subr.mxu0 0.0
      %2036 = vmatpush1.msra.mxu0 0.0
      %2037 = vmatprep.subr.mxu0 0.0
      %2038 = vmatpush1.msra.mxu0 0.0
      %2039 = vmatprep.subr.mxu0 0.0
      %2040 = vmatpush1.msra.mxu0 0.0
      %2041 = vmatprep.subr.mxu0 0.0
      %2042 = vmatpush1.msra.mxu0 0.0
      %2043 = vmatprep.subr.mxu0 0.0
      %2044 = vmatpush1.msra.mxu0 0.0
      %2045 = vmatprep.subr.mxu0 0.0
      %2046 = vmatpush1.msra.mxu0 0.0
      %2047 = vmatprep.subr.mxu0 0.0
      %2048 = vmatpush1.msra.mxu0 0.0
      %2049 = vmatprep.subr.mxu0 0.0
      %2050 = vmatpush1.msra.mxu0 0.0
      %2051 = vmatprep.subr.mxu0 0.0
      %2052 = vmatpush1.msra.mxu0 0.0
      %2053 = vmatprep.subr.mxu0 0.0
      %2054 = vmatpush1.msra.mxu0 0.0
      %2055 = vmatprep.subr.mxu0 0.0
      %2056 = vmatpush1.msra.mxu0 0.0
      %2057 = vmatprep.subr.mxu0 0.0
      %2058 = vmatpush1.msra.mxu0 0.0
      %2059 = vmatprep.subr.mxu0 0.0
      %2060 = vmatpush1.msra.mxu0 0.0
      %2061 = vmatprep.subr.mxu0 0.0
      %2062 = vmatpush1.msra.mxu0 0.0
      %2063 = vmatprep.subr.mxu0 0.0
      %2064 = vmatpush1.msra.mxu0 0.0
      %2065 = vmatprep.subr.mxu0 0.0
      %2066 = vmatpush1.msra.mxu0 0.0
      %2067 = vmatprep.subr.mxu0 0.0
      %2068 = vmatpush1.msra.mxu0 0.0
      %2069 = vmatprep.subr.mxu0 0.0
      %2070 = vmatpush1.msra.mxu0 0.0
      %2071 = vmatprep.subr.mxu0 0.0
      %2072 = vmatpush1.msra.mxu0 0.0
      %2073 = vmatprep.subr.mxu0 0.0
      %2074 = vmatpush1.msra.mxu0 0.0
      %2075 = vmatprep.subr.mxu0 0.0
      %2076 = vmatpush1.msra.mxu0 0.0
      %2077 = vmatprep.subr.mxu0 0.0
      %2078 = vmatpush1.msra.mxu0 0.0
      %2079 = vmatprep.mubr.f32.mxu0 0.0
      %2080 = vmatmul.mubr.f32.gmra.mrb[0].mxu0 %v2013
      %v2081 = vpop.f32.mrb[0].mxu0
      %v2082 = vadd.f32 0.0, %v2081
      %v2083 = vpop.f32.mrb[0].mxu0
      %2084 = vdwg.mxu0
      %v2085 = vadd.f32 %v2003, %v2082
      %s2086 = scalar_lea.vmem %s5, 5
      %v2087 = vld [vmem:[%s2086] sm:$0x1]
      %v2089 = vlaneseq
      %v2090 = vshrl.u32 %v2089, 7
      %v2091 = vsub.s32 0, %v2090
      %v2092 = vrot.slane %v2087, %v2091
      %v2094 = vadd.f32 %v2085, %v2092
      %v2095 = vadd.f32 %v602, %v2094
      %2096 = vst.msk [vmem:[#allocation2 + $0x5] sm:$0xff] %vm603, %v2095
      %v2097 = vld [vmem:[#allocation2 + $0x4] sm:$0xff]
      %s2098 = scalar_lea.vmem %s4, 576
      %v2099 = vld [vmem:[%s2098] sm:$0xff]
      %v2100 = vld [vmem:[%s2098 + $0x8] sm:$0xff]
      %v2101 = vld [vmem:[%s2098 + $0x10] sm:$0xff]
      %v2102 = vld [vmem:[%s2098 + $0x18] sm:$0xff]
      %v2103 = vld [vmem:[#allocation2 + $0x5] sm:$0xff]
      %s2104 = scalar_lea.vmem %s4, 608
      %v2105 = vld [vmem:[%s2104] sm:$0xff]
      %v2106 = vld [vmem:[%s2104 + $0x8] sm:$0xff]
      %v2107 = vld [vmem:[%s2104 + $0x10] sm:$0xff]
      %v2108 = vld [vmem:[%s2104 + $0x18] sm:$0xff]
      %v2110 = vsel %vm603, %v2103, 0
      %2112 = vmatprep.subr.mxu0 0.0
      %2113 = vmatpush1.msra.mxu0 %v2105
      %2114 = vmatprep.subr.mxu0 0.0
      %2115 = vmatpush1.msra.mxu0 %v2106
      %2116 = vmatprep.subr.mxu0 0.0
      %2117 = vmatpush1.msra.mxu0 %v2107
      %2118 = vmatprep.subr.mxu0 0.0
      %2119 = vmatpush1.msra.mxu0 %v2108
      %2120 = vmatprep.subr.mxu0 0.0
      %2121 = vmatpush1.msra.mxu0 0.0
      %2122 = vmatprep.subr.mxu0 0.0
      %2123 = vmatpush1.msra.mxu0 0.0
      %2124 = vmatprep.subr.mxu0 0.0
      %2125 = vmatpush1.msra.mxu0 0.0
      %2126 = vmatprep.subr.mxu0 0.0
      %2127 = vmatpush1.msra.mxu0 0.0
      %2128 = vmatprep.subr.mxu0 0.0
      %2129 = vmatpush1.msra.mxu0 0.0
      %2130 = vmatprep.subr.mxu0 0.0
      %2131 = vmatpush1.msra.mxu0 0.0
      %2132 = vmatprep.subr.mxu0 0.0
      %2133 = vmatpush1.msra.mxu0 0.0
      %2134 = vmatprep.subr.mxu0 0.0
      %2135 = vmatpush1.msra.mxu0 0.0
      %2136 = vmatprep.subr.mxu0 0.0
      %2137 = vmatpush1.msra.mxu0 0.0
      %2138 = vmatprep.subr.mxu0 0.0
      %2139 = vmatpush1.msra.mxu0 0.0
      %2140 = vmatprep.subr.mxu0 0.0
      %2141 = vmatpush1.msra.mxu0 0.0
      %2142 = vmatprep.subr.mxu0 0.0
      %2143 = vmatpush1.msra.mxu0 0.0
      %2144 = vmatprep.subr.mxu0 0.0
      %2145 = vmatpush1.msra.mxu0 0.0
      %2146 = vmatprep.subr.mxu0 0.0
      %2147 = vmatpush1.msra.mxu0 0.0
      %2148 = vmatprep.subr.mxu0 0.0
      %2149 = vmatpush1.msra.mxu0 0.0
      %2150 = vmatprep.subr.mxu0 0.0
      %2151 = vmatpush1.msra.mxu0 0.0
      %2152 = vmatprep.subr.mxu0 0.0
      %2153 = vmatpush1.msra.mxu0 0.0
      %2154 = vmatprep.subr.mxu0 0.0
      %2155 = vmatpush1.msra.mxu0 0.0
      %2156 = vmatprep.subr.mxu0 0.0
      %2157 = vmatpush1.msra.mxu0 0.0
      %2158 = vmatprep.subr.mxu0 0.0
      %2159 = vmatpush1.msra.mxu0 0.0
      %2160 = vmatprep.subr.mxu0 0.0
      %2161 = vmatpush1.msra.mxu0 0.0
      %2162 = vmatprep.subr.mxu0 0.0
      %2163 = vmatpush1.msra.mxu0 0.0
      %2164 = vmatprep.subr.mxu0 0.0
      %2165 = vmatpush1.msra.mxu0 0.0
      %2166 = vmatprep.subr.mxu0 0.0
      %2167 = vmatpush1.msra.mxu0 0.0
      %2168 = vmatprep.subr.mxu0 0.0
      %2169 = vmatpush1.msra.mxu0 0.0
      %2170 = vmatprep.subr.mxu0 0.0
      %2171 = vmatpush1.msra.mxu0 0.0
      %2172 = vmatprep.subr.mxu0 0.0
      %2173 = vmatpush1.msra.mxu0 0.0
      %2174 = vmatprep.subr.mxu0 0.0
      %2175 = vmatpush1.msra.mxu0 0.0
      %2176 = vmatprep.mubr.f32.mxu0 0.0
      %2177 = vmatmul.mubr.f32.gmra.mrb[0].mxu0 %v2110
      %v2178 = vpop.f32.mrb[0].mxu0
      %v2179 = vadd.f32 0.0, %v2178
      %v2180 = vpop.f32.mrb[0].mxu0
      %2181 = vdwg.mxu0
      %v2183 = vsel %vm603, %v2097, 0
      %2185 = vmatprep.subr.mxu0 0.0
      %2186 = vmatpush1.msra.mxu0 %v2099
      %2187 = vmatprep.subr.mxu0 0.0
      %2188 = vmatpush1.msra.mxu0 %v2100
      %2189 = vmatprep.subr.mxu0 0.0
      %2190 = vmatpush1.msra.mxu0 %v2101
      %2191 = vmatprep.subr.mxu0 0.0
      %2192 = vmatpush1.msra.mxu0 %v2102
      %2193 = vmatprep.subr.mxu0 0.0
      %2194 = vmatpush1.msra.mxu0 0.0
      %2195 = vmatprep.subr.mxu0 0.0
      %2196 = vmatpush1.msra.mxu0 0.0
      %2197 = vmatprep.subr.mxu0 0.0
      %2198 = vmatpush1.msra.mxu0 0.0
      %2199 = vmatprep.subr.mxu0 0.0
      %2200 = vmatpush1.msra.mxu0 0.0
      %2201 = vmatprep.subr.mxu0 0.0
      %2202 = vmatpush1.msra.mxu0 0.0
      %2203 = vmatprep.subr.mxu0 0.0
      %2204 = vmatpush1.msra.mxu0 0.0
      %2205 = vmatprep.subr.mxu0 0.0
      %2206 = vmatpush1.msra.mxu0 0.0
      %2207 = vmatprep.subr.mxu0 0.0
      %2208 = vmatpush1.msra.mxu0 0.0
      %2209 = vmatprep.subr.mxu0 0.0
      %2210 = vmatpush1.msra.mxu0 0.0
      %2211 = vmatprep.subr.mxu0 0.0
      %2212 = vmatpush1.msra.mxu0 0.0
      %2213 = vmatprep.subr.mxu0 0.0
      %2214 = vmatpush1.msra.mxu0 0.0
      %2215 = vmatprep.subr.mxu0 0.0
      %2216 = vmatpush1.msra.mxu0 0.0
      %2217 = vmatprep.subr.mxu0 0.0
      %2218 = vmatpush1.msra.mxu0 0.0
      %2219 = vmatprep.subr.mxu0 0.0
      %2220 = vmatpush1.msra.mxu0 0.0
      %2221 = vmatprep.subr.mxu0 0.0
      %2222 = vmatpush1.msra.mxu0 0.0
      %2223 = vmatprep.subr.mxu0 0.0
      %2224 = vmatpush1.msra.mxu0 0.0
      %2225 = vmatprep.subr.mxu0 0.0
      %2226 = vmatpush1.msra.mxu0 0.0
      %2227 = vmatprep.subr.mxu0 0.0
      %2228 = vmatpush1.msra.mxu0 0.0
      %2229 = vmatprep.subr.mxu0 0.0
      %2230 = vmatpush1.msra.mxu0 0.0
      %2231 = vmatprep.subr.mxu0 0.0
      %2232 = vmatpush1.msra.mxu0 0.0
      %2233 = vmatprep.subr.mxu0 0.0
      %2234 = vmatpush1.msra.mxu0 0.0
      %2235 = vmatprep.subr.mxu0 0.0
      %2236 = vmatpush1.msra.mxu0 0.0
      %2237 = vmatprep.subr.mxu0 0.0
      %2238 = vmatpush1.msra.mxu0 0.0
      %2239 = vmatprep.subr.mxu0 0.0
      %2240 = vmatpush1.msra.mxu0 0.0
      %2241 = vmatprep.subr.mxu0 0.0
      %2242 = vmatpush1.msra.mxu0 0.0
      %2243 = vmatprep.subr.mxu0 0.0
      %2244 = vmatpush1.msra.mxu0 0.0
      %2245 = vmatprep.subr.mxu0 0.0
      %2246 = vmatpush1.msra.mxu0 0.0
      %2247 = vmatprep.subr.mxu0 0.0
      %2248 = vmatpush1.msra.mxu0 0.0
      %2249 = vmatprep.mubr.f32.mxu0 0.0
      %2250 = vmatmul.mubr.f32.gmra.mrb[0].mxu0 %v2183
      %v2251 = vpop.f32.mrb[0].mxu0
      %v2252 = vadd.f32 %v2179, %v2251
      %v2253 = vpop.f32.mrb[0].mxu0
      %2254 = vdwg.mxu0
      %v2255 = vld [vmem:[#allocation2 + $0x6] sm:$0xff]
      %s2256 = scalar_lea.vmem %s4, 640
      %v2257 = vld [vmem:[%s2256] sm:$0xff]
      %v2258 = vld [vmem:[%s2256 + $0x8] sm:$0xff]
      %v2259 = vld [vmem:[%s2256 + $0x10] sm:$0xff]
      %v2260 = vld [vmem:[%s2256 + $0x18] sm:$0xff]
      %v2262 = vsel %vm603, %v2255, 0
      %2264 = vmatprep.subr.mxu0 0.0
      %2265 = vmatpush1.msra.mxu0 %v2257
      %2266 = vmatprep.subr.mxu0 0.0
      %2267 = vmatpush1.msra.mxu0 %v2258
      %2268 = vmatprep.subr.mxu0 0.0
      %2269 = vmatpush1.msra.mxu0 %v2259
      %2270 = vmatprep.subr.mxu0 0.0
      %2271 = vmatpush1.msra.mxu0 %v2260
      %2272 = vmatprep.subr.mxu0 0.0
      %2273 = vmatpush1.msra.mxu0 0.0
      %2274 = vmatprep.subr.mxu0 0.0
      %2275 = vmatpush1.msra.mxu0 0.0
      %2276 = vmatprep.subr.mxu0 0.0
      %2277 = vmatpush1.msra.mxu0 0.0
      %2278 = vmatprep.subr.mxu0 0.0
      %2279 = vmatpush1.msra.mxu0 0.0
      %2280 = vmatprep.subr.mxu0 0.0
      %2281 = vmatpush1.msra.mxu0 0.0
      %2282 = vmatprep.subr.mxu0 0.0
      %2283 = vmatpush1.msra.mxu0 0.0
      %2284 = vmatprep.subr.mxu0 0.0
      %2285 = vmatpush1.msra.mxu0 0.0
      %2286 = vmatprep.subr.mxu0 0.0
      %2287 = vmatpush1.msra.mxu0 0.0
      %2288 = vmatprep.subr.mxu0 0.0
      %2289 = vmatpush1.msra.mxu0 0.0
      %2290 = vmatprep.subr.mxu0 0.0
      %2291 = vmatpush1.msra.mxu0 0.0
      %2292 = vmatprep.subr.mxu0 0.0
      %2293 = vmatpush1.msra.mxu0 0.0
      %2294 = vmatprep.subr.mxu0 0.0
      %2295 = vmatpush1.msra.mxu0 0.0
      %2296 = vmatprep.subr.mxu0 0.0
      %2297 = vmatpush1.msra.mxu0 0.0
      %2298 = vmatprep.subr.mxu0 0.0
      %2299 = vmatpush1.msra.mxu0 0.0
      %2300 = vmatprep.subr.mxu0 0.0
      %2301 = vmatpush1.msra.mxu0 0.0
      %2302 = vmatprep.subr.mxu0 0.0
      %2303 = vmatpush1.msra.mxu0 0.0
      %2304 = vmatprep.subr.mxu0 0.0
      %2305 = vmatpush1.msra.mxu0 0.0
      %2306 = vmatprep.subr.mxu0 0.0
      %2307 = vmatpush1.msra.mxu0 0.0
      %2308 = vmatprep.subr.mxu0 0.0
      %2309 = vmatpush1.msra.mxu0 0.0
      %2310 = vmatprep.subr.mxu0 0.0
      %2311 = vmatpush1.msra.mxu0 0.0
      %2312 = vmatprep.subr.mxu0 0.0
      %2313 = vmatpush1.msra.mxu0 0.0
      %2314 = vmatprep.subr.mxu0 0.0
      %2315 = vmatpush1.msra.mxu0 0.0
      %2316 = vmatprep.subr.mxu0 0.0
      %2317 = vmatpush1.msra.mxu0 0.0
      %2318 = vmatprep.subr.mxu0 0.0
      %2319 = vmatpush1.msra.mxu0 0.0
      %2320 = vmatprep.subr.mxu0 0.0
      %2321 = vmatpush1.msra.mxu0 0.0
      %2322 = vmatprep.subr.mxu0 0.0
      %2323 = vmatpush1.msra.mxu0 0.0
      %2324 = vmatprep.subr.mxu0 0.0
      %2325 = vmatpush1.msra.mxu0 0.0
      %2326 = vmatprep.subr.mxu0 0.0
      %2327 = vmatpush1.msra.mxu0 0.0
      %2328 = vmatprep.mubr.f32.mxu0 0.0
      %2329 = vmatmul.mubr.f32.gmra.mrb[0].mxu0 %v2262
      %v2330 = vpop.f32.mrb[0].mxu0
      %v2331 = vadd.f32 0.0, %v2330
      %v2332 = vpop.f32.mrb[0].mxu0
      %2333 = vdwg.mxu0
      %v2334 = vadd.f32 %v2252, %v2331
      %s2335 = scalar_lea.vmem %s5, 6
      %v2336 = vld [vmem:[%s2335] sm:$0x1]
      %v2338 = vlaneseq
      %v2339 = vshrl.u32 %v2338, 7
      %v2340 = vsub.s32 0, %v2339
      %v2341 = vrot.slane %v2336, %v2340
      %v2343 = vadd.f32 %v2334, %v2341
      %2344 = vst.msk [vmem:[#allocation2 + $0x5] sm:$0xff] %vm603, %v2343
      %v2345 = vld [vmem:[#allocation2 + $0x2] sm:$0xff]
      %s2346 = scalar_lea.vmem %s4, 672
      %v2347 = vld [vmem:[%s2346] sm:$0xff]
      %v2348 = vld [vmem:[%s2346 + $0x8] sm:$0xff]
      %v2349 = vld [vmem:[%s2346 + $0x10] sm:$0xff]
      %v2350 = vld [vmem:[%s2346 + $0x18] sm:$0xff]
      %v2351 = vld [vmem:[#allocation2 + $0x5] sm:$0xff]
      %s2352 = scalar_lea.vmem %s4, 704
      %v2353 = vld [vmem:[%s2352] sm:$0xff]
      %v2354 = vld [vmem:[%s2352 + $0x8] sm:$0xff]
      %v2355 = vld [vmem:[%s2352 + $0x10] sm:$0xff]
      %v2356 = vld [vmem:[%s2352 + $0x18] sm:$0xff]
      %v2358 = vsel %vm603, %v2351, 0
      %2360 = vmatprep.subr.mxu0 0.0
      %2361 = vmatpush1.msra.mxu0 %v2353
      %2362 = vmatprep.subr.mxu0 0.0
      %2363 = vmatpush1.msra.mxu0 %v2354
      %2364 = vmatprep.subr.mxu0 0.0
      %2365 = vmatpush1.msra.mxu0 %v2355
      %2366 = vmatprep.subr.mxu0 0.0
      %2367 = vmatpush1.msra.mxu0 %v2356
      %2368 = vmatprep.subr.mxu0 0.0
      %2369 = vmatpush1.msra.mxu0 0.0
      %2370 = vmatprep.subr.mxu0 0.0
      %2371 = vmatpush1.msra.mxu0 0.0
      %2372 = vmatprep.subr.mxu0 0.0
      %2373 = vmatpush1.msra.mxu0 0.0
      %2374 = vmatprep.subr.mxu0 0.0
      %2375 = vmatpush1.msra.mxu0 0.0
      %2376 = vmatprep.subr.mxu0 0.0
      %2377 = vmatpush1.msra.mxu0 0.0
      %2378 = vmatprep.subr.mxu0 0.0
      %2379 = vmatpush1.msra.mxu0 0.0
      %2380 = vmatprep.subr.mxu0 0.0
      %2381 = vmatpush1.msra.mxu0 0.0
      %2382 = vmatprep.subr.mxu0 0.0
      %2383 = vmatpush1.msra.mxu0 0.0
      %2384 = vmatprep.subr.mxu0 0.0
      %2385 = vmatpush1.msra.mxu0 0.0
      %2386 = vmatprep.subr.mxu0 0.0
      %2387 = vmatpush1.msra.mxu0 0.0
      %2388 = vmatprep.subr.mxu0 0.0
      %2389 = vmatpush1.msra.mxu0 0.0
      %2390 = vmatprep.subr.mxu0 0.0
      %2391 = vmatpush1.msra.mxu0 0.0
      %2392 = vmatprep.subr.mxu0 0.0
      %2393 = vmatpush1.msra.mxu0 0.0
      %2394 = vmatprep.subr.mxu0 0.0
      %2395 = vmatpush1.msra.mxu0 0.0
      %2396 = vmatprep.subr.mxu0 0.0
      %2397 = vmatpush1.msra.mxu0 0.0
      %2398 = vmatprep.subr.mxu0 0.0
      %2399 = vmatpush1.msra.mxu0 0.0
      %2400 = vmatprep.subr.mxu0 0.0
      %2401 = vmatpush1.msra.mxu0 0.0
      %2402 = vmatprep.subr.mxu0 0.0
      %2403 = vmatpush1.msra.mxu0 0.0
      %2404 = vmatprep.subr.mxu0 0.0
      %2405 = vmatpush1.msra.mxu0 0.0
      %2406 = vmatprep.subr.mxu0 0.0
      %2407 = vmatpush1.msra.mxu0 0.0
      %2408 = vmatprep.subr.mxu0 0.0
      %2409 = vmatpush1.msra.mxu0 0.0
      %2410 = vmatprep.subr.mxu0 0.0
      %2411 = vmatpush1.msra.mxu0 0.0
      %2412 = vmatprep.subr.mxu0 0.0
      %2413 = vmatpush1.msra.mxu0 0.0
      %2414 = vmatprep.subr.mxu0 0.0
      %2415 = vmatpush1.msra.mxu0 0.0
      %2416 = vmatprep.subr.mxu0 0.0
      %2417 = vmatpush1.msra.mxu0 0.0
      %2418 = vmatprep.subr.mxu0 0.0
      %2419 = vmatpush1.msra.mxu0 0.0
      %2420 = vmatprep.subr.mxu0 0.0
      %2421 = vmatpush1.msra.mxu0 0.0
      %2422 = vmatprep.subr.mxu0 0.0
      %2423 = vmatpush1.msra.mxu0 0.0
      %2424 = vmatprep.mubr.f32.mxu0 0.0
      %2425 = vmatmul.mubr.f32.gmra.mrb[0].mxu0 %v2358
      %v2426 = vpop.f32.mrb[0].mxu0
      %v2427 = vadd.f32 0.0, %v2426
      %v2428 = vpop.f32.mrb[0].mxu0
      %2429 = vdwg.mxu0
      %v2431 = vsel %vm603, %v2345, 0
      %2433 = vmatprep.subr.mxu0 0.0
      %2434 = vmatpush1.msra.mxu0 %v2347
      %2435 = vmatprep.subr.mxu0 0.0
      %2436 = vmatpush1.msra.mxu0 %v2348
      %2437 = vmatprep.subr.mxu0 0.0
      %2438 = vmatpush1.msra.mxu0 %v2349
      %2439 = vmatprep.subr.mxu0 0.0
      %2440 = vmatpush1.msra.mxu0 %v2350
      %2441 = vmatprep.subr.mxu0 0.0
      %2442 = vmatpush1.msra.mxu0 0.0
      %2443 = vmatprep.subr.mxu0 0.0
      %2444 = vmatpush1.msra.mxu0 0.0
      %2445 = vmatprep.subr.mxu0 0.0
      %2446 = vmatpush1.msra.mxu0 0.0
      %2447 = vmatprep.subr.mxu0 0.0
      %2448 = vmatpush1.msra.mxu0 0.0
      %2449 = vmatprep.subr.mxu0 0.0
      %2450 = vmatpush1.msra.mxu0 0.0
      %2451 = vmatprep.subr.mxu0 0.0
      %2452 = vmatpush1.msra.mxu0 0.0
      %2453 = vmatprep.subr.mxu0 0.0
      %2454 = vmatpush1.msra.mxu0 0.0
      %2455 = vmatprep.subr.mxu0 0.0
      %2456 = vmatpush1.msra.mxu0 0.0
      %2457 = vmatprep.subr.mxu0 0.0
      %2458 = vmatpush1.msra.mxu0 0.0
      %2459 = vmatprep.subr.mxu0 0.0
      %2460 = vmatpush1.msra.mxu0 0.0
      %2461 = vmatprep.subr.mxu0 0.0
      %2462 = vmatpush1.msra.mxu0 0.0
      %2463 = vmatprep.subr.mxu0 0.0
      %2464 = vmatpush1.msra.mxu0 0.0
      %2465 = vmatprep.subr.mxu0 0.0
      %2466 = vmatpush1.msra.mxu0 0.0
      %2467 = vmatprep.subr.mxu0 0.0
      %2468 = vmatpush1.msra.mxu0 0.0
      %2469 = vmatprep.subr.mxu0 0.0
      %2470 = vmatpush1.msra.mxu0 0.0
      %2471 = vmatprep.subr.mxu0 0.0
      %2472 = vmatpush1.msra.mxu0 0.0
      %2473 = vmatprep.subr.mxu0 0.0
      %2474 = vmatpush1.msra.mxu0 0.0
      %2475 = vmatprep.subr.mxu0 0.0
      %2476 = vmatpush1.msra.mxu0 0.0
      %2477 = vmatprep.subr.mxu0 0.0
      %2478 = vmatpush1.msra.mxu0 0.0
      %2479 = vmatprep.subr.mxu0 0.0
      %2480 = vmatpush1.msra.mxu0 0.0
      %2481 = vmatprep.subr.mxu0 0.0
      %2482 = vmatpush1.msra.mxu0 0.0
      %2483 = vmatprep.subr.mxu0 0.0
      %2484 = vmatpush1.msra.mxu0 0.0
      %2485 = vmatprep.subr.mxu0 0.0
      %2486 = vmatpush1.msra.mxu0 0.0
      %2487 = vmatprep.subr.mxu0 0.0
      %2488 = vmatpush1.msra.mxu0 0.0
      %2489 = vmatprep.subr.mxu0 0.0
      %2490 = vmatpush1.msra.mxu0 0.0
      %2491 = vmatprep.subr.mxu0 0.0
      %2492 = vmatpush1.msra.mxu0 0.0
      %2493 = vmatprep.subr.mxu0 0.0
      %2494 = vmatpush1.msra.mxu0 0.0
      %2495 = vmatprep.subr.mxu0 0.0
      %2496 = vmatpush1.msra.mxu0 0.0
      %2497 = vmatprep.mubr.f32.mxu0 0.0
      %2498 = vmatmul.mubr.f32.gmra.mrb[0].mxu0 %v2431
      %v2499 = vpop.f32.mrb[0].mxu0
      %v2500 = vadd.f32 %v2427, %v2499
      %v2501 = vpop.f32.mrb[0].mxu0
      %2502 = vdwg.mxu0
      %v2503 = vld [vmem:[#allocation2 + $0x8] sm:$0xff]
      %s2504 = scalar_lea.vmem %s4, 736
      %v2505 = vld [vmem:[%s2504] sm:$0xff]
      %v2506 = vld [vmem:[%s2504 + $0x8] sm:$0xff]
      %v2507 = vld [vmem:[%s2504 + $0x10] sm:$0xff]
      %v2508 = vld [vmem:[%s2504 + $0x18] sm:$0xff]
      %v2510 = vsel %vm603, %v2503, 0
      %2512 = vmatprep.subr.mxu0 0.0
      %2513 = vmatpush1.msra.mxu0 %v2505
      %2514 = vmatprep.subr.mxu0 0.0
      %2515 = vmatpush1.msra.mxu0 %v2506
      %2516 = vmatprep.subr.mxu0 0.0
      %2517 = vmatpush1.msra.mxu0 %v2507
      %2518 = vmatprep.subr.mxu0 0.0
      %2519 = vmatpush1.msra.mxu0 %v2508
      %2520 = vmatprep.subr.mxu0 0.0
      %2521 = vmatpush1.msra.mxu0 0.0
      %2522 = vmatprep.subr.mxu0 0.0
      %2523 = vmatpush1.msra.mxu0 0.0
      %2524 = vmatprep.subr.mxu0 0.0
      %2525 = vmatpush1.msra.mxu0 0.0
      %2526 = vmatprep.subr.mxu0 0.0
      %2527 = vmatpush1.msra.mxu0 0.0
      %2528 = vmatprep.subr.mxu0 0.0
      %2529 = vmatpush1.msra.mxu0 0.0
      %2530 = vmatprep.subr.mxu0 0.0
      %2531 = vmatpush1.msra.mxu0 0.0
      %2532 = vmatprep.subr.mxu0 0.0
      %2533 = vmatpush1.msra.mxu0 0.0
      %2534 = vmatprep.subr.mxu0 0.0
      %2535 = vmatpush1.msra.mxu0 0.0
      %2536 = vmatprep.subr.mxu0 0.0
      %2537 = vmatpush1.msra.mxu0 0.0
      %2538 = vmatprep.subr.mxu0 0.0
      %2539 = vmatpush1.msra.mxu0 0.0
      %2540 = vmatprep.subr.mxu0 0.0
      %2541 = vmatpush1.msra.mxu0 0.0
      %2542 = vmatprep.subr.mxu0 0.0
      %2543 = vmatpush1.msra.mxu0 0.0
      %2544 = vmatprep.subr.mxu0 0.0
      %2545 = vmatpush1.msra.mxu0 0.0
      %2546 = vmatprep.subr.mxu0 0.0
      %2547 = vmatpush1.msra.mxu0 0.0
      %2548 = vmatprep.subr.mxu0 0.0
      %2549 = vmatpush1.msra.mxu0 0.0
      %2550 = vmatprep.subr.mxu0 0.0
      %2551 = vmatpush1.msra.mxu0 0.0
      %2552 = vmatprep.subr.mxu0 0.0
      %2553 = vmatpush1.msra.mxu0 0.0
      %2554 = vmatprep.subr.mxu0 0.0
      %2555 = vmatpush1.msra.mxu0 0.0
      %2556 = vmatprep.subr.mxu0 0.0
      %2557 = vmatpush1.msra.mxu0 0.0
      %2558 = vmatprep.subr.mxu0 0.0
      %2559 = vmatpush1.msra.mxu0 0.0
      %2560 = vmatprep.subr.mxu0 0.0
      %2561 = vmatpush1.msra.mxu0 0.0
      %2562 = vmatprep.subr.mxu0 0.0
      %2563 = vmatpush1.msra.mxu0 0.0
      %2564 = vmatprep.subr.mxu0 0.0
      %2565 = vmatpush1.msra.mxu0 0.0
      %2566 = vmatprep.subr.mxu0 0.0
      %2567 = vmatpush1.msra.mxu0 0.0
      %2568 = vmatprep.subr.mxu0 0.0
      %2569 = vmatpush1.msra.mxu0 0.0
      %2570 = vmatprep.subr.mxu0 0.0
      %2571 = vmatpush1.msra.mxu0 0.0
      %2572 = vmatprep.subr.mxu0 0.0
      %2573 = vmatpush1.msra.mxu0 0.0
      %2574 = vmatprep.subr.mxu0 0.0
      %2575 = vmatpush1.msra.mxu0 0.0
      %2576 = vmatprep.mubr.f32.mxu0 0.0
      %2577 = vmatmul.mubr.f32.gmra.mrb[0].mxu0 %v2510
      %v2578 = vpop.f32.mrb[0].mxu0
      %v2579 = vadd.f32 0.0, %v2578
      %v2580 = vpop.f32.mrb[0].mxu0
      %2581 = vdwg.mxu0
      %v2582 = vadd.f32 %v2500, %v2579
      %s2583 = scalar_lea.vmem %s5, 7
      %v2584 = vld [vmem:[%s2583] sm:$0x1]
      %v2586 = vlaneseq
      %v2587 = vshrl.u32 %v2586, 7
      %v2588 = vsub.s32 0, %v2587
      %v2589 = vrot.slane %v2584, %v2588
      %v2591 = vadd.f32 %v2582, %v2589
      %2592 = vst.msk [vmem:[#allocation2 + $0x5] sm:$0xff] %vm603, %v2591
      %v2593 = vld [vmem:[#allocation2] sm:$0xff]
      %s2594 = scalar_lea.vmem %s4, 768
      %v2595 = vld [vmem:[%s2594] sm:$0xff]
      %v2596 = vld [vmem:[%s2594 + $0x8] sm:$0xff]
      %v2597 = vld [vmem:[%s2594 + $0x10] sm:$0xff]
      %v2598 = vld [vmem:[%s2594 + $0x18] sm:$0xff]
      %v2599 = vld [vmem:[#allocation2 + $0x5] sm:$0xff]
      %s2600 = scalar_lea.vmem %s4, 800
      %v2601 = vld [vmem:[%s2600] sm:$0xff]
      %v2602 = vld [vmem:[%s2600 + $0x8] sm:$0xff]
      %v2603 = vld [vmem:[%s2600 + $0x10] sm:$0xff]
      %v2604 = vld [vmem:[%s2600 + $0x18] sm:$0xff]
      %v2606 = vsel %vm603, %v2599, 0
      %2608 = vmatprep.subr.mxu0 0.0
      %2609 = vmatpush1.msra.mxu0 %v2601
      %2610 = vmatprep.subr.mxu0 0.0
      %2611 = vmatpush1.msra.mxu0 %v2602
      %2612 = vmatprep.subr.mxu0 0.0
      %2613 = vmatpush1.msra.mxu0 %v2603
      %2614 = vmatprep.subr.mxu0 0.0
      %2615 = vmatpush1.msra.mxu0 %v2604
      %2616 = vmatprep.subr.mxu0 0.0
      %2617 = vmatpush1.msra.mxu0 0.0
      %2618 = vmatprep.subr.mxu0 0.0
      %2619 = vmatpush1.msra.mxu0 0.0
      %2620 = vmatprep.subr.mxu0 0.0
      %2621 = vmatpush1.msra.mxu0 0.0
      %2622 = vmatprep.subr.mxu0 0.0
      %2623 = vmatpush1.msra.mxu0 0.0
      %2624 = vmatprep.subr.mxu0 0.0
      %2625 = vmatpush1.msra.mxu0 0.0
      %2626 = vmatprep.subr.mxu0 0.0
      %2627 = vmatpush1.msra.mxu0 0.0
      %2628 = vmatprep.subr.mxu0 0.0
      %2629 = vmatpush1.msra.mxu0 0.0
      %2630 = vmatprep.subr.mxu0 0.0
      %2631 = vmatpush1.msra.mxu0 0.0
      %2632 = vmatprep.subr.mxu0 0.0
      %2633 = vmatpush1.msra.mxu0 0.0
      %2634 = vmatprep.subr.mxu0 0.0
      %2635 = vmatpush1.msra.mxu0 0.0
      %2636 = vmatprep.subr.mxu0 0.0
      %2637 = vmatpush1.msra.mxu0 0.0
      %2638 = vmatprep.subr.mxu0 0.0
      %2639 = vmatpush1.msra.mxu0 0.0
      %2640 = vmatprep.subr.mxu0 0.0
      %2641 = vmatpush1.msra.mxu0 0.0
      %2642 = vmatprep.subr.mxu0 0.0
      %2643 = vmatpush1.msra.mxu0 0.0
      %2644 = vmatprep.subr.mxu0 0.0
      %2645 = vmatpush1.msra.mxu0 0.0
      %2646 = vmatprep.subr.mxu0 0.0
      %2647 = vmatpush1.msra.mxu0 0.0
      %2648 = vmatprep.subr.mxu0 0.0
      %2649 = vmatpush1.msra.mxu0 0.0
      %2650 = vmatprep.subr.mxu0 0.0
      %2651 = vmatpush1.msra.mxu0 0.0
      %2652 = vmatprep.subr.mxu0 0.0
      %2653 = vmatpush1.msra.mxu0 0.0
      %2654 = vmatprep.subr.mxu0 0.0
      %2655 = vmatpush1.msra.mxu0 0.0
      %2656 = vmatprep.subr.mxu0 0.0
      %2657 = vmatpush1.msra.mxu0 0.0
      %2658 = vmatprep.subr.mxu0 0.0
      %2659 = vmatpush1.msra.mxu0 0.0
      %2660 = vmatprep.subr.mxu0 0.0
      %2661 = vmatpush1.msra.mxu0 0.0
      %2662 = vmatprep.subr.mxu0 0.0
      %2663 = vmatpush1.msra.mxu0 0.0
      %2664 = vmatprep.subr.mxu0 0.0
      %2665 = vmatpush1.msra.mxu0 0.0
      %2666 = vmatprep.subr.mxu0 0.0
      %2667 = vmatpush1.msra.mxu0 0.0
      %2668 = vmatprep.subr.mxu0 0.0
      %2669 = vmatpush1.msra.mxu0 0.0
      %2670 = vmatprep.subr.mxu0 0.0
      %2671 = vmatpush1.msra.mxu0 0.0
      %2672 = vmatprep.mubr.f32.mxu0 0.0
      %2673 = vmatmul.mubr.f32.gmra.mrb[0].mxu0 %v2606
      %v2674 = vpop.f32.mrb[0].mxu0
      %v2675 = vadd.f32 0.0, %v2674
      %v2676 = vpop.f32.mrb[0].mxu0
      %2677 = vdwg.mxu0
      %v2679 = vsel %vm603, %v2593, 0
      %2681 = vmatprep.subr.mxu0 0.0
      %2682 = vmatpush1.msra.mxu0 %v2595
      %2683 = vmatprep.subr.mxu0 0.0
      %2684 = vmatpush1.msra.mxu0 %v2596
      %2685 = vmatprep.subr.mxu0 0.0
      %2686 = vmatpush1.msra.mxu0 %v2597
      %2687 = vmatprep.subr.mxu0 0.0
      %2688 = vmatpush1.msra.mxu0 %v2598
      %2689 = vmatprep.subr.mxu0 0.0
      %2690 = vmatpush1.msra.mxu0 0.0
      %2691 = vmatprep.subr.mxu0 0.0
      %2692 = vmatpush1.msra.mxu0 0.0
      %2693 = vmatprep.subr.mxu0 0.0
      %2694 = vmatpush1.msra.mxu0 0.0
      %2695 = vmatprep.subr.mxu0 0.0
      %2696 = vmatpush1.msra.mxu0 0.0
      %2697 = vmatprep.subr.mxu0 0.0
      %2698 = vmatpush1.msra.mxu0 0.0
      %2699 = vmatprep.subr.mxu0 0.0
      %2700 = vmatpush1.msra.mxu0 0.0
      %2701 = vmatprep.subr.mxu0 0.0
      %2702 = vmatpush1.msra.mxu0 0.0
      %2703 = vmatprep.subr.mxu0 0.0
      %2704 = vmatpush1.msra.mxu0 0.0
      %2705 = vmatprep.subr.mxu0 0.0
      %2706 = vmatpush1.msra.mxu0 0.0
      %2707 = vmatprep.subr.mxu0 0.0
      %2708 = vmatpush1.msra.mxu0 0.0
      %2709 = vmatprep.subr.mxu0 0.0
      %2710 = vmatpush1.msra.mxu0 0.0
      %2711 = vmatprep.subr.mxu0 0.0
      %2712 = vmatpush1.msra.mxu0 0.0
      %2713 = vmatprep.subr.mxu0 0.0
      %2714 = vmatpush1.msra.mxu0 0.0
      %2715 = vmatprep.subr.mxu0 0.0
      %2716 = vmatpush1.msra.mxu0 0.0
      %2717 = vmatprep.subr.mxu0 0.0
      %2718 = vmatpush1.msra.mxu0 0.0
      %2719 = vmatprep.subr.mxu0 0.0
      %2720 = vmatpush1.msra.mxu0 0.0
      %2721 = vmatprep.subr.mxu0 0.0
      %2722 = vmatpush1.msra.mxu0 0.0
      %2723 = vmatprep.subr.mxu0 0.0
      %2724 = vmatpush1.msra.mxu0 0.0
      %2725 = vmatprep.subr.mxu0 0.0
      %2726 = vmatpush1.msra.mxu0 0.0
      %2727 = vmatprep.subr.mxu0 0.0
      %2728 = vmatpush1.msra.mxu0 0.0
      %2729 = vmatprep.subr.mxu0 0.0
      %2730 = vmatpush1.msra.mxu0 0.0
      %2731 = vmatprep.subr.mxu0 0.0
      %2732 = vmatpush1.msra.mxu0 0.0
      %2733 = vmatprep.subr.mxu0 0.0
      %2734 = vmatpush1.msra.mxu0 0.0
      %2735 = vmatprep.subr.mxu0 0.0
      %2736 = vmatpush1.msra.mxu0 0.0
      %2737 = vmatprep.subr.mxu0 0.0
      %2738 = vmatpush1.msra.mxu0 0.0
      %2739 = vmatprep.subr.mxu0 0.0
      %2740 = vmatpush1.msra.mxu0 0.0
      %2741 = vmatprep.subr.mxu0 0.0
      %2742 = vmatpush1.msra.mxu0 0.0
      %2743 = vmatprep.subr.mxu0 0.0
      %2744 = vmatpush1.msra.mxu0 0.0
      %2745 = vmatprep.mubr.f32.mxu0 0.0
      %2746 = vmatmul.mubr.f32.gmra.mrb[0].mxu0 %v2679
      %v2747 = vpop.f32.mrb[0].mxu0
      %v2748 = vadd.f32 %v2675, %v2747
      %v2749 = vpop.f32.mrb[0].mxu0
      %2750 = vdwg.mxu0
      %v2751 = vld [vmem:[#allocation2 + $0xa] sm:$0xff]
      %s2752 = scalar_lea.vmem %s4, 832
      %v2753 = vld [vmem:[%s2752] sm:$0xff]
      %v2754 = vld [vmem:[%s2752 + $0x8] sm:$0xff]
      %v2755 = vld [vmem:[%s2752 + $0x10] sm:$0xff]
      %v2756 = vld [vmem:[%s2752 + $0x18] sm:$0xff]
      %v2758 = vsel %vm603, %v2751, 0
      %2760 = vmatprep.subr.mxu0 0.0
      %2761 = vmatpush1.msra.mxu0 %v2753
      %2762 = vmatprep.subr.mxu0 0.0
      %2763 = vmatpush1.msra.mxu0 %v2754
      %2764 = vmatprep.subr.mxu0 0.0
      %2765 = vmatpush1.msra.mxu0 %v2755
      %2766 = vmatprep.subr.mxu0 0.0
      %2767 = vmatpush1.msra.mxu0 %v2756
      %2768 = vmatprep.subr.mxu0 0.0
      %2769 = vmatpush1.msra.mxu0 0.0
      %2770 = vmatprep.subr.mxu0 0.0
      %2771 = vmatpush1.msra.mxu0 0.0
      %2772 = vmatprep.subr.mxu0 0.0
      %2773 = vmatpush1.msra.mxu0 0.0
      %2774 = vmatprep.subr.mxu0 0.0
      %2775 = vmatpush1.msra.mxu0 0.0
      %2776 = vmatprep.subr.mxu0 0.0
      %2777 = vmatpush1.msra.mxu0 0.0
      %2778 = vmatprep.subr.mxu0 0.0
      %2779 = vmatpush1.msra.mxu0 0.0
      %2780 = vmatprep.subr.mxu0 0.0
      %2781 = vmatpush1.msra.mxu0 0.0
      %2782 = vmatprep.subr.mxu0 0.0
      %2783 = vmatpush1.msra.mxu0 0.0
      %2784 = vmatprep.subr.mxu0 0.0
      %2785 = vmatpush1.msra.mxu0 0.0
      %2786 = vmatprep.subr.mxu0 0.0
      %2787 = vmatpush1.msra.mxu0 0.0
      %2788 = vmatprep.subr.mxu0 0.0
      %2789 = vmatpush1.msra.mxu0 0.0
      %2790 = vmatprep.subr.mxu0 0.0
      %2791 = vmatpush1.msra.mxu0 0.0
      %2792 = vmatprep.subr.mxu0 0.0
      %2793 = vmatpush1.msra.mxu0 0.0
      %2794 = vmatprep.subr.mxu0 0.0
      %2795 = vmatpush1.msra.mxu0 0.0
      %2796 = vmatprep.subr.mxu0 0.0
      %2797 = vmatpush1.msra.mxu0 0.0
      %2798 = vmatprep.subr.mxu0 0.0
      %2799 = vmatpush1.msra.mxu0 0.0
      %2800 = vmatprep.subr.mxu0 0.0
      %2801 = vmatpush1.msra.mxu0 0.0
      %2802 = vmatprep.subr.mxu0 0.0
      %2803 = vmatpush1.msra.mxu0 0.0
      %2804 = vmatprep.subr.mxu0 0.0
      %2805 = vmatpush1.msra.mxu0 0.0
      %2806 = vmatprep.subr.mxu0 0.0
      %2807 = vmatpush1.msra.mxu0 0.0
      %2808 = vmatprep.subr.mxu0 0.0
      %2809 = vmatpush1.msra.mxu0 0.0
      %2810 = vmatprep.subr.mxu0 0.0
      %2811 = vmatpush1.msra.mxu0 0.0
      %2812 = vmatprep.subr.mxu0 0.0
      %2813 = vmatpush1.msra.mxu0 0.0
      %2814 = vmatprep.subr.mxu0 0.0
      %2815 = vmatpush1.msra.mxu0 0.0
      %2816 = vmatprep.subr.mxu0 0.0
      %2817 = vmatpush1.msra.mxu0 0.0
      %2818 = vmatprep.subr.mxu0 0.0
      %2819 = vmatpush1.msra.mxu0 0.0
      %2820 = vmatprep.subr.mxu0 0.0
      %2821 = vmatpush1.msra.mxu0 0.0
      %2822 = vmatprep.subr.mxu0 0.0
      %2823 = vmatpush1.msra.mxu0 0.0
      %2824 = vmatprep.mubr.f32.mxu0 0.0
      %2825 = vmatmul.mubr.f32.gmra.mrb[0].mxu0 %v2758
      %v2826 = vpop.f32.mrb[0].mxu0
      %v2827 = vadd.f32 0.0, %v2826
      %v2828 = vpop.f32.mrb[0].mxu0
      %2829 = vdwg.mxu0
      %v2830 = vadd.f32 %v2748, %v2827
      %s2831 = scalar_lea.vmem %s5, 8
      %v2832 = vld [vmem:[%s2831] sm:$0x1]
      %v2834 = vlaneseq
      %v2835 = vshrl.u32 %v2834, 7
      %v2836 = vsub.s32 0, %v2835
      %v2837 = vrot.slane %v2832, %v2836
      %v2839 = vadd.f32 %v2830, %v2837
      %v2840 = vld [vmem:[%s6] sm:$0xff]
      %v2841 = vld [vmem:[%s6 + $0x8] sm:$0xff]
      %v2842 = vld [vmem:[%s6 + $0x10] sm:$0xff]
      %v2843 = vld [vmem:[%s6 + $0x18] sm:$0xff]
      %s2844 = scalar_lea.vmem %s6, 32
      %v2845 = vld [vmem:[%s2844] sm:$0xff]
      %v2846 = vld [vmem:[%s2844 + $0x8] sm:$0xff]
      %v2847 = vld [vmem:[%s2844 + $0x10] sm:$0xff]
      %v2848 = vld [vmem:[%s2844 + $0x18] sm:$0xff]
      %v2850 = vsel %vm603, %v2094, 0
      %2852 = vmatprep.subr.mxu0 0.0
      %2853 = vmatpush1.msra.mxu0 %v2845
      %2854 = vmatprep.subr.mxu0 0.0
      %2855 = vmatpush1.msra.mxu0 %v2846
      %2856 = vmatprep.subr.mxu0 0.0
      %2857 = vmatpush1.msra.mxu0 %v2847
      %2858 = vmatprep.subr.mxu0 0.0
      %2859 = vmatpush1.msra.mxu0 %v2848
      %2860 = vmatprep.subr.mxu0 0.0
      %2861 = vmatpush1.msra.mxu0 0.0
      %2862 = vmatprep.subr.mxu0 0.0
      %2863 = vmatpush1.msra.mxu0 0.0
      %2864 = vmatprep.subr.mxu0 0.0
      %2865 = vmatpush1.msra.mxu0 0.0
      %2866 = vmatprep.subr.mxu0 0.0
      %2867 = vmatpush1.msra.mxu0 0.0
      %2868 = vmatprep.subr.mxu0 0.0
      %2869 = vmatpush1.msra.mxu0 0.0
      %2870 = vmatprep.subr.mxu0 0.0
      %2871 = vmatpush1.msra.mxu0 0.0
      %2872 = vmatprep.subr.mxu0 0.0
      %2873 = vmatpush1.msra.mxu0 0.0
      %2874 = vmatprep.subr.mxu0 0.0
      %2875 = vmatpush1.msra.mxu0 0.0
      %2876 = vmatprep.subr.mxu0 0.0
      %2877 = vmatpush1.msra.mxu0 0.0
      %2878 = vmatprep.subr.mxu0 0.0
      %2879 = vmatpush1.msra.mxu0 0.0
      %2880 = vmatprep.subr.mxu0 0.0
      %2881 = vmatpush1.msra.mxu0 0.0
      %2882 = vmatprep.subr.mxu0 0.0
      %2883 = vmatpush1.msra.mxu0 0.0
      %2884 = vmatprep.subr.mxu0 0.0
      %2885 = vmatpush1.msra.mxu0 0.0
      %2886 = vmatprep.subr.mxu0 0.0
      %2887 = vmatpush1.msra.mxu0 0.0
      %2888 = vmatprep.subr.mxu0 0.0
      %2889 = vmatpush1.msra.mxu0 0.0
      %2890 = vmatprep.subr.mxu0 0.0
      %2891 = vmatpush1.msra.mxu0 0.0
      %2892 = vmatprep.subr.mxu0 0.0
      %2893 = vmatpush1.msra.mxu0 0.0
      %2894 = vmatprep.subr.mxu0 0.0
      %2895 = vmatpush1.msra.mxu0 0.0
      %2896 = vmatprep.subr.mxu0 0.0
      %2897 = vmatpush1.msra.mxu0 0.0
      %2898 = vmatprep.subr.mxu0 0.0
      %2899 = vmatpush1.msra.mxu0 0.0
      %2900 = vmatprep.subr.mxu0 0.0
      %2901 = vmatpush1.msra.mxu0 0.0
      %2902 = vmatprep.subr.mxu0 0.0
      %2903 = vmatpush1.msra.mxu0 0.0
      %2904 = vmatprep.subr.mxu0 0.0
      %2905 = vmatpush1.msra.mxu0 0.0
      %2906 = vmatprep.subr.mxu0 0.0
      %2907 = vmatpush1.msra.mxu0 0.0
      %2908 = vmatprep.subr.mxu0 0.0
      %2909 = vmatpush1.msra.mxu0 0.0
      %2910 = vmatprep.subr.mxu0 0.0
      %2911 = vmatpush1.msra.mxu0 0.0
      %2912 = vmatprep.subr.mxu0 0.0
      %2913 = vmatpush1.msra.mxu0 0.0
      %2914 = vmatprep.subr.mxu0 0.0
      %2915 = vmatpush1.msra.mxu0 0.0
      %2916 = vmatprep.mubr.f32.mxu0 0.0
      %2917 = vmatmul.mubr.f32.gmra.mrb[0].mxu0 %v2850
      %v2918 = vpop.f32.mrb[0].mxu0
      %v2919 = vadd.f32 0.0, %v2918
      %v2920 = vpop.f32.mrb[0].mxu0
      %2921 = vdwg.mxu0
      %v2923 = vsel %vm603, %v1349, 0
      %2925 = vmatprep.subr.mxu0 0.0
      %2926 = vmatpush1.msra.mxu0 %v2840
      %2927 = vmatprep.subr.mxu0 0.0
      %2928 = vmatpush1.msra.mxu0 %v2841
      %2929 = vmatprep.subr.mxu0 0.0
      %2930 = vmatpush1.msra.mxu0 %v2842
      %2931 = vmatprep.subr.mxu0 0.0
      %2932 = vmatpush1.msra.mxu0 %v2843
      %2933 = vmatprep.subr.mxu0 0.0
      %2934 = vmatpush1.msra.mxu0 0.0
      %2935 = vmatprep.subr.mxu0 0.0
      %2936 = vmatpush1.msra.mxu0 0.0
      %2937 = vmatprep.subr.mxu0 0.0
      %2938 = vmatpush1.msra.mxu0 0.0
      %2939 = vmatprep.subr.mxu0 0.0
      %2940 = vmatpush1.msra.mxu0 0.0
      %2941 = vmatprep.subr.mxu0 0.0
      %2942 = vmatpush1.msra.mxu0 0.0
      %2943 = vmatprep.subr.mxu0 0.0
      %2944 = vmatpush1.msra.mxu0 0.0
      %2945 = vmatprep.subr.mxu0 0.0
      %2946 = vmatpush1.msra.mxu0 0.0
      %2947 = vmatprep.subr.mxu0 0.0
      %2948 = vmatpush1.msra.mxu0 0.0
      %2949 = vmatprep.subr.mxu0 0.0
      %2950 = vmatpush1.msra.mxu0 0.0
      %2951 = vmatprep.subr.mxu0 0.0
      %2952 = vmatpush1.msra.mxu0 0.0
      %2953 = vmatprep.subr.mxu0 0.0
      %2954 = vmatpush1.msra.mxu0 0.0
      %2955 = vmatprep.subr.mxu0 0.0
      %2956 = vmatpush1.msra.mxu0 0.0
      %2957 = vmatprep.subr.mxu0 0.0
      %2958 = vmatpush1.msra.mxu0 0.0
      %2959 = vmatprep.subr.mxu0 0.0
      %2960 = vmatpush1.msra.mxu0 0.0
      %2961 = vmatprep.subr.mxu0 0.0
      %2962 = vmatpush1.msra.mxu0 0.0
      %2963 = vmatprep.subr.mxu0 0.0
      %2964 = vmatpush1.msra.mxu0 0.0
      %2965 = vmatprep.subr.mxu0 0.0
      %2966 = vmatpush1.msra.mxu0 0.0
      %2967 = vmatprep.subr.mxu0 0.0
      %2968 = vmatpush1.msra.mxu0 0.0
      %2969 = vmatprep.subr.mxu0 0.0
      %2970 = vmatpush1.msra.mxu0 0.0
      %2971 = vmatprep.subr.mxu0 0.0
      %2972 = vmatpush1.msra.mxu0 0.0
      %2973 = vmatprep.subr.mxu0 0.0
      %2974 = vmatpush1.msra.mxu0 0.0
      %2975 = vmatprep.subr.mxu0 0.0
      %2976 = vmatpush1.msra.mxu0 0.0
      %2977 = vmatprep.subr.mxu0 0.0
      %2978 = vmatpush1.msra.mxu0 0.0
      %2979 = vmatprep.subr.mxu0 0.0
      %2980 = vmatpush1.msra.mxu0 0.0
      %2981 = vmatprep.subr.mxu0 0.0
      %2982 = vmatpush1.msra.mxu0 0.0
      %2983 = vmatprep.subr.mxu0 0.0
      %2984 = vmatpush1.msra.mxu0 0.0
      %2985 = vmatprep.subr.mxu0 0.0
      %2986 = vmatpush1.msra.mxu0 0.0
      %2987 = vmatprep.subr.mxu0 0.0
      %2988 = vmatpush1.msra.mxu0 0.0
      %2989 = vmatprep.mubr.f32.mxu0 0.0
      %2990 = vmatmul.mubr.f32.gmra.mrb[0].mxu0 %v2923
      %v2991 = vpop.f32.mrb[0].mxu0
      %v2992 = vadd.f32 %v2919, %v2991
      %v2993 = vpop.f32.mrb[0].mxu0
      %2994 = vdwg.mxu0
      %s2995 = scalar_lea.vmem %s6, 64
      %v2996 = vld [vmem:[%s2995] sm:$0xff]
      %v2997 = vld [vmem:[%s2995 + $0x8] sm:$0xff]
      %v2998 = vld [vmem:[%s2995 + $0x10] sm:$0xff]
      %v2999 = vld [vmem:[%s2995 + $0x18] sm:$0xff]
      %v3001 = vsel %vm603, %v2839, 0
      %3003 = vmatprep.subr.mxu0 0.0
      %3004 = vmatpush1.msra.mxu0 %v2996
      %3005 = vmatprep.subr.mxu0 0.0
      %3006 = vmatpush1.msra.mxu0 %v2997
      %3007 = vmatprep.subr.mxu0 0.0
      %3008 = vmatpush1.msra.mxu0 %v2998
      %3009 = vmatprep.subr.mxu0 0.0
      %3010 = vmatpush1.msra.mxu0 %v2999
      %3011 = vmatprep.subr.mxu0 0.0
      %3012 = vmatpush1.msra.mxu0 0.0
      %3013 = vmatprep.subr.mxu0 0.0
      %3014 = vmatpush1.msra.mxu0 0.0
      %3015 = vmatprep.subr.mxu0 0.0
      %3016 = vmatpush1.msra.mxu0 0.0
      %3017 = vmatprep.subr.mxu0 0.0
      %3018 = vmatpush1.msra.mxu0 0.0
      %3019 = vmatprep.subr.mxu0 0.0
      %3020 = vmatpush1.msra.mxu0 0.0
      %3021 = vmatprep.subr.mxu0 0.0
      %3022 = vmatpush1.msra.mxu0 0.0
      %3023 = vmatprep.subr.mxu0 0.0
      %3024 = vmatpush1.msra.mxu0 0.0
      %3025 = vmatprep.subr.mxu0 0.0
      %3026 = vmatpush1.msra.mxu0 0.0
      %3027 = vmatprep.subr.mxu0 0.0
      %3028 = vmatpush1.msra.mxu0 0.0
      %3029 = vmatprep.subr.mxu0 0.0
      %3030 = vmatpush1.msra.mxu0 0.0
      %3031 = vmatprep.subr.mxu0 0.0
      %3032 = vmatpush1.msra.mxu0 0.0
      %3033 = vmatprep.subr.mxu0 0.0
      %3034 = vmatpush1.msra.mxu0 0.0
      %3035 = vmatprep.subr.mxu0 0.0
      %3036 = vmatpush1.msra.mxu0 0.0
      %3037 = vmatprep.subr.mxu0 0.0
      %3038 = vmatpush1.msra.mxu0 0.0
      %3039 = vmatprep.subr.mxu0 0.0
      %3040 = vmatpush1.msra.mxu0 0.0
      %3041 = vmatprep.subr.mxu0 0.0
      %3042 = vmatpush1.msra.mxu0 0.0
      %3043 = vmatprep.subr.mxu0 0.0
      %3044 = vmatpush1.msra.mxu0 0.0
      %3045 = vmatprep.subr.mxu0 0.0
      %3046 = vmatpush1.msra.mxu0 0.0
      %3047 = vmatprep.subr.mxu0 0.0
      %3048 = vmatpush1.msra.mxu0 0.0
      %3049 = vmatprep.subr.mxu0 0.0
      %3050 = vmatpush1.msra.mxu0 0.0
      %3051 = vmatprep.subr.mxu0 0.0
      %3052 = vmatpush1.msra.mxu0 0.0
      %3053 = vmatprep.subr.mxu0 0.0
      %3054 = vmatpush1.msra.mxu0 0.0
      %3055 = vmatprep.subr.mxu0 0.0
      %3056 = vmatpush1.msra.mxu0 0.0
      %3057 = vmatprep.subr.mxu0 0.0
      %3058 = vmatpush1.msra.mxu0 0.0
      %3059 = vmatprep.subr.mxu0 0.0
      %3060 = vmatpush1.msra.mxu0 0.0
      %3061 = vmatprep.subr.mxu0 0.0
      %3062 = vmatpush1.msra.mxu0 0.0
      %3063 = vmatprep.subr.mxu0 0.0
      %3064 = vmatpush1.msra.mxu0 0.0
      %3065 = vmatprep.subr.mxu0 0.0
      %3066 = vmatpush1.msra.mxu0 0.0
      %3067 = vmatprep.mubr.f32.mxu0 0.0
      %3068 = vmatmul.mubr.f32.gmra.mrb[0].mxu0 %v3001
      %v3069 = vpop.f32.mrb[0].mxu0
      %v3070 = vadd.f32 0.0, %v3069
      %v3071 = vpop.f32.mrb[0].mxu0
      %3072 = vdwg.mxu0
      %v3073 = vadd.f32 %v2992, %v3070
      %v3074 = vld [vmem:[%s7] sm:$0x1]
      %v3076 = vlaneseq
      %v3077 = vshrl.u32 %v3076, 7
      %v3078 = vsub.s32 0, %v3077
      %v3079 = vrot.slane %v3074, %v3078
      %v3081 = vadd.f32 %v3073, %v3079
      %v3082 = vadd.f32 %v602, %v3081
      %3083 = vst.msk [vmem:[#allocation2 + $0x5] sm:$0xff] %vm603, %v3082
      %v3084 = vld [vmem:[#allocation2 + $0x4] sm:$0xff]
      %v3085 = vld [vmem:[%s8] sm:$0xff]
      %v3086 = vld [vmem:[%s8 + $0x8] sm:$0xff]
      %v3087 = vld [vmem:[%s8 + $0x10] sm:$0xff]
      %v3088 = vld [vmem:[%s8 + $0x18] sm:$0xff]
      %v3089 = vld [vmem:[#allocation2 + $0x5] sm:$0xff]
      %s3090 = scalar_lea.vmem %s8, 32
      %v3091 = vld [vmem:[%s3090] sm:$0xff]
      %v3092 = vld [vmem:[%s3090 + $0x8] sm:$0xff]
      %v3093 = vld [vmem:[%s3090 + $0x10] sm:$0xff]
      %v3094 = vld [vmem:[%s3090 + $0x18] sm:$0xff]
      %v3096 = vsel %vm603, %v3089, 0
      %3098 = vmatprep.subr.mxu0 0.0
      %3099 = vmatpush1.msra.mxu0 %v3091
      %3100 = vmatprep.subr.mxu0 0.0
      %3101 = vmatpush1.msra.mxu0 %v3092
      %3102 = vmatprep.subr.mxu0 0.0
      %3103 = vmatpush1.msra.mxu0 %v3093
      %3104 = vmatprep.subr.mxu0 0.0
      %3105 = vmatpush1.msra.mxu0 %v3094
      %3106 = vmatprep.subr.mxu0 0.0
      %3107 = vmatpush1.msra.mxu0 0.0
      %3108 = vmatprep.subr.mxu0 0.0
      %3109 = vmatpush1.msra.mxu0 0.0
      %3110 = vmatprep.subr.mxu0 0.0
      %3111 = vmatpush1.msra.mxu0 0.0
      %3112 = vmatprep.subr.mxu0 0.0
      %3113 = vmatpush1.msra.mxu0 0.0
      %3114 = vmatprep.subr.mxu0 0.0
      %3115 = vmatpush1.msra.mxu0 0.0
      %3116 = vmatprep.subr.mxu0 0.0
      %3117 = vmatpush1.msra.mxu0 0.0
      %3118 = vmatprep.subr.mxu0 0.0
      %3119 = vmatpush1.msra.mxu0 0.0
      %3120 = vmatprep.subr.mxu0 0.0
      %3121 = vmatpush1.msra.mxu0 0.0
      %3122 = vmatprep.subr.mxu0 0.0
      %3123 = vmatpush1.msra.mxu0 0.0
      %3124 = vmatprep.subr.mxu0 0.0
      %3125 = vmatpush1.msra.mxu0 0.0
      %3126 = vmatprep.subr.mxu0 0.0
      %3127 = vmatpush1.msra.mxu0 0.0
      %3128 = vmatprep.subr.mxu0 0.0
      %3129 = vmatpush1.msra.mxu0 0.0
      %3130 = vmatprep.subr.mxu0 0.0
      %3131 = vmatpush1.msra.mxu0 0.0
      %3132 = vmatprep.subr.mxu0 0.0
      %3133 = vmatpush1.msra.mxu0 0.0
      %3134 = vmatprep.subr.mxu0 0.0
      %3135 = vmatpush1.msra.mxu0 0.0
      %3136 = vmatprep.subr.mxu0 0.0
      %3137 = vmatpush1.msra.mxu0 0.0
      %3138 = vmatprep.subr.mxu0 0.0
      %3139 = vmatpush1.msra.mxu0 0.0
      %3140 = vmatprep.subr.mxu0 0.0
      %3141 = vmatpush1.msra.mxu0 0.0
      %3142 = vmatprep.subr.mxu0 0.0
      %3143 = vmatpush1.msra.mxu0 0.0
      %3144 = vmatprep.subr.mxu0 0.0
      %3145 = vmatpush1.msra.mxu0 0.0
      %3146 = vmatprep.subr.mxu0 0.0
      %3147 = vmatpush1.msra.mxu0 0.0
      %3148 = vmatprep.subr.mxu0 0.0
      %3149 = vmatpush1.msra.mxu0 0.0
      %3150 = vmatprep.subr.mxu0 0.0
      %3151 = vmatpush1.msra.mxu0 0.0
      %3152 = vmatprep.subr.mxu0 0.0
      %3153 = vmatpush1.msra.mxu0 0.0
      %3154 = vmatprep.subr.mxu0 0.0
      %3155 = vmatpush1.msra.mxu0 0.0
      %3156 = vmatprep.subr.mxu0 0.0
      %3157 = vmatpush1.msra.mxu0 0.0
      %3158 = vmatprep.subr.mxu0 0.0
      %3159 = vmatpush1.msra.mxu0 0.0
      %3160 = vmatprep.subr.mxu0 0.0
      %3161 = vmatpush1.msra.mxu0 0.0
      %3162 = vmatprep.mubr.f32.mxu0 0.0
      %3163 = vmatmul.mubr.f32.gmra.mrb[0].mxu0 %v3096
      %v3164 = vpop.f32.mrb[0].mxu0
      %v3165 = vadd.f32 0.0, %v3164
      %v3166 = vpop.f32.mrb[0].mxu0
      %3167 = vdwg.mxu0
      %v3169 = vsel %vm603, %v3084, 0
      %3171 = vmatprep.subr.mxu0 0.0
      %3172 = vmatpush1.msra.mxu0 %v3085
      %3173 = vmatprep.subr.mxu0 0.0
      %3174 = vmatpush1.msra.mxu0 %v3086
      %3175 = vmatprep.subr.mxu0 0.0
      %3176 = vmatpush1.msra.mxu0 %v3087
      %3177 = vmatprep.subr.mxu0 0.0
      %3178 = vmatpush1.msra.mxu0 %v3088
      %3179 = vmatprep.subr.mxu0 0.0
      %3180 = vmatpush1.msra.mxu0 0.0
      %3181 = vmatprep.subr.mxu0 0.0
      %3182 = vmatpush1.msra.mxu0 0.0
      %3183 = vmatprep.subr.mxu0 0.0
      %3184 = vmatpush1.msra.mxu0 0.0
      %3185 = vmatprep.subr.mxu0 0.0
      %3186 = vmatpush1.msra.mxu0 0.0
      %3187 = vmatprep.subr.mxu0 0.0
      %3188 = vmatpush1.msra.mxu0 0.0
      %3189 = vmatprep.subr.mxu0 0.0
      %3190 = vmatpush1.msra.mxu0 0.0
      %3191 = vmatprep.subr.mxu0 0.0
      %3192 = vmatpush1.msra.mxu0 0.0
      %3193 = vmatprep.subr.mxu0 0.0
      %3194 = vmatpush1.msra.mxu0 0.0
      %3195 = vmatprep.subr.mxu0 0.0
      %3196 = vmatpush1.msra.mxu0 0.0
      %3197 = vmatprep.subr.mxu0 0.0
      %3198 = vmatpush1.msra.mxu0 0.0
      %3199 = vmatprep.subr.mxu0 0.0
      %3200 = vmatpush1.msra.mxu0 0.0
      %3201 = vmatprep.subr.mxu0 0.0
      %3202 = vmatpush1.msra.mxu0 0.0
      %3203 = vmatprep.subr.mxu0 0.0
      %3204 = vmatpush1.msra.mxu0 0.0
      %3205 = vmatprep.subr.mxu0 0.0
      %3206 = vmatpush1.msra.mxu0 0.0
      %3207 = vmatprep.subr.mxu0 0.0
      %3208 = vmatpush1.msra.mxu0 0.0
      %3209 = vmatprep.subr.mxu0 0.0
      %3210 = vmatpush1.msra.mxu0 0.0
      %3211 = vmatprep.subr.mxu0 0.0
      %3212 = vmatpush1.msra.mxu0 0.0
      %3213 = vmatprep.subr.mxu0 0.0
      %3214 = vmatpush1.msra.mxu0 0.0
      %3215 = vmatprep.subr.mxu0 0.0
      %3216 = vmatpush1.msra.mxu0 0.0
      %3217 = vmatprep.subr.mxu0 0.0
      %3218 = vmatpush1.msra.mxu0 0.0
      %3219 = vmatprep.subr.mxu0 0.0
      %3220 = vmatpush1.msra.mxu0 0.0
      %3221 = vmatprep.subr.mxu0 0.0
      %3222 = vmatpush1.msra.mxu0 0.0
      %3223 = vmatprep.subr.mxu0 0.0
      %3224 = vmatpush1.msra.mxu0 0.0
      %3225 = vmatprep.subr.mxu0 0.0
      %3226 = vmatpush1.msra.mxu0 0.0
      %3227 = vmatprep.subr.mxu0 0.0
      %3228 = vmatpush1.msra.mxu0 0.0
      %3229 = vmatprep.subr.mxu0 0.0
      %3230 = vmatpush1.msra.mxu0 0.0
      %3231 = vmatprep.subr.mxu0 0.0
      %3232 = vmatpush1.msra.mxu0 0.0
      %3233 = vmatprep.subr.mxu0 0.0
      %3234 = vmatpush1.msra.mxu0 0.0
      %3235 = vmatprep.mubr.f32.mxu0 0.0
      %3236 = vmatmul.mubr.f32.gmra.mrb[0].mxu0 %v3169
      %v3237 = vpop.f32.mrb[0].mxu0
      %v3238 = vadd.f32 %v3165, %v3237
      %v3239 = vpop.f32.mrb[0].mxu0
      %3240 = vdwg.mxu0
      %v3241 = vld [vmem:[#allocation2 + $0x6] sm:$0xff]
      %s3242 = scalar_lea.vmem %s8, 64
      %v3243 = vld [vmem:[%s3242] sm:$0xff]
      %v3244 = vld [vmem:[%s3242 + $0x8] sm:$0xff]
      %v3245 = vld [vmem:[%s3242 + $0x10] sm:$0xff]
      %v3246 = vld [vmem:[%s3242 + $0x18] sm:$0xff]
      %v3248 = vsel %vm603, %v3241, 0
      %3250 = vmatprep.subr.mxu0 0.0
      %3251 = vmatpush1.msra.mxu0 %v3243
      %3252 = vmatprep.subr.mxu0 0.0
      %3253 = vmatpush1.msra.mxu0 %v3244
      %3254 = vmatprep.subr.mxu0 0.0
      %3255 = vmatpush1.msra.mxu0 %v3245
      %3256 = vmatprep.subr.mxu0 0.0
      %3257 = vmatpush1.msra.mxu0 %v3246
      %3258 = vmatprep.subr.mxu0 0.0
      %3259 = vmatpush1.msra.mxu0 0.0
      %3260 = vmatprep.subr.mxu0 0.0
      %3261 = vmatpush1.msra.mxu0 0.0
      %3262 = vmatprep.subr.mxu0 0.0
      %3263 = vmatpush1.msra.mxu0 0.0
      %3264 = vmatprep.subr.mxu0 0.0
      %3265 = vmatpush1.msra.mxu0 0.0
      %3266 = vmatprep.subr.mxu0 0.0
      %3267 = vmatpush1.msra.mxu0 0.0
      %3268 = vmatprep.subr.mxu0 0.0
      %3269 = vmatpush1.msra.mxu0 0.0
      %3270 = vmatprep.subr.mxu0 0.0
      %3271 = vmatpush1.msra.mxu0 0.0
      %3272 = vmatprep.subr.mxu0 0.0
      %3273 = vmatpush1.msra.mxu0 0.0
      %3274 = vmatprep.subr.mxu0 0.0
      %3275 = vmatpush1.msra.mxu0 0.0
      %3276 = vmatprep.subr.mxu0 0.0
      %3277 = vmatpush1.msra.mxu0 0.0
      %3278 = vmatprep.subr.mxu0 0.0
      %3279 = vmatpush1.msra.mxu0 0.0
      %3280 = vmatprep.subr.mxu0 0.0
      %3281 = vmatpush1.msra.mxu0 0.0
      %3282 = vmatprep.subr.mxu0 0.0
      %3283 = vmatpush1.msra.mxu0 0.0
      %3284 = vmatprep.subr.mxu0 0.0
      %3285 = vmatpush1.msra.mxu0 0.0
      %3286 = vmatprep.subr.mxu0 0.0
      %3287 = vmatpush1.msra.mxu0 0.0
      %3288 = vmatprep.subr.mxu0 0.0
      %3289 = vmatpush1.msra.mxu0 0.0
      %3290 = vmatprep.subr.mxu0 0.0
      %3291 = vmatpush1.msra.mxu0 0.0
      %3292 = vmatprep.subr.mxu0 0.0
      %3293 = vmatpush1.msra.mxu0 0.0
      %3294 = vmatprep.subr.mxu0 0.0
      %3295 = vmatpush1.msra.mxu0 0.0
      %3296 = vmatprep.subr.mxu0 0.0
      %3297 = vmatpush1.msra.mxu0 0.0
      %3298 = vmatprep.subr.mxu0 0.0
      %3299 = vmatpush1.msra.mxu0 0.0
      %3300 = vmatprep.subr.mxu0 0.0
      %3301 = vmatpush1.msra.mxu0 0.0
      %3302 = vmatprep.subr.mxu0 0.0
      %3303 = vmatpush1.msra.mxu0 0.0
      %3304 = vmatprep.subr.mxu0 0.0
      %3305 = vmatpush1.msra.mxu0 0.0
      %3306 = vmatprep.subr.mxu0 0.0
      %3307 = vmatpush1.msra.mxu0 0.0
      %3308 = vmatprep.subr.mxu0 0.0
      %3309 = vmatpush1.msra.mxu0 0.0
      %3310 = vmatprep.subr.mxu0 0.0
      %3311 = vmatpush1.msra.mxu0 0.0
      %3312 = vmatprep.subr.mxu0 0.0
      %3313 = vmatpush1.msra.mxu0 0.0
      %3314 = vmatprep.mubr.f32.mxu0 0.0
      %3315 = vmatmul.mubr.f32.gmra.mrb[0].mxu0 %v3248
      %v3316 = vpop.f32.mrb[0].mxu0
      %v3317 = vadd.f32 0.0, %v3316
      %v3318 = vpop.f32.mrb[0].mxu0
      %3319 = vdwg.mxu0
      %v3320 = vadd.f32 %v3238, %v3317
      %v3321 = vld [vmem:[%s9] sm:$0x1]
      %v3323 = vlaneseq
      %v3324 = vshrl.u32 %v3323, 7
      %v3325 = vsub.s32 0, %v3324
      %v3326 = vrot.slane %v3321, %v3325
      %v3328 = vmul.f32 %v3320, %v3326
      %v3329 = vld [vmem:[%s10] sm:$0x1]
      %v3331 = vlaneseq
      %v3332 = vshrl.u32 %v3331, 7
      %v3333 = vsub.s32 0, %v3332
      %v3334 = vrot.slane %v3329, %v3333
      %v3336 = vadd.f32 %v3328, %v3334
      %v3337 = vmax.f32 %v3336, 0.0
      %3338 = vst [vmem:[%s384] sm:$0xff] %v3337
      %p3339 = scmp.lt.s32.totalorder %s22, 1
      %s3340 = scalar_select %p3339, %s22, 1
      %s3341 = smul.addr %s3340, 8
      %s3342 = scalar_lea.vmem %s11, %s3341
      // Predicated region
      $region65: #{contextual_block_forward.1} parent=63 // pred_check
        %p3343 = pneg %p276
      $region66: #{contextual_block_forward.1} parent=63 // pred_check_branch
        %3345 = sbr.rel (%p3343) target = $region68
      $region67: #{contextual_block_forward.1} parent=63 // pred_region
        _
      $region68: #{contextual_block_forward.1} parent=63 // pred_fallthru
        _
    $region64: #{contextual_block_forward.1} parent=5 // pred_fallthru
      _
    %p3346 = scmp.le.s32.totalorder 2, %s17
    // Predicated region
    $region69: #{contextual_block_forward.1} parent=5 // pred_check
      %p3347 = pneg %p3346
    $region70: #{contextual_block_forward.1} parent=5 // pred_check_branch
      %3349 = sbr.rel (%p3347) target = $region72
    $region71: #{contextual_block_forward.1} parent=5 // pred_region
      %s3350 = ssub.s32 %s17, 2
      // Predicated region
      $region73: #{contextual_block_forward.1} parent=71 // pred_check
        %p3351 = pneg %p282
      $region74: #{contextual_block_forward.1} parent=71 // pred_check_branch
        %3353 = sbr.rel (%p3351) target = $region76
      $region75: #{contextual_block_forward.1} parent=71 // pred_region
        %p3354 = scmp.lt.s32.totalorder %s23, 1
        %s3355 = scalar_select %p3354, %s23, 1
        %s3356 = smul.addr %s3355, 8
        %s3357 = scalar_lea.vmem %s11, %s3356
      $region76: #{contextual_block_forward.1} parent=71 // pred_fallthru
        _
    $region72: #{contextual_block_forward.1} parent=5 // pred_fallthru
      _
  $region6: #{contextual_block_forward.1} parent=0 // loop_footer
    %s21 = sadd.s32 1, %s17
  $region7: #{contextual_block_forward.1} parent=0 // loop_footer_branch
    %16 = sbr.rel target = $region3
  $region8: #{contextual_block_forward.1} parent=0 // loop_exit
    _

</llo_original>
